<compile_context>
chip_gen: v7x
topology: tpu7x:2x2x1
jax: 0.10.0
libtpu: 0.0.40
codegen_flags: <defaults>
</compile_context>

<pallas_src>
import functools

import jax
import jax.numpy as jnp
from jax.experimental import pallas as pl
from jax.experimental.pallas import tpu as pltpu


# ----------------------------------------------------------------------------
# Pallas kernel
# ----------------------------------------------------------------------------
def blstm_statspool_kernel(
    x_ref,                                          # (T, TB, D) time-major
    wx0_ref, whh0f_ref, whh0b_ref, b0_ref,          # layer 0 fused weights
    wx1f_ref, wx1b_ref, whh1f_ref, whh1b_ref, b1_ref,   # layer 1 (wx1 split)
    wmf_ref, wmb_ref, wsf_ref, wsb_ref, be_ref,     # embedding Linear (split)
    out_ref,                                        # (TB, E)
    *, T, H, compute_dtype,
):
    TB = out_ref.shape[0]
    D = x_ref.shape[2]
    cd = compute_dtype

    # Hoisted lane-mask constants: one full-width tanh per direction per step.
    #   sigmoid(x) = 0.5 * tanh(0.5 * x) + 0.5     (i, f, o lanes)
    #   tanh(x)                                     (g lanes, cols [2H, 3H))
    col = jax.lax.broadcasted_iota(jnp.int32, (TB, 4 * H), 1)
    is_g = (col >= 2 * H) & (col < 3 * H)
    g_scale = jnp.where(is_g, 1.0, 0.5)             # pre- and post-scale
    g_off = jnp.where(is_g, 0.0, 0.5)

    def lstm_step(gate_in, h, c, whh_ref):
        # gate_in: (TB, 4H) hoisted input projection (+bias); add h @ W_hh.
        g_all = gate_in + jnp.dot(h.astype(cd), whh_ref[...],
                                  preferred_element_type=jnp.float32)
        act = jnp.tanh(g_all * g_scale) * g_scale + g_off
        i = act[:, 0 * H:1 * H]
        f = act[:, 1 * H:2 * H]
        g = act[:, 2 * H:3 * H]
        o = act[:, 3 * H:4 * H]
        c_new = f * c + i * g
        h_new = o * jnp.tanh(c_new)
        return h_new, c_new

    zeros = jnp.zeros((TB, H), jnp.float32)

    # ----- layer 0: hoisted input projection (one matmul, gate bias fused) ---
    x2d = x_ref[...].reshape(T * TB, D).astype(cd)
    proj0 = (jnp.dot(x2d, wx0_ref[...], preferred_element_type=jnp.float32)
             + b0_ref[...]).reshape(T, TB, 8 * H)

    # fwd and bwd recurrences interleaved: two independent (h, c) chains.
    h_f, c_f, h_b, c_b = zeros, zeros, zeros, zeros
    outs_f = [None] * T
    outs_b = [None] * T
    for s in range(T):                              # static T -> unrolled
        tf, tb = s, T - 1 - s
        h_f, c_f = lstm_step(proj0[tf][:, :4 * H], h_f, c_f, whh0f_ref)
        h_b, c_b = lstm_step(proj0[tb][:, 4 * H:], h_b, c_b, whh0b_ref)
        outs_f[tf] = h_f
        outs_b[tb] = h_b
    # nn.LSTM inter-layer dropout is identity at inference time.
    y0f = jnp.stack(outs_f, axis=0).reshape(T * TB, H).astype(cd)   # time-major
    y0b = jnp.stack(outs_b, axis=0).reshape(T * TB, H).astype(cd)

    # ----- layer 1: split input rows -> no lane concat of [y_f | y_b] --------
    proj1 = (jnp.dot(y0f, wx1f_ref[...], preferred_element_type=jnp.float32)
             + jnp.dot(y0b, wx1b_ref[...], preferred_element_type=jnp.float32)
             + b1_ref[...]).reshape(T, TB, 8 * H)

    # Running moments over time: no stack, no XLU time reduction.
    h_f, c_f, h_b, c_b = zeros, zeros, zeros, zeros
    s1_f, s2_f, s1_b, s2_b = zeros, zeros, zeros, zeros
    for s in range(T):
        tf, tb = s, T - 1 - s
        h_f, c_f = lstm_step(proj1[tf][:, :4 * H], h_f, c_f, whh1f_ref)
        h_b, c_b = lstm_step(proj1[tb][:, 4 * H:], h_b, c_b, whh1b_ref)
        s1_f += h_f
        s2_f += h_f * h_f
        s1_b += h_b
        s2_b += h_b * h_b

    # ----- _StatsPool: mean + unbiased std over time (torch.std default) -----
    inv_T = 1.0 / T
    inv_Tm1 = 1.0 / (T - 1)
    mean_f = s1_f * inv_T
    mean_b = s1_b * inv_T
    std_f = jnp.sqrt(jnp.maximum(s2_f - s1_f * mean_f, 0.0) * inv_Tm1)
    std_b = jnp.sqrt(jnp.maximum(s2_b - s1_b * mean_b, 0.0) * inv_Tm1)

    # ----- ReLU -> Linear (weights pre-split: no lane concat) -> ReLU --------
    mf = jnp.maximum(mean_f, 0.0).astype(cd)
    mb = jnp.maximum(mean_b, 0.0).astype(cd)
    sf = std_f.astype(cd)                           # std >= 0: ReLU is a no-op
    sb = std_b.astype(cd)
    emb = (jnp.dot(mf, wmf_ref[...], preferred_element_type=jnp.float32)
           + jnp.dot(mb, wmb_ref[...], preferred_element_type=jnp.float32)
           + jnp.dot(sf, wsf_ref[...], preferred_element_type=jnp.float32)
           + jnp.dot(sb, wsb_ref[...], preferred_element_type=jnp.float32)
           + be_ref[...])
    out_ref[...] = jnp.maximum(emb, 0.0).astype(out_ref.dtype)


# ----------------------------------------------------------------------------
# Wrapper
# ----------------------------------------------------------------------------
def _pick_batch_tile(B, cap=128):
    """Largest multiple of 8 that divides B (<= cap), preferring >= 2 grid
    steps so v7x's two TensorCores can split the batch."""
    if B <= 8:
        return B
    divs = [tb for tb in range(8, min(cap, B) + 1, 8) if B % tb == 0]
    if not divs:
        return B                        # no clean tile: one block, no padding
    two_step = [tb for tb in divs if B // tb >= 2]
    return max(two_step) if two_step else max(divs)


def blstm_statspool(x, params, *, hidden_size, embedding_size,
                    batch_tile=None, compute_dtype=jnp.float32):
    B, T, D = x.shape
    H = hidden_size
    E = embedding_size
    assert T > 1, "unbiased std over time requires T > 1"

    TB = _pick_batch_tile(B) if batch_tile is None else min(batch_tile, B)
    assert B % TB == 0 and (TB == B or TB % 8 == 0), (B, TB)
    nb = B // TB

    (wx0, whh0f, whh0b, b0), (wx1, whh1f, whh1b, b1) = params["lstm"]
    wm, ws, be = params["emb"]

    def c(w):   # matmul weights in compute dtype; biases stay f32
        return w.astype(compute_dtype)

    weights = [
        c(wx0), c(whh0f), c(whh0b), b0,
        c(wx1[:H, :]), c(wx1[H:, :]), c(whh1f), c(whh1b), b1,
        c(wm[:H, :]), c(wm[H:, :]), c(ws[:H, :]), c(ws[H:, :]), be,
    ]

    x_tm = jnp.transpose(x, (1, 0, 2))   # (T, B, D): time-major, once, outside

    kernel = functools.partial(blstm_statspool_kernel,
                               T=T, H=H, compute_dtype=compute_dtype)

    in_specs = ([pl.BlockSpec((T, TB, D), lambda i: (0, i, 0))]
                + [pl.BlockSpec(w.shape, lambda i: (0, 0)) for w in weights])
    out_spec = pl.BlockSpec((TB, E), lambda i: (i, 0))

    return pl.pallas_call(
        kernel,
        out_shape=jax.ShapeDtypeStruct((B, E), jnp.float32),
        grid=(nb,),
        in_specs=in_specs,
        out_specs=out_spec,
        compiler_params=pltpu.CompilerParams(
            dimension_semantics=("parallel",)),   # batch axis -> megacore/v7x
    )(x_tm, *weights)


# ----------------------------------------------------------------------------
# Deterministic parameter construction (PyTorch-style uniform init, synthetic),
# returned in the fused layout the kernel expects.
# ----------------------------------------------------------------------------
def make_params(key, input_size, hidden_size, embedding_size):
    H = hidden_size
    bound = 1.0 / float(H) ** 0.5
    in_sizes = [input_size, 2 * H]          # layer 0, layer 1
    keys = jax.random.split(key, 2 * 2 * 4 + 2)
    lstm = []
    ki = 0
    for d_in in in_sizes:
        per_dir = []
        for _ in range(2):                  # fwd, bwd
            w_ih = jax.random.uniform(keys[ki + 0], (4 * H, d_in), jnp.float32, -bound, bound)
            w_hh = jax.random.uniform(keys[ki + 1], (4 * H, H), jnp.float32, -bound, bound)
            b_ih = jax.random.uniform(keys[ki + 2], (4 * H,), jnp.float32, -bound, bound)
            b_hh = jax.random.uniform(keys[ki + 3], (4 * H,), jnp.float32, -bound, bound)
            ki += 4
            per_dir.append((w_ih.T, w_hh.T, (b_ih + b_hh)[None, :]))
        (wx_f, whh_f, b_f), (wx_b, whh_b, b_b) = per_dir
        wx = jnp.concatenate([wx_f, wx_b], axis=1)     # (d_in, 8H): fwd|bwd gate cols
        b = jnp.concatenate([b_f, b_b], axis=1)        # (1, 8H) fused gate bias
        lstm.append((wx, whh_f, whh_b, b))

    fan_in = 4 * H
    eb = 1.0 / float(fan_in) ** 0.5
    w = jax.random.uniform(keys[ki + 0], (embedding_size, fan_in), jnp.float32, -eb, eb)
    b_emb = jax.random.uniform(keys[ki + 1], (embedding_size,), jnp.float32, -eb, eb)
    wt = w.T                                           # (4H, E)
    emb = (wt[:2 * H, :], wt[2 * H:, :], b_emb[None, :])   # mean half, std half, bias
    return {"lstm": lstm, "emb": emb}


# ----------------------------------------------------------------------------
# Pure-JAX reference (mirrors PyTorch semantics) for the correctness check
# ----------------------------------------------------------------------------
def reference(x, params, *, hidden_size):
    H = hidden_size
    B, T, _ = x.shape

    def run_dir(inp, wx_cols, whh, b_cols, reverse):
        h = jnp.zeros((B, H), jnp.float32)
        c = jnp.zeros((B, H), jnp.float32)
        outs = [None] * T
        order = range(T - 1, -1, -1) if reverse else range(T)
        for t in order:
            g_all = inp[:, t, :] @ wx_cols + h @ whh + b_cols
            i = jax.nn.sigmoid(g_all[:, 0 * H:1 * H])
            f = jax.nn.sigmoid(g_all[:, 1 * H:2 * H])
            g = jnp.tanh(g_all[:, 2 * H:3 * H])
            o = jax.nn.sigmoid(g_all[:, 3 * H:4 * H])
            c = f * c + i * g
            h = o * jnp.tanh(c)
            outs[t] = h
        return jnp.stack(outs, axis=1)

    def run_layer(inp, layer):
        wx, whh_f, whh_b, b = layer
        y_f = run_dir(inp, wx[:, :4 * H], whh_f, b[:, :4 * H], reverse=False)
        y_b = run_dir(inp, wx[:, 4 * H:], whh_b, b[:, 4 * H:], reverse=True)
        return jnp.concatenate([y_f, y_b], axis=-1)

    y = run_layer(x, params["lstm"][0])
    y = run_layer(y, params["lstm"][1])
    mean = y.mean(axis=1)
    std = jnp.sqrt(((y - mean[:, None, :]) ** 2).sum(axis=1) / (T - 1))
    pooled = jnp.maximum(jnp.concatenate([mean, std], axis=1), 0.0)
    wm, ws, be = params["emb"]
    w_full = jnp.concatenate([wm, ws], axis=0)         # (4H, E)
    return jnp.maximum(pooled @ w_full + be, 0.0)


if __name__ == "__main__":
    # Small shapes consistent with the module's forward:
    #   x: (batch=2, seq=8, input_size=16), hidden=32, embedding=32
    B, T, D, H, E = 2, 8, 16, 32, 32

    key = jax.random.PRNGKey(0)
    kx, kx2, kp = jax.random.split(key, 3)
    params = make_params(kp, input_size=D, hidden_size=H, embedding_size=E)

    # Case 1: tiny batch (TB = B, grid = 1), strict f32 check vs reference.
    x = jax.random.normal(kx, (B, T, D), dtype=jnp.float32)
    ref = reference(x, params, hidden_size=H)
    out = jax.block_until_ready(
        blstm_statspool(x, params, hidden_size=H, embedding_size=E))
    assert out.shape == (B, E), out.shape
    assert jnp.allclose(out, ref, atol=1e-4, rtol=1e-4), \
        float(jnp.max(jnp.abs(out - ref)))

    # Case 2: batch 16 -> TB = 8, grid = 2 ("parallel" axis: v7x megacore path).
    B2 = 16
    x2 = jax.random.normal(kx2, (B2, T, D), dtype=jnp.float32)
    ref2 = reference(x2, params, hidden_size=H)
    out2 = jax.block_until_ready(
        blstm_statspool(x2, params, hidden_size=H, embedding_size=E))
    assert out2.shape == (B2, E), out2.shape
    assert jnp.allclose(out2, ref2, atol=1e-4, rtol=1e-4), \
        float(jnp.max(jnp.abs(out2 - ref2)))

    print("KERNEL_OK")
</pallas_src>

<mosaic_0001>
module attributes {stable_mosaic.version = 11 : i64} {
  func.func @blstm_statspool_kernel(%arg0: i32, %arg1: memref<8x2x16xf32, #tpu.memory_space<vmem>>, %arg2: memref<16x256xf32, #tpu.memory_space<vmem>>, %arg3: memref<32x128xf32, #tpu.memory_space<vmem>>, %arg4: memref<32x128xf32, #tpu.memory_space<vmem>>, %arg5: memref<1x256xf32, #tpu.memory_space<vmem>>, %arg6: memref<32x256xf32, #tpu.memory_space<vmem>>, %arg7: memref<32x256xf32, #tpu.memory_space<vmem>>, %arg8: memref<32x128xf32, #tpu.memory_space<vmem>>, %arg9: memref<32x128xf32, #tpu.memory_space<vmem>>, %arg10: memref<1x256xf32, #tpu.memory_space<vmem>>, %arg11: memref<32x32xf32, #tpu.memory_space<vmem>>, %arg12: memref<32x32xf32, #tpu.memory_space<vmem>>, %arg13: memref<32x32xf32, #tpu.memory_space<vmem>>, %arg14: memref<32x32xf32, #tpu.memory_space<vmem>>, %arg15: memref<1x32xf32, #tpu.memory_space<vmem>>, %arg16: memref<2x32xf32, #tpu.memory_space<vmem>>) attributes {dimension_semantics = [#tpu.dimension_semantics<parallel>], iteration_bounds = array<i64: 1>, scalar_prefetch = 0 : i64, scratch_operands = 0 : i64, tpu.core_type = #tpu.core_type<tc>, window_params = [{transform_indices = @transform_0, window_bounds = array<i64: 8, 2, 16>}, {pipeline_mode = #tpu.pipeline_mode<synchronous>, transform_indices = @transform_1, window_bounds = array<i64: 16, 256>}, {pipeline_mode = #tpu.pipeline_mode<synchronous>, transform_indices = @transform_2, window_bounds = array<i64: 32, 128>}, {pipeline_mode = #tpu.pipeline_mode<synchronous>, transform_indices = @transform_3, window_bounds = array<i64: 32, 128>}, {pipeline_mode = #tpu.pipeline_mode<synchronous>, transform_indices = @transform_4, window_bounds = array<i64: 1, 256>}, {pipeline_mode = #tpu.pipeline_mode<synchronous>, transform_indices = @transform_5, window_bounds = array<i64: 32, 256>}, {pipeline_mode = #tpu.pipeline_mode<synchronous>, transform_indices = @transform_6, window_bounds = array<i64: 32, 256>}, {pipeline_mode = #tpu.pipeline_mode<synchronous>, transform_indices = @transform_7, window_bounds = array<i64: 32, 128>}, {pipeline_mode = #tpu.pipeline_mode<synchronous>, transform_indices = @transform_8, window_bounds = array<i64: 32, 128>}, {pipeline_mode = #tpu.pipeline_mode<synchronous>, transform_indices = @transform_9, window_bounds = array<i64: 1, 256>}, {pipeline_mode = #tpu.pipeline_mode<synchronous>, transform_indices = @transform_10, window_bounds = array<i64: 32, 32>}, {pipeline_mode = #tpu.pipeline_mode<synchronous>, transform_indices = @transform_11, window_bounds = array<i64: 32, 32>}, {pipeline_mode = #tpu.pipeline_mode<synchronous>, transform_indices = @transform_12, window_bounds = array<i64: 32, 32>}, {pipeline_mode = #tpu.pipeline_mode<synchronous>, transform_indices = @transform_13, window_bounds = array<i64: 32, 32>}, {pipeline_mode = #tpu.pipeline_mode<synchronous>, transform_indices = @transform_14, window_bounds = array<i64: 1, 32>}, {transform_indices = @transform_15, window_bounds = array<i64: 2, 32>}]} {
    %0 = tpu.iota {dimensions = array<i32: 1>} : vector<2x128xi32>
    %c64_i32 = arith.constant 64 : i32
    %1 = vector.broadcast %c64_i32 : i32 to vector<2x128xi32>
    %2 = arith.cmpi sge, %0, %1 : vector<2x128xi32>
    %c96_i32 = arith.constant 96 : i32
    %3 = vector.broadcast %c96_i32 : i32 to vector<2x128xi32>
    %4 = arith.cmpi slt, %0, %3 : vector<2x128xi32>
    %5 = arith.andi %2, %4 : vector<2x128xi1>
    %cst = arith.constant 1.000000e+00 : f32
    %cst_0 = arith.constant 5.000000e-01 : f32
    %6 = vector.broadcast %cst : f32 to vector<2x128xf32>
    %7 = vector.broadcast %cst_0 : f32 to vector<2x128xf32>
    %8 = arith.select %5, %6, %7 : vector<2x128xi1>, vector<2x128xf32>
    %cst_1 = arith.constant 0.000000e+00 : f32
    %cst_2 = arith.constant 5.000000e-01 : f32
    %9 = vector.broadcast %cst_1 : f32 to vector<2x128xf32>
    %10 = vector.broadcast %cst_2 : f32 to vector<2x128xf32>
    %11 = arith.select %5, %9, %10 : vector<2x128xi1>, vector<2x128xf32>
    %cst_3 = arith.constant 0.000000e+00 : f32
    %12 = vector.broadcast %cst_3 : f32 to vector<2x32xf32>
    %c0 = arith.constant 0 : index
    %c0_4 = arith.constant 0 : index
    %c0_5 = arith.constant 0 : index
    %13 = vector.load %arg1[%c0, %c0_4, %c0_5] : memref<8x2x16xf32, #tpu.memory_space<vmem>>, vector<8x2x16xf32>
    %14 = vector.shape_cast %13 : vector<8x2x16xf32> to vector<16x16xf32>
    %c0_6 = arith.constant 0 : index
    %c0_7 = arith.constant 0 : index
    %15 = vector.load %arg2[%c0_6, %c0_7] : memref<16x256xf32, #tpu.memory_space<vmem>>, vector<16x256xf32>
    %cst_8 = arith.constant dense<0.000000e+00> : vector<16x256xf32>
    %16 = tpu.matmul %14, %15, %cst_8 {dimension_numbers = #tpu.dot_dimension_numbers<[1], [0], [0], [1], [0, 0, 1, 1], [], []>} : vector<16x16xf32>, vector<16x256xf32>, vector<16x256xf32> -> vector<16x256xf32>
    %c0_9 = arith.constant 0 : index
    %c0_10 = arith.constant 0 : index
    %17 = vector.load %arg5[%c0_9, %c0_10] : memref<1x256xf32, #tpu.memory_space<vmem>>, vector<1x256xf32>
    %18 = vector.broadcast %17 : vector<1x256xf32> to vector<16x256xf32>
    %19 = arith.addf %16, %18 : vector<16x256xf32>
    %20 = vector.shape_cast %19 : vector<16x256xf32> to vector<8x2x256xf32>
    %21 = vector.extract_strided_slice %20 {offsets = [0, 0, 0], sizes = [1, 2, 256], strides = [1, 1, 1]} : vector<8x2x256xf32> to vector<1x2x256xf32>
    %22 = vector.shape_cast %21 : vector<1x2x256xf32> to vector<2x256xf32>
    %23 = vector.extract_strided_slice %22 {offsets = [0, 0], sizes = [2, 128], strides = [1, 1]} : vector<2x256xf32> to vector<2x128xf32>
    %c0_11 = arith.constant 0 : index
    %c0_12 = arith.constant 0 : index
    %24 = vector.load %arg3[%c0_11, %c0_12] : memref<32x128xf32, #tpu.memory_space<vmem>>, vector<32x128xf32>
    %cst_13 = arith.constant dense<0.000000e+00> : vector<2x128xf32>
    %25 = tpu.matmul %12, %24, %cst_13 {dimension_numbers = #tpu.dot_dimension_numbers<[1], [0], [0], [1], [0, 0, 1, 1], [], []>} : vector<2x32xf32>, vector<32x128xf32>, vector<2x128xf32> -> vector<2x128xf32>
    %26 = arith.addf %23, %25 : vector<2x128xf32>
    %27 = arith.mulf %26, %8 : vector<2x128xf32>
    %28 = math.tanh %27 : vector<2x128xf32>
    %29 = arith.mulf %28, %8 : vector<2x128xf32>
    %30 = arith.addf %29, %11 : vector<2x128xf32>
    %31 = vector.extract_strided_slice %30 {offsets = [0, 0], sizes = [2, 32], strides = [1, 1]} : vector<2x128xf32> to vector<2x32xf32>
    %32 = vector.extract_strided_slice %30 {offsets = [0, 32], sizes = [2, 32], strides = [1, 1]} : vector<2x128xf32> to vector<2x32xf32>
    %33 = vector.extract_strided_slice %30 {offsets = [0, 64], sizes = [2, 32], strides = [1, 1]} : vector<2x128xf32> to vector<2x32xf32>
    %34 = vector.extract_strided_slice %30 {offsets = [0, 96], sizes = [2, 32], strides = [1, 1]} : vector<2x128xf32> to vector<2x32xf32>
    %35 = arith.mulf %32, %12 : vector<2x32xf32>
    %36 = arith.mulf %31, %33 : vector<2x32xf32>
    %37 = arith.addf %35, %36 : vector<2x32xf32>
    %38 = math.tanh %37 : vector<2x32xf32>
    %39 = arith.mulf %34, %38 : vector<2x32xf32>
    %40 = vector.extract_strided_slice %20 {offsets = [7, 0, 0], sizes = [1, 2, 256], strides = [1, 1, 1]} : vector<8x2x256xf32> to vector<1x2x256xf32>
    %41 = vector.shape_cast %40 : vector<1x2x256xf32> to vector<2x256xf32>
    %42 = vector.extract_strided_slice %41 {offsets = [0, 128], sizes = [2, 128], strides = [1, 1]} : vector<2x256xf32> to vector<2x128xf32>
    %c0_14 = arith.constant 0 : index
    %c0_15 = arith.constant 0 : index
    %43 = vector.load %arg4[%c0_14, %c0_15] : memref<32x128xf32, #tpu.memory_space<vmem>>, vector<32x128xf32>
    %cst_16 = arith.constant dense<0.000000e+00> : vector<2x128xf32>
    %44 = tpu.matmul %12, %43, %cst_16 {dimension_numbers = #tpu.dot_dimension_numbers<[1], [0], [0], [1], [0, 0, 1, 1], [], []>} : vector<2x32xf32>, vector<32x128xf32>, vector<2x128xf32> -> vector<2x128xf32>
    %45 = arith.addf %42, %44 : vector<2x128xf32>
    %46 = arith.mulf %45, %8 : vector<2x128xf32>
    %47 = math.tanh %46 : vector<2x128xf32>
    %48 = arith.mulf %47, %8 : vector<2x128xf32>
    %49 = arith.addf %48, %11 : vector<2x128xf32>
    %50 = vector.extract_strided_slice %49 {offsets = [0, 0], sizes = [2, 32], strides = [1, 1]} : vector<2x128xf32> to vector<2x32xf32>
    %51 = vector.extract_strided_slice %49 {offsets = [0, 32], sizes = [2, 32], strides = [1, 1]} : vector<2x128xf32> to vector<2x32xf32>
    %52 = vector.extract_strided_slice %49 {offsets = [0, 64], sizes = [2, 32], strides = [1, 1]} : vector<2x128xf32> to vector<2x32xf32>
    %53 = vector.extract_strided_slice %49 {offsets = [0, 96], sizes = [2, 32], strides = [1, 1]} : vector<2x128xf32> to vector<2x32xf32>
    %54 = arith.mulf %51, %12 : vector<2x32xf32>
    %55 = arith.mulf %50, %52 : vector<2x32xf32>
    %56 = arith.addf %54, %55 : vector<2x32xf32>
    %57 = math.tanh %56 : vector<2x32xf32>
    %58 = arith.mulf %53, %57 : vector<2x32xf32>
    %59 = vector.extract_strided_slice %20 {offsets = [1, 0, 0], sizes = [1, 2, 256], strides = [1, 1, 1]} : vector<8x2x256xf32> to vector<1x2x256xf32>
    %60 = vector.shape_cast %59 : vector<1x2x256xf32> to vector<2x256xf32>
    %61 = vector.extract_strided_slice %60 {offsets = [0, 0], sizes = [2, 128], strides = [1, 1]} : vector<2x256xf32> to vector<2x128xf32>
    %c0_17 = arith.constant 0 : index
    %c0_18 = arith.constant 0 : index
    %62 = vector.load %arg3[%c0_17, %c0_18] : memref<32x128xf32, #tpu.memory_space<vmem>>, vector<32x128xf32>
    %cst_19 = arith.constant dense<0.000000e+00> : vector<2x128xf32>
    %63 = tpu.matmul %39, %62, %cst_19 {dimension_numbers = #tpu.dot_dimension_numbers<[1], [0], [0], [1], [0, 0, 1, 1], [], []>} : vector<2x32xf32>, vector<32x128xf32>, vector<2x128xf32> -> vector<2x128xf32>
    %64 = arith.addf %61, %63 : vector<2x128xf32>
    %65 = arith.mulf %64, %8 : vector<2x128xf32>
    %66 = math.tanh %65 : vector<2x128xf32>
    %67 = arith.mulf %66, %8 : vector<2x128xf32>
    %68 = arith.addf %67, %11 : vector<2x128xf32>
    %69 = vector.extract_strided_slice %68 {offsets = [0, 0], sizes = [2, 32], strides = [1, 1]} : vector<2x128xf32> to vector<2x32xf32>
    %70 = vector.extract_strided_slice %68 {offsets = [0, 32], sizes = [2, 32], strides = [1, 1]} : vector<2x128xf32> to vector<2x32xf32>
    %71 = vector.extract_strided_slice %68 {offsets = [0, 64], sizes = [2, 32], strides = [1, 1]} : vector<2x128xf32> to vector<2x32xf32>
    %72 = vector.extract_strided_slice %68 {offsets = [0, 96], sizes = [2, 32], strides = [1, 1]} : vector<2x128xf32> to vector<2x32xf32>
    %73 = arith.mulf %70, %37 : vector<2x32xf32>
    %74 = arith.mulf %69, %71 : vector<2x32xf32>
    %75 = arith.addf %73, %74 : vector<2x32xf32>
    %76 = math.tanh %75 : vector<2x32xf32>
    %77 = arith.mulf %72, %76 : vector<2x32xf32>
    %78 = vector.extract_strided_slice %20 {offsets = [6, 0, 0], sizes = [1, 2, 256], strides = [1, 1, 1]} : vector<8x2x256xf32> to vector<1x2x256xf32>
    %79 = vector.shape_cast %78 : vector<1x2x256xf32> to vector<2x256xf32>
    %80 = vector.extract_strided_slice %79 {offsets = [0, 128], sizes = [2, 128], strides = [1, 1]} : vector<2x256xf32> to vector<2x128xf32>
    %c0_20 = arith.constant 0 : index
    %c0_21 = arith.constant 0 : index
    %81 = vector.load %arg4[%c0_20, %c0_21] : memref<32x128xf32, #tpu.memory_space<vmem>>, vector<32x128xf32>
    %cst_22 = arith.constant dense<0.000000e+00> : vector<2x128xf32>
    %82 = tpu.matmul %58, %81, %cst_22 {dimension_numbers = #tpu.dot_dimension_numbers<[1], [0], [0], [1], [0, 0, 1, 1], [], []>} : vector<2x32xf32>, vector<32x128xf32>, vector<2x128xf32> -> vector<2x128xf32>
    %83 = arith.addf %80, %82 : vector<2x128xf32>
    %84 = arith.mulf %83, %8 : vector<2x128xf32>
    %85 = math.tanh %84 : vector<2x128xf32>
    %86 = arith.mulf %85, %8 : vector<2x128xf32>
    %87 = arith.addf %86, %11 : vector<2x128xf32>
    %88 = vector.extract_strided_slice %87 {offsets = [0, 0], sizes = [2, 32], strides = [1, 1]} : vector<2x128xf32> to vector<2x32xf32>
    %89 = vector.extract_strided_slice %87 {offsets = [0, 32], sizes = [2, 32], strides = [1, 1]} : vector<2x128xf32> to vector<2x32xf32>
    %90 = vector.extract_strided_slice %87 {offsets = [0, 64], sizes = [2, 32], strides = [1, 1]} : vector<2x128xf32> to vector<2x32xf32>
    %91 = vector.extract_strided_slice %87 {offsets = [0, 96], sizes = [2, 32], strides = [1, 1]} : vector<2x128xf32> to vector<2x32xf32>
    %92 = arith.mulf %89, %56 : vector<2x32xf32>
    %93 = arith.mulf %88, %90 : vector<2x32xf32>
    %94 = arith.addf %92, %93 : vector<2x32xf32>
    %95 = math.tanh %94 : vector<2x32xf32>
    %96 = arith.mulf %91, %95 : vector<2x32xf32>
    %97 = vector.extract_strided_slice %20 {offsets = [2, 0, 0], sizes = [1, 2, 256], strides = [1, 1, 1]} : vector<8x2x256xf32> to vector<1x2x256xf32>
    %98 = vector.shape_cast %97 : vector<1x2x256xf32> to vector<2x256xf32>
    %99 = vector.extract_strided_slice %98 {offsets = [0, 0], sizes = [2, 128], strides = [1, 1]} : vector<2x256xf32> to vector<2x128xf32>
    %c0_23 = arith.constant 0 : index
    %c0_24 = arith.constant 0 : index
    %100 = vector.load %arg3[%c0_23, %c0_24] : memref<32x128xf32, #tpu.memory_space<vmem>>, vector<32x128xf32>
    %cst_25 = arith.constant dense<0.000000e+00> : vector<2x128xf32>
    %101 = tpu.matmul %77, %100, %cst_25 {dimension_numbers = #tpu.dot_dimension_numbers<[1], [0], [0], [1], [0, 0, 1, 1], [], []>} : vector<2x32xf32>, vector<32x128xf32>, vector<2x128xf32> -> vector<2x128xf32>
    %102 = arith.addf %99, %101 : vector<2x128xf32>
    %103 = arith.mulf %102, %8 : vector<2x128xf32>
    %104 = math.tanh %103 : vector<2x128xf32>
    %105 = arith.mulf %104, %8 : vector<2x128xf32>
    %106 = arith.addf %105, %11 : vector<2x128xf32>
    %107 = vector.extract_strided_slice %106 {offsets = [0, 0], sizes = [2, 32], strides = [1, 1]} : vector<2x128xf32> to vector<2x32xf32>
    %108 = vector.extract_strided_slice %106 {offsets = [0, 32], sizes = [2, 32], strides = [1, 1]} : vector<2x128xf32> to vector<2x32xf32>
    %109 = vector.extract_strided_slice %106 {offsets = [0, 64], sizes = [2, 32], strides = [1, 1]} : vector<2x128xf32> to vector<2x32xf32>
    %110 = vector.extract_strided_slice %106 {offsets = [0, 96], sizes = [2, 32], strides = [1, 1]} : vector<2x128xf32> to vector<2x32xf32>
    %111 = arith.mulf %108, %75 : vector<2x32xf32>
    %112 = arith.mulf %107, %109 : vector<2x32xf32>
    %113 = arith.addf %111, %112 : vector<2x32xf32>
    %114 = math.tanh %113 : vector<2x32xf32>
    %115 = arith.mulf %110, %114 : vector<2x32xf32>
    %116 = vector.extract_strided_slice %20 {offsets = [5, 0, 0], sizes = [1, 2, 256], strides = [1, 1, 1]} : vector<8x2x256xf32> to vector<1x2x256xf32>
    %117 = vector.shape_cast %116 : vector<1x2x256xf32> to vector<2x256xf32>
    %118 = vector.extract_strided_slice %117 {offsets = [0, 128], sizes = [2, 128], strides = [1, 1]} : vector<2x256xf32> to vector<2x128xf32>
    %c0_26 = arith.constant 0 : index
    %c0_27 = arith.constant 0 : index
    %119 = vector.load %arg4[%c0_26, %c0_27] : memref<32x128xf32, #tpu.memory_space<vmem>>, vector<32x128xf32>
    %cst_28 = arith.constant dense<0.000000e+00> : vector<2x128xf32>
    %120 = tpu.matmul %96, %119, %cst_28 {dimension_numbers = #tpu.dot_dimension_numbers<[1], [0], [0], [1], [0, 0, 1, 1], [], []>} : vector<2x32xf32>, vector<32x128xf32>, vector<2x128xf32> -> vector<2x128xf32>
    %121 = arith.addf %118, %120 : vector<2x128xf32>
    %122 = arith.mulf %121, %8 : vector<2x128xf32>
    %123 = math.tanh %122 : vector<2x128xf32>
    %124 = arith.mulf %123, %8 : vector<2x128xf32>
    %125 = arith.addf %124, %11 : vector<2x128xf32>
    %126 = vector.extract_strided_slice %125 {offsets = [0, 0], sizes = [2, 32], strides = [1, 1]} : vector<2x128xf32> to vector<2x32xf32>
    %127 = vector.extract_strided_slice %125 {offsets = [0, 32], sizes = [2, 32], strides = [1, 1]} : vector<2x128xf32> to vector<2x32xf32>
    %128 = vector.extract_strided_slice %125 {offsets = [0, 64], sizes = [2, 32], strides = [1, 1]} : vector<2x128xf32> to vector<2x32xf32>
    %129 = vector.extract_strided_slice %125 {offsets = [0, 96], sizes = [2, 32], strides = [1, 1]} : vector<2x128xf32> to vector<2x32xf32>
    %130 = arith.mulf %127, %94 : vector<2x32xf32>
    %131 = arith.mulf %126, %128 : vector<2x32xf32>
    %132 = arith.addf %130, %131 : vector<2x32xf32>
    %133 = math.tanh %132 : vector<2x32xf32>
    %134 = arith.mulf %129, %133 : vector<2x32xf32>
    %135 = vector.extract_strided_slice %20 {offsets = [3, 0, 0], sizes = [1, 2, 256], strides = [1, 1, 1]} : vector<8x2x256xf32> to vector<1x2x256xf32>
    %136 = vector.shape_cast %135 : vector<1x2x256xf32> to vector<2x256xf32>
    %137 = vector.extract_strided_slice %136 {offsets = [0, 0], sizes = [2, 128], strides = [1, 1]} : vector<2x256xf32> to vector<2x128xf32>
    %c0_29 = arith.constant 0 : index
    %c0_30 = arith.constant 0 : index
    %138 = vector.load %arg3[%c0_29, %c0_30] : memref<32x128xf32, #tpu.memory_space<vmem>>, vector<32x128xf32>
    %cst_31 = arith.constant dense<0.000000e+00> : vector<2x128xf32>
    %139 = tpu.matmul %115, %138, %cst_31 {dimension_numbers = #tpu.dot_dimension_numbers<[1], [0], [0], [1], [0, 0, 1, 1], [], []>} : vector<2x32xf32>, vector<32x128xf32>, vector<2x128xf32> -> vector<2x128xf32>
    %140 = arith.addf %137, %139 : vector<2x128xf32>
    %141 = arith.mulf %140, %8 : vector<2x128xf32>
    %142 = math.tanh %141 : vector<2x128xf32>
    %143 = arith.mulf %142, %8 : vector<2x128xf32>
    %144 = arith.addf %143, %11 : vector<2x128xf32>
    %145 = vector.extract_strided_slice %144 {offsets = [0, 0], sizes = [2, 32], strides = [1, 1]} : vector<2x128xf32> to vector<2x32xf32>
    %146 = vector.extract_strided_slice %144 {offsets = [0, 32], sizes = [2, 32], strides = [1, 1]} : vector<2x128xf32> to vector<2x32xf32>
    %147 = vector.extract_strided_slice %144 {offsets = [0, 64], sizes = [2, 32], strides = [1, 1]} : vector<2x128xf32> to vector<2x32xf32>
    %148 = vector.extract_strided_slice %144 {offsets = [0, 96], sizes = [2, 32], strides = [1, 1]} : vector<2x128xf32> to vector<2x32xf32>
    %149 = arith.mulf %146, %113 : vector<2x32xf32>
    %150 = arith.mulf %145, %147 : vector<2x32xf32>
    %151 = arith.addf %149, %150 : vector<2x32xf32>
    %152 = math.tanh %151 : vector<2x32xf32>
    %153 = arith.mulf %148, %152 : vector<2x32xf32>
    %154 = vector.extract_strided_slice %20 {offsets = [4, 0, 0], sizes = [1, 2, 256], strides = [1, 1, 1]} : vector<8x2x256xf32> to vector<1x2x256xf32>
    %155 = vector.shape_cast %154 : vector<1x2x256xf32> to vector<2x256xf32>
    %156 = vector.extract_strided_slice %155 {offsets = [0, 128], sizes = [2, 128], strides = [1, 1]} : vector<2x256xf32> to vector<2x128xf32>
    %c0_32 = arith.constant 0 : index
    %c0_33 = arith.constant 0 : index
    %157 = vector.load %arg4[%c0_32, %c0_33] : memref<32x128xf32, #tpu.memory_space<vmem>>, vector<32x128xf32>
    %cst_34 = arith.constant dense<0.000000e+00> : vector<2x128xf32>
    %158 = tpu.matmul %134, %157, %cst_34 {dimension_numbers = #tpu.dot_dimension_numbers<[1], [0], [0], [1], [0, 0, 1, 1], [], []>} : vector<2x32xf32>, vector<32x128xf32>, vector<2x128xf32> -> vector<2x128xf32>
    %159 = arith.addf %156, %158 : vector<2x128xf32>
    %160 = arith.mulf %159, %8 : vector<2x128xf32>
    %161 = math.tanh %160 : vector<2x128xf32>
    %162 = arith.mulf %161, %8 : vector<2x128xf32>
    %163 = arith.addf %162, %11 : vector<2x128xf32>
    %164 = vector.extract_strided_slice %163 {offsets = [0, 0], sizes = [2, 32], strides = [1, 1]} : vector<2x128xf32> to vector<2x32xf32>
    %165 = vector.extract_strided_slice %163 {offsets = [0, 32], sizes = [2, 32], strides = [1, 1]} : vector<2x128xf32> to vector<2x32xf32>
    %166 = vector.extract_strided_slice %163 {offsets = [0, 64], sizes = [2, 32], strides = [1, 1]} : vector<2x128xf32> to vector<2x32xf32>
    %167 = vector.extract_strided_slice %163 {offsets = [0, 96], sizes = [2, 32], strides = [1, 1]} : vector<2x128xf32> to vector<2x32xf32>
    %168 = arith.mulf %165, %132 : vector<2x32xf32>
    %169 = arith.mulf %164, %166 : vector<2x32xf32>
    %170 = arith.addf %168, %169 : vector<2x32xf32>
    %171 = math.tanh %170 : vector<2x32xf32>
    %172 = arith.mulf %167, %171 : vector<2x32xf32>
    %173 = vector.extract_strided_slice %20 {offsets = [4, 0, 0], sizes = [1, 2, 256], strides = [1, 1, 1]} : vector<8x2x256xf32> to vector<1x2x256xf32>
    %174 = vector.shape_cast %173 : vector<1x2x256xf32> to vector<2x256xf32>
    %175 = vector.extract_strided_slice %174 {offsets = [0, 0], sizes = [2, 128], strides = [1, 1]} : vector<2x256xf32> to vector<2x128xf32>
    %c0_35 = arith.constant 0 : index
    %c0_36 = arith.constant 0 : index
    %176 = vector.load %arg3[%c0_35, %c0_36] : memref<32x128xf32, #tpu.memory_space<vmem>>, vector<32x128xf32>
    %cst_37 = arith.constant dense<0.000000e+00> : vector<2x128xf32>
    %177 = tpu.matmul %153, %176, %cst_37 {dimension_numbers = #tpu.dot_dimension_numbers<[1], [0], [0], [1], [0, 0, 1, 1], [], []>} : vector<2x32xf32>, vector<32x128xf32>, vector<2x128xf32> -> vector<2x128xf32>
    %178 = arith.addf %175, %177 : vector<2x128xf32>
    %179 = arith.mulf %178, %8 : vector<2x128xf32>
    %180 = math.tanh %179 : vector<2x128xf32>
    %181 = arith.mulf %180, %8 : vector<2x128xf32>
    %182 = arith.addf %181, %11 : vector<2x128xf32>
    %183 = vector.extract_strided_slice %182 {offsets = [0, 0], sizes = [2, 32], strides = [1, 1]} : vector<2x128xf32> to vector<2x32xf32>
    %184 = vector.extract_strided_slice %182 {offsets = [0, 32], sizes = [2, 32], strides = [1, 1]} : vector<2x128xf32> to vector<2x32xf32>
    %185 = vector.extract_strided_slice %182 {offsets = [0, 64], sizes = [2, 32], strides = [1, 1]} : vector<2x128xf32> to vector<2x32xf32>
    %186 = vector.extract_strided_slice %182 {offsets = [0, 96], sizes = [2, 32], strides = [1, 1]} : vector<2x128xf32> to vector<2x32xf32>
    %187 = arith.mulf %184, %151 : vector<2x32xf32>
    %188 = arith.mulf %183, %185 : vector<2x32xf32>
    %189 = arith.addf %187, %188 : vector<2x32xf32>
    %190 = math.tanh %189 : vector<2x32xf32>
    %191 = arith.mulf %186, %190 : vector<2x32xf32>
    %192 = vector.extract_strided_slice %20 {offsets = [3, 0, 0], sizes = [1, 2, 256], strides = [1, 1, 1]} : vector<8x2x256xf32> to vector<1x2x256xf32>
    %193 = vector.shape_cast %192 : vector<1x2x256xf32> to vector<2x256xf32>
    %194 = vector.extract_strided_slice %193 {offsets = [0, 128], sizes = [2, 128], strides = [1, 1]} : vector<2x256xf32> to vector<2x128xf32>
    %c0_38 = arith.constant 0 : index
    %c0_39 = arith.constant 0 : index
    %195 = vector.load %arg4[%c0_38, %c0_39] : memref<32x128xf32, #tpu.memory_space<vmem>>, vector<32x128xf32>
    %cst_40 = arith.constant dense<0.000000e+00> : vector<2x128xf32>
    %196 = tpu.matmul %172, %195, %cst_40 {dimension_numbers = #tpu.dot_dimension_numbers<[1], [0], [0], [1], [0, 0, 1, 1], [], []>} : vector<2x32xf32>, vector<32x128xf32>, vector<2x128xf32> -> vector<2x128xf32>
    %197 = arith.addf %194, %196 : vector<2x128xf32>
    %198 = arith.mulf %197, %8 : vector<2x128xf32>
    %199 = math.tanh %198 : vector<2x128xf32>
    %200 = arith.mulf %199, %8 : vector<2x128xf32>
    %201 = arith.addf %200, %11 : vector<2x128xf32>
    %202 = vector.extract_strided_slice %201 {offsets = [0, 0], sizes = [2, 32], strides = [1, 1]} : vector<2x128xf32> to vector<2x32xf32>
    %203 = vector.extract_strided_slice %201 {offsets = [0, 32], sizes = [2, 32], strides = [1, 1]} : vector<2x128xf32> to vector<2x32xf32>
    %204 = vector.extract_strided_slice %201 {offsets = [0, 64], sizes = [2, 32], strides = [1, 1]} : vector<2x128xf32> to vector<2x32xf32>
    %205 = vector.extract_strided_slice %201 {offsets = [0, 96], sizes = [2, 32], strides = [1, 1]} : vector<2x128xf32> to vector<2x32xf32>
    %206 = arith.mulf %203, %170 : vector<2x32xf32>
    %207 = arith.mulf %202, %204 : vector<2x32xf32>
    %208 = arith.addf %206, %207 : vector<2x32xf32>
    %209 = math.tanh %208 : vector<2x32xf32>
    %210 = arith.mulf %205, %209 : vector<2x32xf32>
    %211 = vector.extract_strided_slice %20 {offsets = [5, 0, 0], sizes = [1, 2, 256], strides = [1, 1, 1]} : vector<8x2x256xf32> to vector<1x2x256xf32>
    %212 = vector.shape_cast %211 : vector<1x2x256xf32> to vector<2x256xf32>
    %213 = vector.extract_strided_slice %212 {offsets = [0, 0], sizes = [2, 128], strides = [1, 1]} : vector<2x256xf32> to vector<2x128xf32>
    %c0_41 = arith.constant 0 : index
    %c0_42 = arith.constant 0 : index
    %214 = vector.load %arg3[%c0_41, %c0_42] : memref<32x128xf32, #tpu.memory_space<vmem>>, vector<32x128xf32>
    %cst_43 = arith.constant dense<0.000000e+00> : vector<2x128xf32>
    %215 = tpu.matmul %191, %214, %cst_43 {dimension_numbers = #tpu.dot_dimension_numbers<[1], [0], [0], [1], [0, 0, 1, 1], [], []>} : vector<2x32xf32>, vector<32x128xf32>, vector<2x128xf32> -> vector<2x128xf32>
    %216 = arith.addf %213, %215 : vector<2x128xf32>
    %217 = arith.mulf %216, %8 : vector<2x128xf32>
    %218 = math.tanh %217 : vector<2x128xf32>
    %219 = arith.mulf %218, %8 : vector<2x128xf32>
    %220 = arith.addf %219, %11 : vector<2x128xf32>
    %221 = vector.extract_strided_slice %220 {offsets = [0, 0], sizes = [2, 32], strides = [1, 1]} : vector<2x128xf32> to vector<2x32xf32>
    %222 = vector.extract_strided_slice %220 {offsets = [0, 32], sizes = [2, 32], strides = [1, 1]} : vector<2x128xf32> to vector<2x32xf32>
    %223 = vector.extract_strided_slice %220 {offsets = [0, 64], sizes = [2, 32], strides = [1, 1]} : vector<2x128xf32> to vector<2x32xf32>
    %224 = vector.extract_strided_slice %220 {offsets = [0, 96], sizes = [2, 32], strides = [1, 1]} : vector<2x128xf32> to vector<2x32xf32>
    %225 = arith.mulf %222, %189 : vector<2x32xf32>
    %226 = arith.mulf %221, %223 : vector<2x32xf32>
    %227 = arith.addf %225, %226 : vector<2x32xf32>
    %228 = math.tanh %227 : vector<2x32xf32>
    %229 = arith.mulf %224, %228 : vector<2x32xf32>
    %230 = vector.extract_strided_slice %20 {offsets = [2, 0, 0], sizes = [1, 2, 256], strides = [1, 1, 1]} : vector<8x2x256xf32> to vector<1x2x256xf32>
    %231 = vector.shape_cast %230 : vector<1x2x256xf32> to vector<2x256xf32>
    %232 = vector.extract_strided_slice %231 {offsets = [0, 128], sizes = [2, 128], strides = [1, 1]} : vector<2x256xf32> to vector<2x128xf32>
    %c0_44 = arith.constant 0 : index
    %c0_45 = arith.constant 0 : index
    %233 = vector.load %arg4[%c0_44, %c0_45] : memref<32x128xf32, #tpu.memory_space<vmem>>, vector<32x128xf32>
    %cst_46 = arith.constant dense<0.000000e+00> : vector<2x128xf32>
    %234 = tpu.matmul %210, %233, %cst_46 {dimension_numbers = #tpu.dot_dimension_numbers<[1], [0], [0], [1], [0, 0, 1, 1], [], []>} : vector<2x32xf32>, vector<32x128xf32>, vector<2x128xf32> -> vector<2x128xf32>
    %235 = arith.addf %232, %234 : vector<2x128xf32>
    %236 = arith.mulf %235, %8 : vector<2x128xf32>
    %237 = math.tanh %236 : vector<2x128xf32>
    %238 = arith.mulf %237, %8 : vector<2x128xf32>
    %239 = arith.addf %238, %11 : vector<2x128xf32>
    %240 = vector.extract_strided_slice %239 {offsets = [0, 0], sizes = [2, 32], strides = [1, 1]} : vector<2x128xf32> to vector<2x32xf32>
    %241 = vector.extract_strided_slice %239 {offsets = [0, 32], sizes = [2, 32], strides = [1, 1]} : vector<2x128xf32> to vector<2x32xf32>
    %242 = vector.extract_strided_slice %239 {offsets = [0, 64], sizes = [2, 32], strides = [1, 1]} : vector<2x128xf32> to vector<2x32xf32>
    %243 = vector.extract_strided_slice %239 {offsets = [0, 96], sizes = [2, 32], strides = [1, 1]} : vector<2x128xf32> to vector<2x32xf32>
    %244 = arith.mulf %241, %208 : vector<2x32xf32>
    %245 = arith.mulf %240, %242 : vector<2x32xf32>
    %246 = arith.addf %244, %245 : vector<2x32xf32>
    %247 = math.tanh %246 : vector<2x32xf32>
    %248 = arith.mulf %243, %247 : vector<2x32xf32>
    %249 = vector.extract_strided_slice %20 {offsets = [6, 0, 0], sizes = [1, 2, 256], strides = [1, 1, 1]} : vector<8x2x256xf32> to vector<1x2x256xf32>
    %250 = vector.shape_cast %249 : vector<1x2x256xf32> to vector<2x256xf32>
    %251 = vector.extract_strided_slice %250 {offsets = [0, 0], sizes = [2, 128], strides = [1, 1]} : vector<2x256xf32> to vector<2x128xf32>
    %c0_47 = arith.constant 0 : index
    %c0_48 = arith.constant 0 : index
    %252 = vector.load %arg3[%c0_47, %c0_48] : memref<32x128xf32, #tpu.memory_space<vmem>>, vector<32x128xf32>
    %cst_49 = arith.constant dense<0.000000e+00> : vector<2x128xf32>
    %253 = tpu.matmul %229, %252, %cst_49 {dimension_numbers = #tpu.dot_dimension_numbers<[1], [0], [0], [1], [0, 0, 1, 1], [], []>} : vector<2x32xf32>, vector<32x128xf32>, vector<2x128xf32> -> vector<2x128xf32>
    %254 = arith.addf %251, %253 : vector<2x128xf32>
    %255 = arith.mulf %254, %8 : vector<2x128xf32>
    %256 = math.tanh %255 : vector<2x128xf32>
    %257 = arith.mulf %256, %8 : vector<2x128xf32>
    %258 = arith.addf %257, %11 : vector<2x128xf32>
    %259 = vector.extract_strided_slice %258 {offsets = [0, 0], sizes = [2, 32], strides = [1, 1]} : vector<2x128xf32> to vector<2x32xf32>
    %260 = vector.extract_strided_slice %258 {offsets = [0, 32], sizes = [2, 32], strides = [1, 1]} : vector<2x128xf32> to vector<2x32xf32>
    %261 = vector.extract_strided_slice %258 {offsets = [0, 64], sizes = [2, 32], strides = [1, 1]} : vector<2x128xf32> to vector<2x32xf32>
    %262 = vector.extract_strided_slice %258 {offsets = [0, 96], sizes = [2, 32], strides = [1, 1]} : vector<2x128xf32> to vector<2x32xf32>
    %263 = arith.mulf %260, %227 : vector<2x32xf32>
    %264 = arith.mulf %259, %261 : vector<2x32xf32>
    %265 = arith.addf %263, %264 : vector<2x32xf32>
    %266 = math.tanh %265 : vector<2x32xf32>
    %267 = arith.mulf %262, %266 : vector<2x32xf32>
    %268 = vector.extract_strided_slice %20 {offsets = [1, 0, 0], sizes = [1, 2, 256], strides = [1, 1, 1]} : vector<8x2x256xf32> to vector<1x2x256xf32>
    %269 = vector.shape_cast %268 : vector<1x2x256xf32> to vector<2x256xf32>
    %270 = vector.extract_strided_slice %269 {offsets = [0, 128], sizes = [2, 128], strides = [1, 1]} : vector<2x256xf32> to vector<2x128xf32>
    %c0_50 = arith.constant 0 : index
    %c0_51 = arith.constant 0 : index
    %271 = vector.load %arg4[%c0_50, %c0_51] : memref<32x128xf32, #tpu.memory_space<vmem>>, vector<32x128xf32>
    %cst_52 = arith.constant dense<0.000000e+00> : vector<2x128xf32>
    %272 = tpu.matmul %248, %271, %cst_52 {dimension_numbers = #tpu.dot_dimension_numbers<[1], [0], [0], [1], [0, 0, 1, 1], [], []>} : vector<2x32xf32>, vector<32x128xf32>, vector<2x128xf32> -> vector<2x128xf32>
    %273 = arith.addf %270, %272 : vector<2x128xf32>
    %274 = arith.mulf %273, %8 : vector<2x128xf32>
    %275 = math.tanh %274 : vector<2x128xf32>
    %276 = arith.mulf %275, %8 : vector<2x128xf32>
    %277 = arith.addf %276, %11 : vector<2x128xf32>
    %278 = vector.extract_strided_slice %277 {offsets = [0, 0], sizes = [2, 32], strides = [1, 1]} : vector<2x128xf32> to vector<2x32xf32>
    %279 = vector.extract_strided_slice %277 {offsets = [0, 32], sizes = [2, 32], strides = [1, 1]} : vector<2x128xf32> to vector<2x32xf32>
    %280 = vector.extract_strided_slice %277 {offsets = [0, 64], sizes = [2, 32], strides = [1, 1]} : vector<2x128xf32> to vector<2x32xf32>
    %281 = vector.extract_strided_slice %277 {offsets = [0, 96], sizes = [2, 32], strides = [1, 1]} : vector<2x128xf32> to vector<2x32xf32>
    %282 = arith.mulf %279, %246 : vector<2x32xf32>
    %283 = arith.mulf %278, %280 : vector<2x32xf32>
    %284 = arith.addf %282, %283 : vector<2x32xf32>
    %285 = math.tanh %284 : vector<2x32xf32>
    %286 = arith.mulf %281, %285 : vector<2x32xf32>
    %287 = vector.extract_strided_slice %20 {offsets = [7, 0, 0], sizes = [1, 2, 256], strides = [1, 1, 1]} : vector<8x2x256xf32> to vector<1x2x256xf32>
    %288 = vector.shape_cast %287 : vector<1x2x256xf32> to vector<2x256xf32>
    %289 = vector.extract_strided_slice %288 {offsets = [0, 0], sizes = [2, 128], strides = [1, 1]} : vector<2x256xf32> to vector<2x128xf32>
    %c0_53 = arith.constant 0 : index
    %c0_54 = arith.constant 0 : index
    %290 = vector.load %arg3[%c0_53, %c0_54] : memref<32x128xf32, #tpu.memory_space<vmem>>, vector<32x128xf32>
    %cst_55 = arith.constant dense<0.000000e+00> : vector<2x128xf32>
    %291 = tpu.matmul %267, %290, %cst_55 {dimension_numbers = #tpu.dot_dimension_numbers<[1], [0], [0], [1], [0, 0, 1, 1], [], []>} : vector<2x32xf32>, vector<32x128xf32>, vector<2x128xf32> -> vector<2x128xf32>
    %292 = arith.addf %289, %291 : vector<2x128xf32>
    %293 = arith.mulf %292, %8 : vector<2x128xf32>
    %294 = math.tanh %293 : vector<2x128xf32>
    %295 = arith.mulf %294, %8 : vector<2x128xf32>
    %296 = arith.addf %295, %11 : vector<2x128xf32>
    %297 = vector.extract_strided_slice %296 {offsets = [0, 0], sizes = [2, 32], strides = [1, 1]} : vector<2x128xf32> to vector<2x32xf32>
    %298 = vector.extract_strided_slice %296 {offsets = [0, 32], sizes = [2, 32], strides = [1, 1]} : vector<2x128xf32> to vector<2x32xf32>
    %299 = vector.extract_strided_slice %296 {offsets = [0, 64], sizes = [2, 32], strides = [1, 1]} : vector<2x128xf32> to vector<2x32xf32>
    %300 = vector.extract_strided_slice %296 {offsets = [0, 96], sizes = [2, 32], strides = [1, 1]} : vector<2x128xf32> to vector<2x32xf32>
    %301 = arith.mulf %298, %265 : vector<2x32xf32>
    %302 = arith.mulf %297, %299 : vector<2x32xf32>
    %303 = arith.addf %301, %302 : vector<2x32xf32>
    %304 = math.tanh %303 : vector<2x32xf32>
    %305 = arith.mulf %300, %304 : vector<2x32xf32>
    %306 = vector.extract_strided_slice %20 {offsets = [0, 0, 0], sizes = [1, 2, 256], strides = [1, 1, 1]} : vector<8x2x256xf32> to vector<1x2x256xf32>
    %307 = vector.shape_cast %306 : vector<1x2x256xf32> to vector<2x256xf32>
    %308 = vector.extract_strided_slice %307 {offsets = [0, 128], sizes = [2, 128], strides = [1, 1]} : vector<2x256xf32> to vector<2x128xf32>
    %c0_56 = arith.constant 0 : index
    %c0_57 = arith.constant 0 : index
    %309 = vector.load %arg4[%c0_56, %c0_57] : memref<32x128xf32, #tpu.memory_space<vmem>>, vector<32x128xf32>
    %cst_58 = arith.constant dense<0.000000e+00> : vector<2x128xf32>
    %310 = tpu.matmul %286, %309, %cst_58 {dimension_numbers = #tpu.dot_dimension_numbers<[1], [0], [0], [1], [0, 0, 1, 1], [], []>} : vector<2x32xf32>, vector<32x128xf32>, vector<2x128xf32> -> vector<2x128xf32>
    %311 = arith.addf %308, %310 : vector<2x128xf32>
    %312 = arith.mulf %311, %8 : vector<2x128xf32>
    %313 = math.tanh %312 : vector<2x128xf32>
    %314 = arith.mulf %313, %8 : vector<2x128xf32>
    %315 = arith.addf %314, %11 : vector<2x128xf32>
    %316 = vector.extract_strided_slice %315 {offsets = [0, 0], sizes = [2, 32], strides = [1, 1]} : vector<2x128xf32> to vector<2x32xf32>
    %317 = vector.extract_strided_slice %315 {offsets = [0, 32], sizes = [2, 32], strides = [1, 1]} : vector<2x128xf32> to vector<2x32xf32>
    %318 = vector.extract_strided_slice %315 {offsets = [0, 64], sizes = [2, 32], strides = [1, 1]} : vector<2x128xf32> to vector<2x32xf32>
    %319 = vector.extract_strided_slice %315 {offsets = [0, 96], sizes = [2, 32], strides = [1, 1]} : vector<2x128xf32> to vector<2x32xf32>
    %320 = arith.mulf %317, %284 : vector<2x32xf32>
    %321 = arith.mulf %316, %318 : vector<2x32xf32>
    %322 = arith.addf %320, %321 : vector<2x32xf32>
    %323 = math.tanh %322 : vector<2x32xf32>
    %324 = arith.mulf %319, %323 : vector<2x32xf32>
    %325 = vector.shape_cast %39 : vector<2x32xf32> to vector<1x2x32xf32>
    %326 = vector.shape_cast %77 : vector<2x32xf32> to vector<1x2x32xf32>
    %327 = vector.shape_cast %115 : vector<2x32xf32> to vector<1x2x32xf32>
    %328 = vector.shape_cast %153 : vector<2x32xf32> to vector<1x2x32xf32>
    %329 = vector.shape_cast %191 : vector<2x32xf32> to vector<1x2x32xf32>
    %330 = vector.shape_cast %229 : vector<2x32xf32> to vector<1x2x32xf32>
    %331 = vector.shape_cast %267 : vector<2x32xf32> to vector<1x2x32xf32>
    %332 = vector.shape_cast %305 : vector<2x32xf32> to vector<1x2x32xf32>
    %333 = tpu.concatenate %325, %326, %327, %328, %329, %330, %331, %332 in 0 : vector<1x2x32xf32>, vector<1x2x32xf32>, vector<1x2x32xf32>, vector<1x2x32xf32>, vector<1x2x32xf32>, vector<1x2x32xf32>, vector<1x2x32xf32>, vector<1x2x32xf32> -> vector<8x2x32xf32>
    %334 = vector.shape_cast %333 : vector<8x2x32xf32> to vector<16x32xf32>
    %335 = vector.shape_cast %324 : vector<2x32xf32> to vector<1x2x32xf32>
    %336 = vector.shape_cast %286 : vector<2x32xf32> to vector<1x2x32xf32>
    %337 = vector.shape_cast %248 : vector<2x32xf32> to vector<1x2x32xf32>
    %338 = vector.shape_cast %210 : vector<2x32xf32> to vector<1x2x32xf32>
    %339 = vector.shape_cast %172 : vector<2x32xf32> to vector<1x2x32xf32>
    %340 = vector.shape_cast %134 : vector<2x32xf32> to vector<1x2x32xf32>
    %341 = vector.shape_cast %96 : vector<2x32xf32> to vector<1x2x32xf32>
    %342 = vector.shape_cast %58 : vector<2x32xf32> to vector<1x2x32xf32>
    %343 = tpu.concatenate %335, %336, %337, %338, %339, %340, %341, %342 in 0 : vector<1x2x32xf32>, vector<1x2x32xf32>, vector<1x2x32xf32>, vector<1x2x32xf32>, vector<1x2x32xf32>, vector<1x2x32xf32>, vector<1x2x32xf32>, vector<1x2x32xf32> -> vector<8x2x32xf32>
    %344 = vector.shape_cast %343 : vector<8x2x32xf32> to vector<16x32xf32>
    %c0_59 = arith.constant 0 : index
    %c0_60 = arith.constant 0 : index
    %345 = vector.load %arg6[%c0_59, %c0_60] : memref<32x256xf32, #tpu.memory_space<vmem>>, vector<32x256xf32>
    %cst_61 = arith.constant dense<0.000000e+00> : vector<16x256xf32>
    %346 = tpu.matmul %334, %345, %cst_61 {dimension_numbers = #tpu.dot_dimension_numbers<[1], [0], [0], [1], [0, 0, 1, 1], [], []>} : vector<16x32xf32>, vector<32x256xf32>, vector<16x256xf32> -> vector<16x256xf32>
    %c0_62 = arith.constant 0 : index
    %c0_63 = arith.constant 0 : index
    %347 = vector.load %arg7[%c0_62, %c0_63] : memref<32x256xf32, #tpu.memory_space<vmem>>, vector<32x256xf32>
    %cst_64 = arith.constant dense<0.000000e+00> : vector<16x256xf32>
    %348 = tpu.matmul %344, %347, %cst_64 {dimension_numbers = #tpu.dot_dimension_numbers<[1], [0], [0], [1], [0, 0, 1, 1], [], []>} : vector<16x32xf32>, vector<32x256xf32>, vector<16x256xf32> -> vector<16x256xf32>
    %349 = arith.addf %346, %348 : vector<16x256xf32>
    %c0_65 = arith.constant 0 : index
    %c0_66 = arith.constant 0 : index
    %350 = vector.load %arg10[%c0_65, %c0_66] : memref<1x256xf32, #tpu.memory_space<vmem>>, vector<1x256xf32>
    %351 = vector.broadcast %350 : vector<1x256xf32> to vector<16x256xf32>
    %352 = arith.addf %349, %351 : vector<16x256xf32>
    %353 = vector.shape_cast %352 : vector<16x256xf32> to vector<8x2x256xf32>
    %354 = vector.extract_strided_slice %353 {offsets = [0, 0, 0], sizes = [1, 2, 256], strides = [1, 1, 1]} : vector<8x2x256xf32> to vector<1x2x256xf32>
    %355 = vector.shape_cast %354 : vector<1x2x256xf32> to vector<2x256xf32>
    %356 = vector.extract_strided_slice %355 {offsets = [0, 0], sizes = [2, 128], strides = [1, 1]} : vector<2x256xf32> to vector<2x128xf32>
    %c0_67 = arith.constant 0 : index
    %c0_68 = arith.constant 0 : index
    %357 = vector.load %arg8[%c0_67, %c0_68] : memref<32x128xf32, #tpu.memory_space<vmem>>, vector<32x128xf32>
    %cst_69 = arith.constant dense<0.000000e+00> : vector<2x128xf32>
    %358 = tpu.matmul %12, %357, %cst_69 {dimension_numbers = #tpu.dot_dimension_numbers<[1], [0], [0], [1], [0, 0, 1, 1], [], []>} : vector<2x32xf32>, vector<32x128xf32>, vector<2x128xf32> -> vector<2x128xf32>
    %359 = arith.addf %356, %358 : vector<2x128xf32>
    %360 = arith.mulf %359, %8 : vector<2x128xf32>
    %361 = math.tanh %360 : vector<2x128xf32>
    %362 = arith.mulf %361, %8 : vector<2x128xf32>
    %363 = arith.addf %362, %11 : vector<2x128xf32>
    %364 = vector.extract_strided_slice %363 {offsets = [0, 0], sizes = [2, 32], strides = [1, 1]} : vector<2x128xf32> to vector<2x32xf32>
    %365 = vector.extract_strided_slice %363 {offsets = [0, 32], sizes = [2, 32], strides = [1, 1]} : vector<2x128xf32> to vector<2x32xf32>
    %366 = vector.extract_strided_slice %363 {offsets = [0, 64], sizes = [2, 32], strides = [1, 1]} : vector<2x128xf32> to vector<2x32xf32>
    %367 = vector.extract_strided_slice %363 {offsets = [0, 96], sizes = [2, 32], strides = [1, 1]} : vector<2x128xf32> to vector<2x32xf32>
    %368 = arith.mulf %365, %12 : vector<2x32xf32>
    %369 = arith.mulf %364, %366 : vector<2x32xf32>
    %370 = arith.addf %368, %369 : vector<2x32xf32>
    %371 = math.tanh %370 : vector<2x32xf32>
    %372 = arith.mulf %367, %371 : vector<2x32xf32>
    %373 = vector.extract_strided_slice %353 {offsets = [7, 0, 0], sizes = [1, 2, 256], strides = [1, 1, 1]} : vector<8x2x256xf32> to vector<1x2x256xf32>
    %374 = vector.shape_cast %373 : vector<1x2x256xf32> to vector<2x256xf32>
    %375 = vector.extract_strided_slice %374 {offsets = [0, 128], sizes = [2, 128], strides = [1, 1]} : vector<2x256xf32> to vector<2x128xf32>
    %c0_70 = arith.constant 0 : index
    %c0_71 = arith.constant 0 : index
    %376 = vector.load %arg9[%c0_70, %c0_71] : memref<32x128xf32, #tpu.memory_space<vmem>>, vector<32x128xf32>
    %cst_72 = arith.constant dense<0.000000e+00> : vector<2x128xf32>
    %377 = tpu.matmul %12, %376, %cst_72 {dimension_numbers = #tpu.dot_dimension_numbers<[1], [0], [0], [1], [0, 0, 1, 1], [], []>} : vector<2x32xf32>, vector<32x128xf32>, vector<2x128xf32> -> vector<2x128xf32>
    %378 = arith.addf %375, %377 : vector<2x128xf32>
    %379 = arith.mulf %378, %8 : vector<2x128xf32>
    %380 = math.tanh %379 : vector<2x128xf32>
    %381 = arith.mulf %380, %8 : vector<2x128xf32>
    %382 = arith.addf %381, %11 : vector<2x128xf32>
    %383 = vector.extract_strided_slice %382 {offsets = [0, 0], sizes = [2, 32], strides = [1, 1]} : vector<2x128xf32> to vector<2x32xf32>
    %384 = vector.extract_strided_slice %382 {offsets = [0, 32], sizes = [2, 32], strides = [1, 1]} : vector<2x128xf32> to vector<2x32xf32>
    %385 = vector.extract_strided_slice %382 {offsets = [0, 64], sizes = [2, 32], strides = [1, 1]} : vector<2x128xf32> to vector<2x32xf32>
    %386 = vector.extract_strided_slice %382 {offsets = [0, 96], sizes = [2, 32], strides = [1, 1]} : vector<2x128xf32> to vector<2x32xf32>
    %387 = arith.mulf %384, %12 : vector<2x32xf32>
    %388 = arith.mulf %383, %385 : vector<2x32xf32>
    %389 = arith.addf %387, %388 : vector<2x32xf32>
    %390 = math.tanh %389 : vector<2x32xf32>
    %391 = arith.mulf %386, %390 : vector<2x32xf32>
    %392 = arith.addf %12, %372 : vector<2x32xf32>
    %393 = arith.mulf %372, %372 : vector<2x32xf32>
    %394 = arith.addf %12, %393 : vector<2x32xf32>
    %395 = arith.addf %12, %391 : vector<2x32xf32>
    %396 = arith.mulf %391, %391 : vector<2x32xf32>
    %397 = arith.addf %12, %396 : vector<2x32xf32>
    %398 = vector.extract_strided_slice %353 {offsets = [1, 0, 0], sizes = [1, 2, 256], strides = [1, 1, 1]} : vector<8x2x256xf32> to vector<1x2x256xf32>
    %399 = vector.shape_cast %398 : vector<1x2x256xf32> to vector<2x256xf32>
    %400 = vector.extract_strided_slice %399 {offsets = [0, 0], sizes = [2, 128], strides = [1, 1]} : vector<2x256xf32> to vector<2x128xf32>
    %c0_73 = arith.constant 0 : index
    %c0_74 = arith.constant 0 : index
    %401 = vector.load %arg8[%c0_73, %c0_74] : memref<32x128xf32, #tpu.memory_space<vmem>>, vector<32x128xf32>
    %cst_75 = arith.constant dense<0.000000e+00> : vector<2x128xf32>
    %402 = tpu.matmul %372, %401, %cst_75 {dimension_numbers = #tpu.dot_dimension_numbers<[1], [0], [0], [1], [0, 0, 1, 1], [], []>} : vector<2x32xf32>, vector<32x128xf32>, vector<2x128xf32> -> vector<2x128xf32>
    %403 = arith.addf %400, %402 : vector<2x128xf32>
    %404 = arith.mulf %403, %8 : vector<2x128xf32>
    %405 = math.tanh %404 : vector<2x128xf32>
    %406 = arith.mulf %405, %8 : vector<2x128xf32>
    %407 = arith.addf %406, %11 : vector<2x128xf32>
    %408 = vector.extract_strided_slice %407 {offsets = [0, 0], sizes = [2, 32], strides = [1, 1]} : vector<2x128xf32> to vector<2x32xf32>
    %409 = vector.extract_strided_slice %407 {offsets = [0, 32], sizes = [2, 32], strides = [1, 1]} : vector<2x128xf32> to vector<2x32xf32>
    %410 = vector.extract_strided_slice %407 {offsets = [0, 64], sizes = [2, 32], strides = [1, 1]} : vector<2x128xf32> to vector<2x32xf32>
    %411 = vector.extract_strided_slice %407 {offsets = [0, 96], sizes = [2, 32], strides = [1, 1]} : vector<2x128xf32> to vector<2x32xf32>
    %412 = arith.mulf %409, %370 : vector<2x32xf32>
    %413 = arith.mulf %408, %410 : vector<2x32xf32>
    %414 = arith.addf %412, %413 : vector<2x32xf32>
    %415 = math.tanh %414 : vector<2x32xf32>
    %416 = arith.mulf %411, %415 : vector<2x32xf32>
    %417 = vector.extract_strided_slice %353 {offsets = [6, 0, 0], sizes = [1, 2, 256], strides = [1, 1, 1]} : vector<8x2x256xf32> to vector<1x2x256xf32>
    %418 = vector.shape_cast %417 : vector<1x2x256xf32> to vector<2x256xf32>
    %419 = vector.extract_strided_slice %418 {offsets = [0, 128], sizes = [2, 128], strides = [1, 1]} : vector<2x256xf32> to vector<2x128xf32>
    %c0_76 = arith.constant 0 : index
    %c0_77 = arith.constant 0 : index
    %420 = vector.load %arg9[%c0_76, %c0_77] : memref<32x128xf32, #tpu.memory_space<vmem>>, vector<32x128xf32>
    %cst_78 = arith.constant dense<0.000000e+00> : vector<2x128xf32>
    %421 = tpu.matmul %391, %420, %cst_78 {dimension_numbers = #tpu.dot_dimension_numbers<[1], [0], [0], [1], [0, 0, 1, 1], [], []>} : vector<2x32xf32>, vector<32x128xf32>, vector<2x128xf32> -> vector<2x128xf32>
    %422 = arith.addf %419, %421 : vector<2x128xf32>
    %423 = arith.mulf %422, %8 : vector<2x128xf32>
    %424 = math.tanh %423 : vector<2x128xf32>
    %425 = arith.mulf %424, %8 : vector<2x128xf32>
    %426 = arith.addf %425, %11 : vector<2x128xf32>
    %427 = vector.extract_strided_slice %426 {offsets = [0, 0], sizes = [2, 32], strides = [1, 1]} : vector<2x128xf32> to vector<2x32xf32>
    %428 = vector.extract_strided_slice %426 {offsets = [0, 32], sizes = [2, 32], strides = [1, 1]} : vector<2x128xf32> to vector<2x32xf32>
    %429 = vector.extract_strided_slice %426 {offsets = [0, 64], sizes = [2, 32], strides = [1, 1]} : vector<2x128xf32> to vector<2x32xf32>
    %430 = vector.extract_strided_slice %426 {offsets = [0, 96], sizes = [2, 32], strides = [1, 1]} : vector<2x128xf32> to vector<2x32xf32>
    %431 = arith.mulf %428, %389 : vector<2x32xf32>
    %432 = arith.mulf %427, %429 : vector<2x32xf32>
    %433 = arith.addf %431, %432 : vector<2x32xf32>
    %434 = math.tanh %433 : vector<2x32xf32>
    %435 = arith.mulf %430, %434 : vector<2x32xf32>
    %436 = arith.addf %392, %416 : vector<2x32xf32>
    %437 = arith.mulf %416, %416 : vector<2x32xf32>
    %438 = arith.addf %394, %437 : vector<2x32xf32>
    %439 = arith.addf %395, %435 : vector<2x32xf32>
    %440 = arith.mulf %435, %435 : vector<2x32xf32>
    %441 = arith.addf %397, %440 : vector<2x32xf32>
    %442 = vector.extract_strided_slice %353 {offsets = [2, 0, 0], sizes = [1, 2, 256], strides = [1, 1, 1]} : vector<8x2x256xf32> to vector<1x2x256xf32>
    %443 = vector.shape_cast %442 : vector<1x2x256xf32> to vector<2x256xf32>
    %444 = vector.extract_strided_slice %443 {offsets = [0, 0], sizes = [2, 128], strides = [1, 1]} : vector<2x256xf32> to vector<2x128xf32>
    %c0_79 = arith.constant 0 : index
    %c0_80 = arith.constant 0 : index
    %445 = vector.load %arg8[%c0_79, %c0_80] : memref<32x128xf32, #tpu.memory_space<vmem>>, vector<32x128xf32>
    %cst_81 = arith.constant dense<0.000000e+00> : vector<2x128xf32>
    %446 = tpu.matmul %416, %445, %cst_81 {dimension_numbers = #tpu.dot_dimension_numbers<[1], [0], [0], [1], [0, 0, 1, 1], [], []>} : vector<2x32xf32>, vector<32x128xf32>, vector<2x128xf32> -> vector<2x128xf32>
    %447 = arith.addf %444, %446 : vector<2x128xf32>
    %448 = arith.mulf %447, %8 : vector<2x128xf32>
    %449 = math.tanh %448 : vector<2x128xf32>
    %450 = arith.mulf %449, %8 : vector<2x128xf32>
    %451 = arith.addf %450, %11 : vector<2x128xf32>
    %452 = vector.extract_strided_slice %451 {offsets = [0, 0], sizes = [2, 32], strides = [1, 1]} : vector<2x128xf32> to vector<2x32xf32>
    %453 = vector.extract_strided_slice %451 {offsets = [0, 32], sizes = [2, 32], strides = [1, 1]} : vector<2x128xf32> to vector<2x32xf32>
    %454 = vector.extract_strided_slice %451 {offsets = [0, 64], sizes = [2, 32], strides = [1, 1]} : vector<2x128xf32> to vector<2x32xf32>
    %455 = vector.extract_strided_slice %451 {offsets = [0, 96], sizes = [2, 32], strides = [1, 1]} : vector<2x128xf32> to vector<2x32xf32>
    %456 = arith.mulf %453, %414 : vector<2x32xf32>
    %457 = arith.mulf %452, %454 : vector<2x32xf32>
    %458 = arith.addf %456, %457 : vector<2x32xf32>
    %459 = math.tanh %458 : vector<2x32xf32>
    %460 = arith.mulf %455, %459 : vector<2x32xf32>
    %461 = vector.extract_strided_slice %353 {offsets = [5, 0, 0], sizes = [1, 2, 256], strides = [1, 1, 1]} : vector<8x2x256xf32> to vector<1x2x256xf32>
    %462 = vector.shape_cast %461 : vector<1x2x256xf32> to vector<2x256xf32>
    %463 = vector.extract_strided_slice %462 {offsets = [0, 128], sizes = [2, 128], strides = [1, 1]} : vector<2x256xf32> to vector<2x128xf32>
    %c0_82 = arith.constant 0 : index
    %c0_83 = arith.constant 0 : index
    %464 = vector.load %arg9[%c0_82, %c0_83] : memref<32x128xf32, #tpu.memory_space<vmem>>, vector<32x128xf32>
    %cst_84 = arith.constant dense<0.000000e+00> : vector<2x128xf32>
    %465 = tpu.matmul %435, %464, %cst_84 {dimension_numbers = #tpu.dot_dimension_numbers<[1], [0], [0], [1], [0, 0, 1, 1], [], []>} : vector<2x32xf32>, vector<32x128xf32>, vector<2x128xf32> -> vector<2x128xf32>
    %466 = arith.addf %463, %465 : vector<2x128xf32>
    %467 = arith.mulf %466, %8 : vector<2x128xf32>
    %468 = math.tanh %467 : vector<2x128xf32>
    %469 = arith.mulf %468, %8 : vector<2x128xf32>
    %470 = arith.addf %469, %11 : vector<2x128xf32>
    %471 = vector.extract_strided_slice %470 {offsets = [0, 0], sizes = [2, 32], strides = [1, 1]} : vector<2x128xf32> to vector<2x32xf32>
    %472 = vector.extract_strided_slice %470 {offsets = [0, 32], sizes = [2, 32], strides = [1, 1]} : vector<2x128xf32> to vector<2x32xf32>
    %473 = vector.extract_strided_slice %470 {offsets = [0, 64], sizes = [2, 32], strides = [1, 1]} : vector<2x128xf32> to vector<2x32xf32>
    %474 = vector.extract_strided_slice %470 {offsets = [0, 96], sizes = [2, 32], strides = [1, 1]} : vector<2x128xf32> to vector<2x32xf32>
    %475 = arith.mulf %472, %433 : vector<2x32xf32>
    %476 = arith.mulf %471, %473 : vector<2x32xf32>
    %477 = arith.addf %475, %476 : vector<2x32xf32>
    %478 = math.tanh %477 : vector<2x32xf32>
    %479 = arith.mulf %474, %478 : vector<2x32xf32>
    %480 = arith.addf %436, %460 : vector<2x32xf32>
    %481 = arith.mulf %460, %460 : vector<2x32xf32>
    %482 = arith.addf %438, %481 : vector<2x32xf32>
    %483 = arith.addf %439, %479 : vector<2x32xf32>
    %484 = arith.mulf %479, %479 : vector<2x32xf32>
    %485 = arith.addf %441, %484 : vector<2x32xf32>
    %486 = vector.extract_strided_slice %353 {offsets = [3, 0, 0], sizes = [1, 2, 256], strides = [1, 1, 1]} : vector<8x2x256xf32> to vector<1x2x256xf32>
    %487 = vector.shape_cast %486 : vector<1x2x256xf32> to vector<2x256xf32>
    %488 = vector.extract_strided_slice %487 {offsets = [0, 0], sizes = [2, 128], strides = [1, 1]} : vector<2x256xf32> to vector<2x128xf32>
    %c0_85 = arith.constant 0 : index
    %c0_86 = arith.constant 0 : index
    %489 = vector.load %arg8[%c0_85, %c0_86] : memref<32x128xf32, #tpu.memory_space<vmem>>, vector<32x128xf32>
    %cst_87 = arith.constant dense<0.000000e+00> : vector<2x128xf32>
    %490 = tpu.matmul %460, %489, %cst_87 {dimension_numbers = #tpu.dot_dimension_numbers<[1], [0], [0], [1], [0, 0, 1, 1], [], []>} : vector<2x32xf32>, vector<32x128xf32>, vector<2x128xf32> -> vector<2x128xf32>
    %491 = arith.addf %488, %490 : vector<2x128xf32>
    %492 = arith.mulf %491, %8 : vector<2x128xf32>
    %493 = math.tanh %492 : vector<2x128xf32>
    %494 = arith.mulf %493, %8 : vector<2x128xf32>
    %495 = arith.addf %494, %11 : vector<2x128xf32>
    %496 = vector.extract_strided_slice %495 {offsets = [0, 0], sizes = [2, 32], strides = [1, 1]} : vector<2x128xf32> to vector<2x32xf32>
    %497 = vector.extract_strided_slice %495 {offsets = [0, 32], sizes = [2, 32], strides = [1, 1]} : vector<2x128xf32> to vector<2x32xf32>
    %498 = vector.extract_strided_slice %495 {offsets = [0, 64], sizes = [2, 32], strides = [1, 1]} : vector<2x128xf32> to vector<2x32xf32>
    %499 = vector.extract_strided_slice %495 {offsets = [0, 96], sizes = [2, 32], strides = [1, 1]} : vector<2x128xf32> to vector<2x32xf32>
    %500 = arith.mulf %497, %458 : vector<2x32xf32>
    %501 = arith.mulf %496, %498 : vector<2x32xf32>
    %502 = arith.addf %500, %501 : vector<2x32xf32>
    %503 = math.tanh %502 : vector<2x32xf32>
    %504 = arith.mulf %499, %503 : vector<2x32xf32>
    %505 = vector.extract_strided_slice %353 {offsets = [4, 0, 0], sizes = [1, 2, 256], strides = [1, 1, 1]} : vector<8x2x256xf32> to vector<1x2x256xf32>
    %506 = vector.shape_cast %505 : vector<1x2x256xf32> to vector<2x256xf32>
    %507 = vector.extract_strided_slice %506 {offsets = [0, 128], sizes = [2, 128], strides = [1, 1]} : vector<2x256xf32> to vector<2x128xf32>
    %c0_88 = arith.constant 0 : index
    %c0_89 = arith.constant 0 : index
    %508 = vector.load %arg9[%c0_88, %c0_89] : memref<32x128xf32, #tpu.memory_space<vmem>>, vector<32x128xf32>
    %cst_90 = arith.constant dense<0.000000e+00> : vector<2x128xf32>
    %509 = tpu.matmul %479, %508, %cst_90 {dimension_numbers = #tpu.dot_dimension_numbers<[1], [0], [0], [1], [0, 0, 1, 1], [], []>} : vector<2x32xf32>, vector<32x128xf32>, vector<2x128xf32> -> vector<2x128xf32>
    %510 = arith.addf %507, %509 : vector<2x128xf32>
    %511 = arith.mulf %510, %8 : vector<2x128xf32>
    %512 = math.tanh %511 : vector<2x128xf32>
    %513 = arith.mulf %512, %8 : vector<2x128xf32>
    %514 = arith.addf %513, %11 : vector<2x128xf32>
    %515 = vector.extract_strided_slice %514 {offsets = [0, 0], sizes = [2, 32], strides = [1, 1]} : vector<2x128xf32> to vector<2x32xf32>
    %516 = vector.extract_strided_slice %514 {offsets = [0, 32], sizes = [2, 32], strides = [1, 1]} : vector<2x128xf32> to vector<2x32xf32>
    %517 = vector.extract_strided_slice %514 {offsets = [0, 64], sizes = [2, 32], strides = [1, 1]} : vector<2x128xf32> to vector<2x32xf32>
    %518 = vector.extract_strided_slice %514 {offsets = [0, 96], sizes = [2, 32], strides = [1, 1]} : vector<2x128xf32> to vector<2x32xf32>
    %519 = arith.mulf %516, %477 : vector<2x32xf32>
    %520 = arith.mulf %515, %517 : vector<2x32xf32>
    %521 = arith.addf %519, %520 : vector<2x32xf32>
    %522 = math.tanh %521 : vector<2x32xf32>
    %523 = arith.mulf %518, %522 : vector<2x32xf32>
    %524 = arith.addf %480, %504 : vector<2x32xf32>
    %525 = arith.mulf %504, %504 : vector<2x32xf32>
    %526 = arith.addf %482, %525 : vector<2x32xf32>
    %527 = arith.addf %483, %523 : vector<2x32xf32>
    %528 = arith.mulf %523, %523 : vector<2x32xf32>
    %529 = arith.addf %485, %528 : vector<2x32xf32>
    %530 = vector.extract_strided_slice %353 {offsets = [4, 0, 0], sizes = [1, 2, 256], strides = [1, 1, 1]} : vector<8x2x256xf32> to vector<1x2x256xf32>
    %531 = vector.shape_cast %530 : vector<1x2x256xf32> to vector<2x256xf32>
    %532 = vector.extract_strided_slice %531 {offsets = [0, 0], sizes = [2, 128], strides = [1, 1]} : vector<2x256xf32> to vector<2x128xf32>
    %c0_91 = arith.constant 0 : index
    %c0_92 = arith.constant 0 : index
    %533 = vector.load %arg8[%c0_91, %c0_92] : memref<32x128xf32, #tpu.memory_space<vmem>>, vector<32x128xf32>
    %cst_93 = arith.constant dense<0.000000e+00> : vector<2x128xf32>
    %534 = tpu.matmul %504, %533, %cst_93 {dimension_numbers = #tpu.dot_dimension_numbers<[1], [0], [0], [1], [0, 0, 1, 1], [], []>} : vector<2x32xf32>, vector<32x128xf32>, vector<2x128xf32> -> vector<2x128xf32>
    %535 = arith.addf %532, %534 : vector<2x128xf32>
    %536 = arith.mulf %535, %8 : vector<2x128xf32>
    %537 = math.tanh %536 : vector<2x128xf32>
    %538 = arith.mulf %537, %8 : vector<2x128xf32>
    %539 = arith.addf %538, %11 : vector<2x128xf32>
    %540 = vector.extract_strided_slice %539 {offsets = [0, 0], sizes = [2, 32], strides = [1, 1]} : vector<2x128xf32> to vector<2x32xf32>
    %541 = vector.extract_strided_slice %539 {offsets = [0, 32], sizes = [2, 32], strides = [1, 1]} : vector<2x128xf32> to vector<2x32xf32>
    %542 = vector.extract_strided_slice %539 {offsets = [0, 64], sizes = [2, 32], strides = [1, 1]} : vector<2x128xf32> to vector<2x32xf32>
    %543 = vector.extract_strided_slice %539 {offsets = [0, 96], sizes = [2, 32], strides = [1, 1]} : vector<2x128xf32> to vector<2x32xf32>
    %544 = arith.mulf %541, %502 : vector<2x32xf32>
    %545 = arith.mulf %540, %542 : vector<2x32xf32>
    %546 = arith.addf %544, %545 : vector<2x32xf32>
    %547 = math.tanh %546 : vector<2x32xf32>
    %548 = arith.mulf %543, %547 : vector<2x32xf32>
    %549 = vector.extract_strided_slice %353 {offsets = [3, 0, 0], sizes = [1, 2, 256], strides = [1, 1, 1]} : vector<8x2x256xf32> to vector<1x2x256xf32>
    %550 = vector.shape_cast %549 : vector<1x2x256xf32> to vector<2x256xf32>
    %551 = vector.extract_strided_slice %550 {offsets = [0, 128], sizes = [2, 128], strides = [1, 1]} : vector<2x256xf32> to vector<2x128xf32>
    %c0_94 = arith.constant 0 : index
    %c0_95 = arith.constant 0 : index
    %552 = vector.load %arg9[%c0_94, %c0_95] : memref<32x128xf32, #tpu.memory_space<vmem>>, vector<32x128xf32>
    %cst_96 = arith.constant dense<0.000000e+00> : vector<2x128xf32>
    %553 = tpu.matmul %523, %552, %cst_96 {dimension_numbers = #tpu.dot_dimension_numbers<[1], [0], [0], [1], [0, 0, 1, 1], [], []>} : vector<2x32xf32>, vector<32x128xf32>, vector<2x128xf32> -> vector<2x128xf32>
    %554 = arith.addf %551, %553 : vector<2x128xf32>
    %555 = arith.mulf %554, %8 : vector<2x128xf32>
    %556 = math.tanh %555 : vector<2x128xf32>
    %557 = arith.mulf %556, %8 : vector<2x128xf32>
    %558 = arith.addf %557, %11 : vector<2x128xf32>
    %559 = vector.extract_strided_slice %558 {offsets = [0, 0], sizes = [2, 32], strides = [1, 1]} : vector<2x128xf32> to vector<2x32xf32>
    %560 = vector.extract_strided_slice %558 {offsets = [0, 32], sizes = [2, 32], strides = [1, 1]} : vector<2x128xf32> to vector<2x32xf32>
    %561 = vector.extract_strided_slice %558 {offsets = [0, 64], sizes = [2, 32], strides = [1, 1]} : vector<2x128xf32> to vector<2x32xf32>
    %562 = vector.extract_strided_slice %558 {offsets = [0, 96], sizes = [2, 32], strides = [1, 1]} : vector<2x128xf32> to vector<2x32xf32>
    %563 = arith.mulf %560, %521 : vector<2x32xf32>
    %564 = arith.mulf %559, %561 : vector<2x32xf32>
    %565 = arith.addf %563, %564 : vector<2x32xf32>
    %566 = math.tanh %565 : vector<2x32xf32>
    %567 = arith.mulf %562, %566 : vector<2x32xf32>
    %568 = arith.addf %524, %548 : vector<2x32xf32>
    %569 = arith.mulf %548, %548 : vector<2x32xf32>
    %570 = arith.addf %526, %569 : vector<2x32xf32>
    %571 = arith.addf %527, %567 : vector<2x32xf32>
    %572 = arith.mulf %567, %567 : vector<2x32xf32>
    %573 = arith.addf %529, %572 : vector<2x32xf32>
    %574 = vector.extract_strided_slice %353 {offsets = [5, 0, 0], sizes = [1, 2, 256], strides = [1, 1, 1]} : vector<8x2x256xf32> to vector<1x2x256xf32>
    %575 = vector.shape_cast %574 : vector<1x2x256xf32> to vector<2x256xf32>
    %576 = vector.extract_strided_slice %575 {offsets = [0, 0], sizes = [2, 128], strides = [1, 1]} : vector<2x256xf32> to vector<2x128xf32>
    %c0_97 = arith.constant 0 : index
    %c0_98 = arith.constant 0 : index
    %577 = vector.load %arg8[%c0_97, %c0_98] : memref<32x128xf32, #tpu.memory_space<vmem>>, vector<32x128xf32>
    %cst_99 = arith.constant dense<0.000000e+00> : vector<2x128xf32>
    %578 = tpu.matmul %548, %577, %cst_99 {dimension_numbers = #tpu.dot_dimension_numbers<[1], [0], [0], [1], [0, 0, 1, 1], [], []>} : vector<2x32xf32>, vector<32x128xf32>, vector<2x128xf32> -> vector<2x128xf32>
    %579 = arith.addf %576, %578 : vector<2x128xf32>
    %580 = arith.mulf %579, %8 : vector<2x128xf32>
    %581 = math.tanh %580 : vector<2x128xf32>
    %582 = arith.mulf %581, %8 : vector<2x128xf32>
    %583 = arith.addf %582, %11 : vector<2x128xf32>
    %584 = vector.extract_strided_slice %583 {offsets = [0, 0], sizes = [2, 32], strides = [1, 1]} : vector<2x128xf32> to vector<2x32xf32>
    %585 = vector.extract_strided_slice %583 {offsets = [0, 32], sizes = [2, 32], strides = [1, 1]} : vector<2x128xf32> to vector<2x32xf32>
    %586 = vector.extract_strided_slice %583 {offsets = [0, 64], sizes = [2, 32], strides = [1, 1]} : vector<2x128xf32> to vector<2x32xf32>
    %587 = vector.extract_strided_slice %583 {offsets = [0, 96], sizes = [2, 32], strides = [1, 1]} : vector<2x128xf32> to vector<2x32xf32>
    %588 = arith.mulf %585, %546 : vector<2x32xf32>
    %589 = arith.mulf %584, %586 : vector<2x32xf32>
    %590 = arith.addf %588, %589 : vector<2x32xf32>
    %591 = math.tanh %590 : vector<2x32xf32>
    %592 = arith.mulf %587, %591 : vector<2x32xf32>
    %593 = vector.extract_strided_slice %353 {offsets = [2, 0, 0], sizes = [1, 2, 256], strides = [1, 1, 1]} : vector<8x2x256xf32> to vector<1x2x256xf32>
    %594 = vector.shape_cast %593 : vector<1x2x256xf32> to vector<2x256xf32>
    %595 = vector.extract_strided_slice %594 {offsets = [0, 128], sizes = [2, 128], strides = [1, 1]} : vector<2x256xf32> to vector<2x128xf32>
    %c0_100 = arith.constant 0 : index
    %c0_101 = arith.constant 0 : index
    %596 = vector.load %arg9[%c0_100, %c0_101] : memref<32x128xf32, #tpu.memory_space<vmem>>, vector<32x128xf32>
    %cst_102 = arith.constant dense<0.000000e+00> : vector<2x128xf32>
    %597 = tpu.matmul %567, %596, %cst_102 {dimension_numbers = #tpu.dot_dimension_numbers<[1], [0], [0], [1], [0, 0, 1, 1], [], []>} : vector<2x32xf32>, vector<32x128xf32>, vector<2x128xf32> -> vector<2x128xf32>
    %598 = arith.addf %595, %597 : vector<2x128xf32>
    %599 = arith.mulf %598, %8 : vector<2x128xf32>
    %600 = math.tanh %599 : vector<2x128xf32>
    %601 = arith.mulf %600, %8 : vector<2x128xf32>
    %602 = arith.addf %601, %11 : vector<2x128xf32>
    %603 = vector.extract_strided_slice %602 {offsets = [0, 0], sizes = [2, 32], strides = [1, 1]} : vector<2x128xf32> to vector<2x32xf32>
    %604 = vector.extract_strided_slice %602 {offsets = [0, 32], sizes = [2, 32], strides = [1, 1]} : vector<2x128xf32> to vector<2x32xf32>
    %605 = vector.extract_strided_slice %602 {offsets = [0, 64], sizes = [2, 32], strides = [1, 1]} : vector<2x128xf32> to vector<2x32xf32>
    %606 = vector.extract_strided_slice %602 {offsets = [0, 96], sizes = [2, 32], strides = [1, 1]} : vector<2x128xf32> to vector<2x32xf32>
    %607 = arith.mulf %604, %565 : vector<2x32xf32>
    %608 = arith.mulf %603, %605 : vector<2x32xf32>
    %609 = arith.addf %607, %608 : vector<2x32xf32>
    %610 = math.tanh %609 : vector<2x32xf32>
    %611 = arith.mulf %606, %610 : vector<2x32xf32>
    %612 = arith.addf %568, %592 : vector<2x32xf32>
    %613 = arith.mulf %592, %592 : vector<2x32xf32>
    %614 = arith.addf %570, %613 : vector<2x32xf32>
    %615 = arith.addf %571, %611 : vector<2x32xf32>
    %616 = arith.mulf %611, %611 : vector<2x32xf32>
    %617 = arith.addf %573, %616 : vector<2x32xf32>
    %618 = vector.extract_strided_slice %353 {offsets = [6, 0, 0], sizes = [1, 2, 256], strides = [1, 1, 1]} : vector<8x2x256xf32> to vector<1x2x256xf32>
    %619 = vector.shape_cast %618 : vector<1x2x256xf32> to vector<2x256xf32>
    %620 = vector.extract_strided_slice %619 {offsets = [0, 0], sizes = [2, 128], strides = [1, 1]} : vector<2x256xf32> to vector<2x128xf32>
    %c0_103 = arith.constant 0 : index
    %c0_104 = arith.constant 0 : index
    %621 = vector.load %arg8[%c0_103, %c0_104] : memref<32x128xf32, #tpu.memory_space<vmem>>, vector<32x128xf32>
    %cst_105 = arith.constant dense<0.000000e+00> : vector<2x128xf32>
    %622 = tpu.matmul %592, %621, %cst_105 {dimension_numbers = #tpu.dot_dimension_numbers<[1], [0], [0], [1], [0, 0, 1, 1], [], []>} : vector<2x32xf32>, vector<32x128xf32>, vector<2x128xf32> -> vector<2x128xf32>
    %623 = arith.addf %620, %622 : vector<2x128xf32>
    %624 = arith.mulf %623, %8 : vector<2x128xf32>
    %625 = math.tanh %624 : vector<2x128xf32>
    %626 = arith.mulf %625, %8 : vector<2x128xf32>
    %627 = arith.addf %626, %11 : vector<2x128xf32>
    %628 = vector.extract_strided_slice %627 {offsets = [0, 0], sizes = [2, 32], strides = [1, 1]} : vector<2x128xf32> to vector<2x32xf32>
    %629 = vector.extract_strided_slice %627 {offsets = [0, 32], sizes = [2, 32], strides = [1, 1]} : vector<2x128xf32> to vector<2x32xf32>
    %630 = vector.extract_strided_slice %627 {offsets = [0, 64], sizes = [2, 32], strides = [1, 1]} : vector<2x128xf32> to vector<2x32xf32>
    %631 = vector.extract_strided_slice %627 {offsets = [0, 96], sizes = [2, 32], strides = [1, 1]} : vector<2x128xf32> to vector<2x32xf32>
    %632 = arith.mulf %629, %590 : vector<2x32xf32>
    %633 = arith.mulf %628, %630 : vector<2x32xf32>
    %634 = arith.addf %632, %633 : vector<2x32xf32>
    %635 = math.tanh %634 : vector<2x32xf32>
    %636 = arith.mulf %631, %635 : vector<2x32xf32>
    %637 = vector.extract_strided_slice %353 {offsets = [1, 0, 0], sizes = [1, 2, 256], strides = [1, 1, 1]} : vector<8x2x256xf32> to vector<1x2x256xf32>
    %638 = vector.shape_cast %637 : vector<1x2x256xf32> to vector<2x256xf32>
    %639 = vector.extract_strided_slice %638 {offsets = [0, 128], sizes = [2, 128], strides = [1, 1]} : vector<2x256xf32> to vector<2x128xf32>
    %c0_106 = arith.constant 0 : index
    %c0_107 = arith.constant 0 : index
    %640 = vector.load %arg9[%c0_106, %c0_107] : memref<32x128xf32, #tpu.memory_space<vmem>>, vector<32x128xf32>
    %cst_108 = arith.constant dense<0.000000e+00> : vector<2x128xf32>
    %641 = tpu.matmul %611, %640, %cst_108 {dimension_numbers = #tpu.dot_dimension_numbers<[1], [0], [0], [1], [0, 0, 1, 1], [], []>} : vector<2x32xf32>, vector<32x128xf32>, vector<2x128xf32> -> vector<2x128xf32>
    %642 = arith.addf %639, %641 : vector<2x128xf32>
    %643 = arith.mulf %642, %8 : vector<2x128xf32>
    %644 = math.tanh %643 : vector<2x128xf32>
    %645 = arith.mulf %644, %8 : vector<2x128xf32>
    %646 = arith.addf %645, %11 : vector<2x128xf32>
    %647 = vector.extract_strided_slice %646 {offsets = [0, 0], sizes = [2, 32], strides = [1, 1]} : vector<2x128xf32> to vector<2x32xf32>
    %648 = vector.extract_strided_slice %646 {offsets = [0, 32], sizes = [2, 32], strides = [1, 1]} : vector<2x128xf32> to vector<2x32xf32>
    %649 = vector.extract_strided_slice %646 {offsets = [0, 64], sizes = [2, 32], strides = [1, 1]} : vector<2x128xf32> to vector<2x32xf32>
    %650 = vector.extract_strided_slice %646 {offsets = [0, 96], sizes = [2, 32], strides = [1, 1]} : vector<2x128xf32> to vector<2x32xf32>
    %651 = arith.mulf %648, %609 : vector<2x32xf32>
    %652 = arith.mulf %647, %649 : vector<2x32xf32>
    %653 = arith.addf %651, %652 : vector<2x32xf32>
    %654 = math.tanh %653 : vector<2x32xf32>
    %655 = arith.mulf %650, %654 : vector<2x32xf32>
    %656 = arith.addf %612, %636 : vector<2x32xf32>
    %657 = arith.mulf %636, %636 : vector<2x32xf32>
    %658 = arith.addf %614, %657 : vector<2x32xf32>
    %659 = arith.addf %615, %655 : vector<2x32xf32>
    %660 = arith.mulf %655, %655 : vector<2x32xf32>
    %661 = arith.addf %617, %660 : vector<2x32xf32>
    %662 = vector.extract_strided_slice %353 {offsets = [7, 0, 0], sizes = [1, 2, 256], strides = [1, 1, 1]} : vector<8x2x256xf32> to vector<1x2x256xf32>
    %663 = vector.shape_cast %662 : vector<1x2x256xf32> to vector<2x256xf32>
    %664 = vector.extract_strided_slice %663 {offsets = [0, 0], sizes = [2, 128], strides = [1, 1]} : vector<2x256xf32> to vector<2x128xf32>
    %c0_109 = arith.constant 0 : index
    %c0_110 = arith.constant 0 : index
    %665 = vector.load %arg8[%c0_109, %c0_110] : memref<32x128xf32, #tpu.memory_space<vmem>>, vector<32x128xf32>
    %cst_111 = arith.constant dense<0.000000e+00> : vector<2x128xf32>
    %666 = tpu.matmul %636, %665, %cst_111 {dimension_numbers = #tpu.dot_dimension_numbers<[1], [0], [0], [1], [0, 0, 1, 1], [], []>} : vector<2x32xf32>, vector<32x128xf32>, vector<2x128xf32> -> vector<2x128xf32>
    %667 = arith.addf %664, %666 : vector<2x128xf32>
    %668 = arith.mulf %667, %8 : vector<2x128xf32>
    %669 = math.tanh %668 : vector<2x128xf32>
    %670 = arith.mulf %669, %8 : vector<2x128xf32>
    %671 = arith.addf %670, %11 : vector<2x128xf32>
    %672 = vector.extract_strided_slice %671 {offsets = [0, 0], sizes = [2, 32], strides = [1, 1]} : vector<2x128xf32> to vector<2x32xf32>
    %673 = vector.extract_strided_slice %671 {offsets = [0, 32], sizes = [2, 32], strides = [1, 1]} : vector<2x128xf32> to vector<2x32xf32>
    %674 = vector.extract_strided_slice %671 {offsets = [0, 64], sizes = [2, 32], strides = [1, 1]} : vector<2x128xf32> to vector<2x32xf32>
    %675 = vector.extract_strided_slice %671 {offsets = [0, 96], sizes = [2, 32], strides = [1, 1]} : vector<2x128xf32> to vector<2x32xf32>
    %676 = arith.mulf %673, %634 : vector<2x32xf32>
    %677 = arith.mulf %672, %674 : vector<2x32xf32>
    %678 = arith.addf %676, %677 : vector<2x32xf32>
    %679 = math.tanh %678 : vector<2x32xf32>
    %680 = arith.mulf %675, %679 : vector<2x32xf32>
    %681 = vector.extract_strided_slice %353 {offsets = [0, 0, 0], sizes = [1, 2, 256], strides = [1, 1, 1]} : vector<8x2x256xf32> to vector<1x2x256xf32>
    %682 = vector.shape_cast %681 : vector<1x2x256xf32> to vector<2x256xf32>
    %683 = vector.extract_strided_slice %682 {offsets = [0, 128], sizes = [2, 128], strides = [1, 1]} : vector<2x256xf32> to vector<2x128xf32>
    %c0_112 = arith.constant 0 : index
    %c0_113 = arith.constant 0 : index
    %684 = vector.load %arg9[%c0_112, %c0_113] : memref<32x128xf32, #tpu.memory_space<vmem>>, vector<32x128xf32>
    %cst_114 = arith.constant dense<0.000000e+00> : vector<2x128xf32>
    %685 = tpu.matmul %655, %684, %cst_114 {dimension_numbers = #tpu.dot_dimension_numbers<[1], [0], [0], [1], [0, 0, 1, 1], [], []>} : vector<2x32xf32>, vector<32x128xf32>, vector<2x128xf32> -> vector<2x128xf32>
    %686 = arith.addf %683, %685 : vector<2x128xf32>
    %687 = arith.mulf %686, %8 : vector<2x128xf32>
    %688 = math.tanh %687 : vector<2x128xf32>
    %689 = arith.mulf %688, %8 : vector<2x128xf32>
    %690 = arith.addf %689, %11 : vector<2x128xf32>
    %691 = vector.extract_strided_slice %690 {offsets = [0, 0], sizes = [2, 32], strides = [1, 1]} : vector<2x128xf32> to vector<2x32xf32>
    %692 = vector.extract_strided_slice %690 {offsets = [0, 32], sizes = [2, 32], strides = [1, 1]} : vector<2x128xf32> to vector<2x32xf32>
    %693 = vector.extract_strided_slice %690 {offsets = [0, 64], sizes = [2, 32], strides = [1, 1]} : vector<2x128xf32> to vector<2x32xf32>
    %694 = vector.extract_strided_slice %690 {offsets = [0, 96], sizes = [2, 32], strides = [1, 1]} : vector<2x128xf32> to vector<2x32xf32>
    %695 = arith.mulf %692, %653 : vector<2x32xf32>
    %696 = arith.mulf %691, %693 : vector<2x32xf32>
    %697 = arith.addf %695, %696 : vector<2x32xf32>
    %698 = math.tanh %697 : vector<2x32xf32>
    %699 = arith.mulf %694, %698 : vector<2x32xf32>
    %700 = arith.addf %656, %680 : vector<2x32xf32>
    %701 = arith.mulf %680, %680 : vector<2x32xf32>
    %702 = arith.addf %658, %701 : vector<2x32xf32>
    %703 = arith.addf %659, %699 : vector<2x32xf32>
    %704 = arith.mulf %699, %699 : vector<2x32xf32>
    %705 = arith.addf %661, %704 : vector<2x32xf32>
    %cst_115 = arith.constant 1.250000e-01 : f32
    %706 = vector.broadcast %cst_115 : f32 to vector<2x32xf32>
    %707 = arith.mulf %700, %706 : vector<2x32xf32>
    %cst_116 = arith.constant 1.250000e-01 : f32
    %708 = vector.broadcast %cst_116 : f32 to vector<2x32xf32>
    %709 = arith.mulf %703, %708 : vector<2x32xf32>
    %710 = arith.mulf %700, %707 : vector<2x32xf32>
    %711 = arith.subf %702, %710 : vector<2x32xf32>
    %cst_117 = arith.constant 0.000000e+00 : f32
    %712 = vector.broadcast %cst_117 : f32 to vector<2x32xf32>
    %713 = arith.maximumf %711, %712 : vector<2x32xf32>
    %cst_118 = arith.constant 0.142857149 : f32
    %714 = vector.broadcast %cst_118 : f32 to vector<2x32xf32>
    %715 = arith.mulf %713, %714 : vector<2x32xf32>
    %716 = math.sqrt %715 : vector<2x32xf32>
    %717 = arith.mulf %703, %709 : vector<2x32xf32>
    %718 = arith.subf %705, %717 : vector<2x32xf32>
    %cst_119 = arith.constant 0.000000e+00 : f32
    %719 = vector.broadcast %cst_119 : f32 to vector<2x32xf32>
    %720 = arith.maximumf %718, %719 : vector<2x32xf32>
    %cst_120 = arith.constant 0.142857149 : f32
    %721 = vector.broadcast %cst_120 : f32 to vector<2x32xf32>
    %722 = arith.mulf %720, %721 : vector<2x32xf32>
    %723 = math.sqrt %722 : vector<2x32xf32>
    %cst_121 = arith.constant 0.000000e+00 : f32
    %724 = vector.broadcast %cst_121 : f32 to vector<2x32xf32>
    %725 = arith.maximumf %707, %724 : vector<2x32xf32>
    %cst_122 = arith.constant 0.000000e+00 : f32
    %726 = vector.broadcast %cst_122 : f32 to vector<2x32xf32>
    %727 = arith.maximumf %709, %726 : vector<2x32xf32>
    %c0_123 = arith.constant 0 : index
    %c0_124 = arith.constant 0 : index
    %728 = vector.load %arg11[%c0_123, %c0_124] : memref<32x32xf32, #tpu.memory_space<vmem>>, vector<32x32xf32>
    %cst_125 = arith.constant dense<0.000000e+00> : vector<2x32xf32>
    %729 = tpu.matmul %725, %728, %cst_125 {dimension_numbers = #tpu.dot_dimension_numbers<[1], [0], [0], [1], [0, 0, 1, 1], [], []>} : vector<2x32xf32>, vector<32x32xf32>, vector<2x32xf32> -> vector<2x32xf32>
    %c0_126 = arith.constant 0 : index
    %c0_127 = arith.constant 0 : index
    %730 = vector.load %arg12[%c0_126, %c0_127] : memref<32x32xf32, #tpu.memory_space<vmem>>, vector<32x32xf32>
    %cst_128 = arith.constant dense<0.000000e+00> : vector<2x32xf32>
    %731 = tpu.matmul %727, %730, %cst_128 {dimension_numbers = #tpu.dot_dimension_numbers<[1], [0], [0], [1], [0, 0, 1, 1], [], []>} : vector<2x32xf32>, vector<32x32xf32>, vector<2x32xf32> -> vector<2x32xf32>
    %732 = arith.addf %729, %731 : vector<2x32xf32>
    %c0_129 = arith.constant 0 : index
    %c0_130 = arith.constant 0 : index
    %733 = vector.load %arg13[%c0_129, %c0_130] : memref<32x32xf32, #tpu.memory_space<vmem>>, vector<32x32xf32>
    %cst_131 = arith.constant dense<0.000000e+00> : vector<2x32xf32>
    %734 = tpu.matmul %716, %733, %cst_131 {dimension_numbers = #tpu.dot_dimension_numbers<[1], [0], [0], [1], [0, 0, 1, 1], [], []>} : vector<2x32xf32>, vector<32x32xf32>, vector<2x32xf32> -> vector<2x32xf32>
    %735 = arith.addf %732, %734 : vector<2x32xf32>
    %c0_132 = arith.constant 0 : index
    %c0_133 = arith.constant 0 : index
    %736 = vector.load %arg14[%c0_132, %c0_133] : memref<32x32xf32, #tpu.memory_space<vmem>>, vector<32x32xf32>
    %cst_134 = arith.constant dense<0.000000e+00> : vector<2x32xf32>
    %737 = tpu.matmul %723, %736, %cst_134 {dimension_numbers = #tpu.dot_dimension_numbers<[1], [0], [0], [1], [0, 0, 1, 1], [], []>} : vector<2x32xf32>, vector<32x32xf32>, vector<2x32xf32> -> vector<2x32xf32>
    %738 = arith.addf %735, %737 : vector<2x32xf32>
    %c0_135 = arith.constant 0 : index
    %c0_136 = arith.constant 0 : index
    %739 = vector.load %arg15[%c0_135, %c0_136] : memref<1x32xf32, #tpu.memory_space<vmem>>, vector<1x32xf32>
    %740 = vector.broadcast %739 : vector<1x32xf32> to vector<2x32xf32>
    %741 = arith.addf %738, %740 : vector<2x32xf32>
    %cst_137 = arith.constant 0.000000e+00 : f32
    %742 = vector.broadcast %cst_137 : f32 to vector<2x32xf32>
    %743 = arith.maximumf %741, %742 : vector<2x32xf32>
    %c0_138 = arith.constant 0 : index
    %c0_139 = arith.constant 0 : index
    %744 = vector.load %arg16[%c0_138, %c0_139] : memref<2x32xf32, #tpu.memory_space<vmem>>, vector<2x32xf32>
    tpu.vector_store %arg16[%c0_138, %c0_139], %743 {strides = array<i32>} : memref<2x32xf32, #tpu.memory_space<vmem>>, vector<2x32xf32>,
    return
  }
  func.func @transform_0(%arg0: i32) -> (i32, i32, i32) {
    %c0_i32 = arith.constant 0 : i32
    %c0_i32_0 = arith.constant 0 : i32
    %c0_i32_1 = arith.constant 0 : i32
    return %c0_i32, %arg0, %c0_i32_0 : i32, i32, i32
  }
  func.func @transform_1(%arg0: i32) -> (i32, i32) {
    %c0_i32 = arith.constant 0 : i32
    %c0_i32_0 = arith.constant 0 : i32
    %c0_i32_1 = arith.constant 0 : i32
    return %c0_i32, %c0_i32_0 : i32, i32
  }
  func.func @transform_2(%arg0: i32) -> (i32, i32) {
    %c0_i32 = arith.constant 0 : i32
    %c0_i32_0 = arith.constant 0 : i32
    %c0_i32_1 = arith.constant 0 : i32
    return %c0_i32, %c0_i32_0 : i32, i32
  }
  func.func @transform_3(%arg0: i32) -> (i32, i32) {
    %c0_i32 = arith.constant 0 : i32
    %c0_i32_0 = arith.constant 0 : i32
    %c0_i32_1 = arith.constant 0 : i32
    return %c0_i32, %c0_i32_0 : i32, i32
  }
  func.func @transform_4(%arg0: i32) -> (i32, i32) {
    %c0_i32 = arith.constant 0 : i32
    %c0_i32_0 = arith.constant 0 : i32
    %c0_i32_1 = arith.constant 0 : i32
    return %c0_i32, %c0_i32_0 : i32, i32
  }
  func.func @transform_5(%arg0: i32) -> (i32, i32) {
    %c0_i32 = arith.constant 0 : i32
    %c0_i32_0 = arith.constant 0 : i32
    %c0_i32_1 = arith.constant 0 : i32
    return %c0_i32, %c0_i32_0 : i32, i32
  }
  func.func @transform_6(%arg0: i32) -> (i32, i32) {
    %c0_i32 = arith.constant 0 : i32
    %c0_i32_0 = arith.constant 0 : i32
    %c0_i32_1 = arith.constant 0 : i32
    return %c0_i32, %c0_i32_0 : i32, i32
  }
  func.func @transform_7(%arg0: i32) -> (i32, i32) {
    %c0_i32 = arith.constant 0 : i32
    %c0_i32_0 = arith.constant 0 : i32
    %c0_i32_1 = arith.constant 0 : i32
    return %c0_i32, %c0_i32_0 : i32, i32
  }
  func.func @transform_8(%arg0: i32) -> (i32, i32) {
    %c0_i32 = arith.constant 0 : i32
    %c0_i32_0 = arith.constant 0 : i32
    %c0_i32_1 = arith.constant 0 : i32
    return %c0_i32, %c0_i32_0 : i32, i32
  }
  func.func @transform_9(%arg0: i32) -> (i32, i32) {
    %c0_i32 = arith.constant 0 : i32
    %c0_i32_0 = arith.constant 0 : i32
    %c0_i32_1 = arith.constant 0 : i32
    return %c0_i32, %c0_i32_0 : i32, i32
  }
  func.func @transform_10(%arg0: i32) -> (i32, i32) {
    %c0_i32 = arith.constant 0 : i32
    %c0_i32_0 = arith.constant 0 : i32
    %c0_i32_1 = arith.constant 0 : i32
    return %c0_i32, %c0_i32_0 : i32, i32
  }
  func.func @transform_11(%arg0: i32) -> (i32, i32) {
    %c0_i32 = arith.constant 0 : i32
    %c0_i32_0 = arith.constant 0 : i32
    %c0_i32_1 = arith.constant 0 : i32
    return %c0_i32, %c0_i32_0 : i32, i32
  }
  func.func @transform_12(%arg0: i32) -> (i32, i32) {
    %c0_i32 = arith.constant 0 : i32
    %c0_i32_0 = arith.constant 0 : i32
    %c0_i32_1 = arith.constant 0 : i32
    return %c0_i32, %c0_i32_0 : i32, i32
  }
  func.func @transform_13(%arg0: i32) -> (i32, i32) {
    %c0_i32 = arith.constant 0 : i32
    %c0_i32_0 = arith.constant 0 : i32
    %c0_i32_1 = arith.constant 0 : i32
    return %c0_i32, %c0_i32_0 : i32, i32
  }
  func.func @transform_14(%arg0: i32) -> (i32, i32) {
    %c0_i32 = arith.constant 0 : i32
    %c0_i32_0 = arith.constant 0 : i32
    %c0_i32_1 = arith.constant 0 : i32
    return %c0_i32, %c0_i32_0 : i32, i32
  }
  func.func @transform_15(%arg0: i32) -> (i32, i32) {
    %c0_i32 = arith.constant 0 : i32
    %c0_i32_0 = arith.constant 0 : i32
    return %arg0, %c0_i32 : i32, i32
  }
}

</mosaic_0001>

<llo_original>
// kernel: tpu_custom_call.1
$region0: #{tpu_custom_call.1}
  #allocation0 [shape = 'u32[]', space=smem, size = 0x4, offset = 0x4, fixed_abs, tag = 'smem constant byte address 0x4 - core index']
  #allocation1 [shape = 'u32[144,128]{1,0:T(1,128)}', space=vmem, size = 0x12000, scoped, tag = 'internal scratch']
  %s0 = inlined_call_operand.hbm [shape: f32[8,2,16], index: 0, kind: input, shape index: {}]
  %s1 = inlined_call_operand.hbm [shape: f32[16,256], index: 1, kind: input, shape index: {}]
  %s2 = inlined_call_operand.hbm [shape: f32[32,128], index: 2, kind: input, shape index: {}]
  %s3 = inlined_call_operand.hbm [shape: f32[32,128], index: 3, kind: input, shape index: {}]
  %s4 = inlined_call_operand.vmem [shape: f32[1,256], index: 4, kind: input, shape index: {}]
  %s5 = inlined_call_operand.hbm [shape: f32[32,256], index: 5, kind: input, shape index: {}]
  %s6 = inlined_call_operand.hbm [shape: f32[32,256], index: 6, kind: input, shape index: {}]
  %s7 = inlined_call_operand.hbm [shape: f32[32,128], index: 7, kind: input, shape index: {}]
  %s8 = inlined_call_operand.hbm [shape: f32[32,128], index: 8, kind: input, shape index: {}]
  %s9 = inlined_call_operand.vmem [shape: f32[1,256], index: 9, kind: input, shape index: {}]
  %s10 = inlined_call_operand.vmem [shape: f32[32,32], index: 10, kind: input, shape index: {}]
  %s11 = inlined_call_operand.hbm [shape: f32[32,32], index: 11, kind: input, shape index: {}]
  %s12 = inlined_call_operand.hbm [shape: f32[32,32], index: 12, kind: input, shape index: {}]
  %s13 = inlined_call_operand.hbm [shape: f32[32,32], index: 13, kind: input, shape index: {}]
  %s14 = inlined_call_operand.vmem [shape: f32[1,32], index: 14, kind: input, shape index: {}]
  %s15 = inlined_call_operand.hbm [shape: f32[2,32], index: 15, kind: output, shape index: {}]
  %s16 = sld [smem:[#allocation0]]
  $region114: #{tpu_custom_call.1} parent=0
    _
  %s18 = ssub.s32 1, %s16
  %s19 = scalar_select 0, %s18, %s16
  $region1: #{tpu_custom_call.1} parent=0
    #allocation2 [shape = 'u8[8192]{0}', space=vmem, size = 0x2000, scoped, tag = 'input window, operand 0, single buffered']
    #allocation3 [shape = 's32[1]{0}', space=sflag, size = 0x4, scoped, tag = 'scoped memory for tpu_custom_call.1']
    #allocation4 [shape = 's32[1]{0}', space=sflag, size = 0x4, scoped, tag = 'scoped memory for tpu_custom_call.1']
    #allocation5 [shape = 'u8[16384]{0}', space=vmem, size = 0x4000, scoped, tag = 'input window, operand 1, single buffered']
    #allocation6 [shape = 's32[1]{0}', space=sflag, size = 0x4, scoped, tag = 'scoped memory for tpu_custom_call.1']
    #allocation7 [shape = 'u8[16384]{0}', space=vmem, size = 0x4000, scoped, tag = 'input window, operand 2, single buffered']
    #allocation8 [shape = 'u8[16384]{0}', space=vmem, size = 0x4000, scoped, tag = 'input window, operand 3, single buffered']
    #allocation9 [shape = 's32[1]{0}', space=sflag, size = 0x4, scoped, tag = 'scoped memory for tpu_custom_call.1']
    #allocation10 [shape = 'u8[32768]{0}', space=vmem, size = 0x8000, scoped, tag = 'input window, operand 5, single buffered']
    #allocation11 [shape = 'u8[32768]{0}', space=vmem, size = 0x8000, scoped, tag = 'input window, operand 6, single buffered']
    #allocation12 [shape = 's32[1]{0}', space=sflag, size = 0x4, scoped, tag = 'scoped memory for tpu_custom_call.1']
    #allocation13 [shape = 'u8[16384]{0}', space=vmem, size = 0x4000, scoped, tag = 'input window, operand 7, single buffered']
    #allocation14 [shape = 'u8[16384]{0}', space=vmem, size = 0x4000, scoped, tag = 'input window, operand 8, single buffered']
    #allocation15 [shape = 's32[1]{0}', space=sflag, size = 0x4, scoped, tag = 'scoped memory for tpu_custom_call.1']
    #allocation16 [shape = 'u8[16384]{0}', space=vmem, size = 0x4000, scoped, tag = 'input window, operand 11, single buffered']
    #allocation17 [shape = 'u8[16384]{0}', space=vmem, size = 0x4000, scoped, tag = 'input window, operand 12, single buffered']
    #allocation18 [shape = 's32[1]{0}', space=sflag, size = 0x4, scoped, tag = 'scoped memory for tpu_custom_call.1']
    #allocation19 [shape = 'u8[16384]{0}', space=vmem, size = 0x4000, scoped, tag = 'input window, operand 13, single buffered']
    #allocation20 [shape = 'u8[1024]{0}', space=vmem, size = 0x400, scoped, tag = 'output window, operand 0, single buffered']
    %20 = vsyncpa [#allocation3], 0
    %21 = vsyncpa [#allocation6], 0
    %22 = vsyncpa [#allocation9], 0
    %23 = vsyncpa [#allocation12], 0
    %24 = vsyncpa [#allocation15], 0
    %25 = vsyncpa [#allocation18], 0
    %26 = vsyncpa [#allocation4], 0
    // Predicated region
    $region2: #{tpu_custom_call.1} parent=1 // pred_check
      _
    $region3: #{tpu_custom_call.1} parent=1 // pred_check_branch
      %28 = sbr.rel (0) target = $region5
    $region4: #{tpu_custom_call.1} parent=1 // pred_region
      %s30 = ssub.s32 256, 256
      %31 = vsyncadd [#allocation3], %s30
      %s32 = sshll.u32 [#allocation2], 4
      %s33 = int_to_ptr.vmem [resolvable:$true] %s32
      %38 = dma.hbm_to_vmem [thread:$0]  %s0, 256, %s33, [#allocation3], 32, 32, 2
    $region5: #{tpu_custom_call.1} parent=1 // pred_fallthru
      _
    // Predicated region
    $region6: #{tpu_custom_call.1} parent=1 // pred_check
      _
    $region7: #{tpu_custom_call.1} parent=1 // pred_check_branch
      %40 = sbr.rel (0) target = $region9
    $region8: #{tpu_custom_call.1} parent=1 // pred_region
      %s42 = ssub.s32 512, 512
      %43 = vsyncadd [#allocation6], %s42
      %s44 = sshll.u32 [#allocation5], 4
      %s45 = int_to_ptr.vmem [resolvable:$true] %s44
      %50 = dma.hbm_to_vmem [thread:$0]  %s1, 512, %s45, [#allocation6], 256, 256, 16
    $region9: #{tpu_custom_call.1} parent=1 // pred_fallthru
      _
    // Predicated region
    $region10: #{tpu_custom_call.1} parent=1 // pred_check
      _
    $region11: #{tpu_custom_call.1} parent=1 // pred_check_branch
      %52 = sbr.rel (0) target = $region13
    $region12: #{tpu_custom_call.1} parent=1 // pred_region
      %s54 = ssub.s32 512, 512
      %55 = vsyncadd [#allocation6], %s54
      %s56 = sshll.u32 [#allocation7], 4
      %s57 = int_to_ptr.vmem [resolvable:$true] %s56
      %62 = dma.hbm_to_vmem [thread:$0]  %s2, 512, %s57, [#allocation6], 128, 128, 8
    $region13: #{tpu_custom_call.1} parent=1 // pred_fallthru
      _
    // Predicated region
    $region14: #{tpu_custom_call.1} parent=1 // pred_check
      _
    $region15: #{tpu_custom_call.1} parent=1 // pred_check_branch
      %64 = sbr.rel (0) target = $region17
    $region16: #{tpu_custom_call.1} parent=1 // pred_region
      %s66 = ssub.s32 512, 512
      %67 = vsyncadd [#allocation9], %s66
      %s68 = sshll.u32 [#allocation8], 4
      %s69 = int_to_ptr.vmem [resolvable:$true] %s68
      %74 = dma.hbm_to_vmem [thread:$0]  %s3, 512, %s69, [#allocation9], 128, 128, 8
    $region17: #{tpu_custom_call.1} parent=1 // pred_fallthru
      _
    // Predicated region
    $region18: #{tpu_custom_call.1} parent=1 // pred_check
      _
    $region19: #{tpu_custom_call.1} parent=1 // pred_check_branch
      %76 = sbr.rel (0) target = $region21
    $region20: #{tpu_custom_call.1} parent=1 // pred_region
      _
    $region21: #{tpu_custom_call.1} parent=1 // pred_fallthru
      _
    // Predicated region
    $region22: #{tpu_custom_call.1} parent=1 // pred_check
      _
    $region23: #{tpu_custom_call.1} parent=1 // pred_check_branch
      %78 = sbr.rel (0) target = $region25
    $region24: #{tpu_custom_call.1} parent=1 // pred_region
      %s80 = ssub.s32 1024, 1024
      %81 = vsyncadd [#allocation9], %s80
      %s82 = sshll.u32 [#allocation10], 4
      %s83 = int_to_ptr.vmem [resolvable:$true] %s82
      %88 = dma.hbm_to_vmem [thread:$0]  %s5, 1024, %s83, [#allocation9], 256, 256, 16
    $region25: #{tpu_custom_call.1} parent=1 // pred_fallthru
      _
    // Predicated region
    $region26: #{tpu_custom_call.1} parent=1 // pred_check
      _
    $region27: #{tpu_custom_call.1} parent=1 // pred_check_branch
      %90 = sbr.rel (0) target = $region29
    $region28: #{tpu_custom_call.1} parent=1 // pred_region
      %s92 = ssub.s32 1024, 1024
      %93 = vsyncadd [#allocation12], %s92
      %s94 = sshll.u32 [#allocation11], 4
      %s95 = int_to_ptr.vmem [resolvable:$true] %s94
      %100 = dma.hbm_to_vmem [thread:$0]  %s6, 1024, %s95, [#allocation12], 256, 256, 16
    $region29: #{tpu_custom_call.1} parent=1 // pred_fallthru
      _
    // Predicated region
    $region30: #{tpu_custom_call.1} parent=1 // pred_check
      _
    $region31: #{tpu_custom_call.1} parent=1 // pred_check_branch
      %102 = sbr.rel (0) target = $region33
    $region32: #{tpu_custom_call.1} parent=1 // pred_region
      %s104 = ssub.s32 512, 512
      %105 = vsyncadd [#allocation12], %s104
      %s106 = sshll.u32 [#allocation13], 4
      %s107 = int_to_ptr.vmem [resolvable:$true] %s106
      %112 = dma.hbm_to_vmem [thread:$0]  %s7, 512, %s107, [#allocation12], 128, 128, 8
    $region33: #{tpu_custom_call.1} parent=1 // pred_fallthru
      _
    // Predicated region
    $region34: #{tpu_custom_call.1} parent=1 // pred_check
      _
    $region35: #{tpu_custom_call.1} parent=1 // pred_check_branch
      %114 = sbr.rel (0) target = $region37
    $region36: #{tpu_custom_call.1} parent=1 // pred_region
      %s116 = ssub.s32 512, 512
      %117 = vsyncadd [#allocation15], %s116
      %s118 = sshll.u32 [#allocation14], 4
      %s119 = int_to_ptr.vmem [resolvable:$true] %s118
      %124 = dma.hbm_to_vmem [thread:$0]  %s8, 512, %s119, [#allocation15], 128, 128, 8
    $region37: #{tpu_custom_call.1} parent=1 // pred_fallthru
      _
    // Predicated region
    $region38: #{tpu_custom_call.1} parent=1 // pred_check
      _
    $region39: #{tpu_custom_call.1} parent=1 // pred_check_branch
      %126 = sbr.rel (0) target = $region41
    $region40: #{tpu_custom_call.1} parent=1 // pred_region
      _
    $region41: #{tpu_custom_call.1} parent=1 // pred_fallthru
      _
    // Predicated region
    $region42: #{tpu_custom_call.1} parent=1 // pred_check
      _
    $region43: #{tpu_custom_call.1} parent=1 // pred_check_branch
      %128 = sbr.rel (0) target = $region45
    $region44: #{tpu_custom_call.1} parent=1 // pred_region
      _
    $region45: #{tpu_custom_call.1} parent=1 // pred_fallthru
      _
    // Predicated region
    $region46: #{tpu_custom_call.1} parent=1 // pred_check
      _
    $region47: #{tpu_custom_call.1} parent=1 // pred_check_branch
      %130 = sbr.rel (0) target = $region49
    $region48: #{tpu_custom_call.1} parent=1 // pred_region
      %s132 = ssub.s32 512, 512
      %133 = vsyncadd [#allocation15], %s132
      %s134 = sshll.u32 [#allocation16], 4
      %s135 = int_to_ptr.vmem [resolvable:$true] %s134
      %140 = dma.hbm_to_vmem [thread:$0]  %s11, 512, %s135, [#allocation15], 128, 128, 8
    $region49: #{tpu_custom_call.1} parent=1 // pred_fallthru
      _
    // Predicated region
    $region50: #{tpu_custom_call.1} parent=1 // pred_check
      _
    $region51: #{tpu_custom_call.1} parent=1 // pred_check_branch
      %142 = sbr.rel (0) target = $region53
    $region52: #{tpu_custom_call.1} parent=1 // pred_region
      %s144 = ssub.s32 512, 512
      %145 = vsyncadd [#allocation18], %s144
      %s146 = sshll.u32 [#allocation17], 4
      %s147 = int_to_ptr.vmem [resolvable:$true] %s146
      %152 = dma.hbm_to_vmem [thread:$0]  %s12, 512, %s147, [#allocation18], 128, 128, 8
    $region53: #{tpu_custom_call.1} parent=1 // pred_fallthru
      _
    // Predicated region
    $region54: #{tpu_custom_call.1} parent=1 // pred_check
      _
    $region55: #{tpu_custom_call.1} parent=1 // pred_check_branch
      %154 = sbr.rel (0) target = $region57
    $region56: #{tpu_custom_call.1} parent=1 // pred_region
      %s156 = ssub.s32 512, 512
      %157 = vsyncadd [#allocation18], %s156
      %s158 = sshll.u32 [#allocation19], 4
      %s159 = int_to_ptr.vmem [resolvable:$true] %s158
      %164 = dma.hbm_to_vmem [thread:$0]  %s13, 512, %s159, [#allocation18], 128, 128, 8
    $region57: #{tpu_custom_call.1} parent=1 // pred_fallthru
      _
    // Predicated region
    $region58: #{tpu_custom_call.1} parent=1 // pred_check
      _
    $region59: #{tpu_custom_call.1} parent=1 // pred_check_branch
      %166 = sbr.rel (0) target = $region61
    $region60: #{tpu_custom_call.1} parent=1 // pred_region
      _
    $region61: #{tpu_custom_call.1} parent=1 // pred_fallthru
      _
    // Predicated region
    $region62: #{tpu_custom_call.1} parent=1 // pred_check
      _
    $region63: #{tpu_custom_call.1} parent=1 // pred_check_branch
      %168 = sbr.rel (0) target = $region65
    $region64: #{tpu_custom_call.1} parent=1 // pred_region
      %169 = dma.done [#allocation3], 256
    $region65: #{tpu_custom_call.1} parent=1 // pred_fallthru
      _
    // Predicated region
    $region66: #{tpu_custom_call.1} parent=1 // pred_check
      _
    $region67: #{tpu_custom_call.1} parent=1 // pred_check_branch
      %171 = sbr.rel (0) target = $region69
    $region68: #{tpu_custom_call.1} parent=1 // pred_region
      %172 = dma.done [#allocation6], 512
    $region69: #{tpu_custom_call.1} parent=1 // pred_fallthru
      _
    // Predicated region
    $region70: #{tpu_custom_call.1} parent=1 // pred_check
      _
    $region71: #{tpu_custom_call.1} parent=1 // pred_check_branch
      %174 = sbr.rel (0) target = $region73
    $region72: #{tpu_custom_call.1} parent=1 // pred_region
      %175 = dma.done [#allocation6], 512
    $region73: #{tpu_custom_call.1} parent=1 // pred_fallthru
      _
    // Predicated region
    $region74: #{tpu_custom_call.1} parent=1 // pred_check
      _
    $region75: #{tpu_custom_call.1} parent=1 // pred_check_branch
      %177 = sbr.rel (0) target = $region77
    $region76: #{tpu_custom_call.1} parent=1 // pred_region
      %178 = dma.done [#allocation9], 512
    $region77: #{tpu_custom_call.1} parent=1 // pred_fallthru
      _
    // Predicated region
    $region78: #{tpu_custom_call.1} parent=1 // pred_check
      _
    $region79: #{tpu_custom_call.1} parent=1 // pred_check_branch
      %180 = sbr.rel (0) target = $region81
    $region80: #{tpu_custom_call.1} parent=1 // pred_region
      %181 = dma.done [#allocation9], 1024
    $region81: #{tpu_custom_call.1} parent=1 // pred_fallthru
      _
    // Predicated region
    $region82: #{tpu_custom_call.1} parent=1 // pred_check
      _
    $region83: #{tpu_custom_call.1} parent=1 // pred_check_branch
      %183 = sbr.rel (0) target = $region85
    $region84: #{tpu_custom_call.1} parent=1 // pred_region
      %184 = dma.done [#allocation12], 1024
    $region85: #{tpu_custom_call.1} parent=1 // pred_fallthru
      _
    // Predicated region
    $region86: #{tpu_custom_call.1} parent=1 // pred_check
      _
    $region87: #{tpu_custom_call.1} parent=1 // pred_check_branch
      %186 = sbr.rel (0) target = $region89
    $region88: #{tpu_custom_call.1} parent=1 // pred_region
      %187 = dma.done [#allocation12], 512
    $region89: #{tpu_custom_call.1} parent=1 // pred_fallthru
      _
    // Predicated region
    $region90: #{tpu_custom_call.1} parent=1 // pred_check
      _
    $region91: #{tpu_custom_call.1} parent=1 // pred_check_branch
      %189 = sbr.rel (0) target = $region93
    $region92: #{tpu_custom_call.1} parent=1 // pred_region
      %190 = dma.done [#allocation15], 512
    $region93: #{tpu_custom_call.1} parent=1 // pred_fallthru
      _
    // Predicated region
    $region94: #{tpu_custom_call.1} parent=1 // pred_check
      _
    $region95: #{tpu_custom_call.1} parent=1 // pred_check_branch
      %192 = sbr.rel (0) target = $region97
    $region96: #{tpu_custom_call.1} parent=1 // pred_region
      %193 = dma.done [#allocation15], 512
    $region97: #{tpu_custom_call.1} parent=1 // pred_fallthru
      _
    // Predicated region
    $region98: #{tpu_custom_call.1} parent=1 // pred_check
      _
    $region99: #{tpu_custom_call.1} parent=1 // pred_check_branch
      %195 = sbr.rel (0) target = $region101
    $region100: #{tpu_custom_call.1} parent=1 // pred_region
      %196 = dma.done [#allocation18], 512
    $region101: #{tpu_custom_call.1} parent=1 // pred_fallthru
      _
    // Predicated region
    $region102: #{tpu_custom_call.1} parent=1 // pred_check
      _
    $region103: #{tpu_custom_call.1} parent=1 // pred_check_branch
      %198 = sbr.rel (0) target = $region105
    $region104: #{tpu_custom_call.1} parent=1 // pred_region
      %199 = dma.done [#allocation18], 512
    $region105: #{tpu_custom_call.1} parent=1 // pred_fallthru
      _
    %v200 = vlaneseq
    %v201 = vand.u32 %v200, 127
    %vm202 = vcmp.ge.s32.totalorder %v201, 64
    %vm203 = vcmp.lt.s32.totalorder %v201, 96
    %vm204 = vmand %vm202, %vm203
    %v205 = vsel %vm204, 1.0, 0.5
    %v206 = vsel %vm204, 0.0, 0.5
    %v207 = vld [vmem:[#allocation2] sm:$0x3]
    %v208 = vld [vmem:[#allocation2 + $0x2] sm:$0x3]
    %v209 = vld [vmem:[#allocation2 + $0x4] sm:$0x3]
    %v210 = vld [vmem:[#allocation2 + $0x6] sm:$0x3]
    %v211 = vld [vmem:[#allocation2 + $0x8] sm:$0x3]
    %v212 = vld [vmem:[#allocation2 + $0xa] sm:$0x3]
    %v213 = vld [vmem:[#allocation2 + $0xc] sm:$0x3]
    %v214 = vld [vmem:[#allocation2 + $0xe] sm:$0x3]
    %v215 = vld [vmem:[#allocation5] sm:$0xff]
    %v216 = vld [vmem:[#allocation5 + $0x8] sm:$0xff]
    %v217 = vld [vmem:[#allocation5 + $0x10] sm:$0xff]
    %v218 = vld [vmem:[#allocation5 + $0x18] sm:$0xff]
    %v219 = vld [vmem:[%s4] sm:$0x3]
    %v221 = vlaneseq
    %v222 = vshrl.u32 %v221, 7
    %v223 = vsub.s32 0, %v222
    %v224 = vrot.slane %v219, %v223
    %v225 = vlaneseq
    %v226 = vshrl.u32 %v225, 7
    %v227 = vsub.s32 1, %v226
    %v228 = vrot.slane %v219, %v227
    %v239 = vcombine.low %v207, %v208
    %v240 = vcombine.low %v209, %v210
    %v242 = vunpack.c.l.s4 1983009808
    %v243 = vunpack.c.0.s8 %v242
    %v244 = vlaneseq
    %v245 = vshrl.u32 %v244, 7
    %v246 = vsub.s32 %v243, %v245
    %v247 = vrot.slane %v239, %v246
    %v249 = vunpack.c.l.s4 1983009808
    %v250 = vunpack.c.0.s8 %v249
    %v251 = vlaneseq
    %v252 = vshrl.u32 %v251, 7
    %v253 = vsub.s32 %v250, %v252
    %v254 = vrot.slane %v240, %v253
    %v255 = vcombine.low %v247, %v254
    %v256 = vcombine.low %v211, %v212
    %v257 = vcombine.low %v213, %v214
    %v259 = vunpack.c.l.s4 1983009808
    %v260 = vunpack.c.0.s8 %v259
    %v261 = vlaneseq
    %v262 = vshrl.u32 %v261, 7
    %v263 = vsub.s32 %v260, %v262
    %v264 = vrot.slane %v256, %v263
    %v266 = vunpack.c.l.s4 1983009808
    %v267 = vunpack.c.0.s8 %v266
    %v268 = vlaneseq
    %v269 = vshrl.u32 %v268, 7
    %v270 = vsub.s32 %v267, %v269
    %v271 = vrot.slane %v257, %v270
    %v272 = vcombine.low %v264, %v271
    %vm273 = vcmask 130048
    %v274 = vsel %vm273, %v255, 0
    %v276 = vsel %vm273, %v272, 0
    %278 = vmatprep.subr.mxu0 %v216
    %279 = vmatpush1.msra.mxu0 %v215
    %280 = vmatprep.subr.mxu0 %v218
    %281 = vmatpush1.msra.mxu0 %v217
    %282 = vmatprep.subr.mxu0 0.0
    %283 = vmatpush1.msra.mxu0 0.0
    %284 = vmatprep.subr.mxu0 0.0
    %285 = vmatpush1.msra.mxu0 0.0
    %286 = vmatprep.subr.mxu0 0.0
    %287 = vmatpush1.msra.mxu0 0.0
    %288 = vmatprep.subr.mxu0 0.0
    %289 = vmatpush1.msra.mxu0 0.0
    %290 = vmatprep.subr.mxu0 0.0
    %291 = vmatpush1.msra.mxu0 0.0
    %292 = vmatprep.subr.mxu0 0.0
    %293 = vmatpush1.msra.mxu0 0.0
    %294 = vmatprep.subr.mxu0 0.0
    %295 = vmatpush1.msra.mxu0 0.0
    %296 = vmatprep.subr.mxu0 0.0
    %297 = vmatpush1.msra.mxu0 0.0
    %298 = vmatprep.subr.mxu0 0.0
    %299 = vmatpush1.msra.mxu0 0.0
    %300 = vmatprep.subr.mxu0 0.0
    %301 = vmatpush1.msra.mxu0 0.0
    %302 = vmatprep.subr.mxu0 0.0
    %303 = vmatpush1.msra.mxu0 0.0
    %304 = vmatprep.subr.mxu0 0.0
    %305 = vmatpush1.msra.mxu0 0.0
    %306 = vmatprep.subr.mxu0 0.0
    %307 = vmatpush1.msra.mxu0 0.0
    %308 = vmatprep.subr.mxu0 0.0
    %309 = vmatpush1.msra.mxu0 0.0
    %310 = vmatprep.subr.mxu0 0.0
    %311 = vmatpush1.msra.mxu0 0.0
    %312 = vmatprep.subr.mxu0 0.0
    %313 = vmatpush1.msra.mxu0 0.0
    %314 = vmatprep.subr.mxu0 0.0
    %315 = vmatpush1.msra.mxu0 0.0
    %316 = vmatprep.subr.mxu0 0.0
    %317 = vmatpush1.msra.mxu0 0.0
    %318 = vmatprep.subr.mxu0 0.0
    %319 = vmatpush1.msra.mxu0 0.0
    %320 = vmatprep.subr.mxu0 0.0
    %321 = vmatpush1.msra.mxu0 0.0
    %322 = vmatprep.subr.mxu0 0.0
    %323 = vmatpush1.msra.mxu0 0.0
    %324 = vmatprep.subr.mxu0 0.0
    %325 = vmatpush1.msra.mxu0 0.0
    %326 = vmatprep.subr.mxu0 0.0
    %327 = vmatpush1.msra.mxu0 0.0
    %328 = vmatprep.subr.mxu0 0.0
    %329 = vmatpush1.msra.mxu0 0.0
    %330 = vmatprep.subr.mxu0 0.0
    %331 = vmatpush1.msra.mxu0 0.0
    %332 = vmatprep.subr.mxu0 0.0
    %333 = vmatpush1.msra.mxu0 0.0
    %334 = vmatprep.subr.mxu0 0.0
    %335 = vmatpush1.msra.mxu0 0.0
    %336 = vmatprep.subr.mxu0 0.0
    %337 = vmatpush1.msra.mxu0 0.0
    %338 = vmatprep.subr.mxu0 0.0
    %339 = vmatpush1.msra.mxu0 0.0
    %340 = vmatprep.subr.mxu0 0.0
    %341 = vmatpush1.msra.mxu0 0.0
    %342 = vmatprep.mubr.f32.mxu0 0.0
    %343 = vmatmul.mubr.f32.gmra.mrb[0].mxu0 %v274
    %v344 = vpop.f32.mrb[0].mxu0
    %v345 = vadd.f32 %v224, %v344
    %v346 = vpop.f32.mrb[0].mxu0
    %v347 = vadd.f32 %v228, %v346
    %348 = vmatprep.mubr.f32.mxu0 0.0
    %349 = vmatmul.mubr.f32.gmra.mrb[0].mxu0 %v276
    %v350 = vpop.f32.mrb[0].mxu0
    %v351 = vadd.f32 %v224, %v350
    %v352 = vpop.f32.mrb[0].mxu0
    %v353 = vadd.f32 %v228, %v352
    %354 = vdwg.mxu0
    %v359 = vcombine.low %v345, %v347
    %v360 = vcombine.high %v345, %v347
    %v362 = vunpack.c.l.s4 1983009808
    %v363 = vunpack.c.0.s8 %v362
    %v364 = vlaneseq
    %v365 = vshrl.u32 %v364, 7
    %v366 = vsub.s32 %v363, %v365
    %v367 = vrot.slane %v359, %v366
    %v369 = vunpack.c.l.s4 1983009808
    %v370 = vunpack.c.0.s8 %v369
    %v371 = vlaneseq
    %v372 = vshrl.u32 %v371, 7
    %v373 = vsub.s32 %v370, %v372
    %v374 = vrot.slane %v360, %v373
    %v375 = vcombine.high %v367, %v367
    %v376 = vcombine.high %v374, %v374
    %v377 = vcombine.low %v351, %v353
    %v378 = vcombine.high %v351, %v353
    %v380 = vunpack.c.l.s4 1983009808
    %v381 = vunpack.c.0.s8 %v380
    %v382 = vlaneseq
    %v383 = vshrl.u32 %v382, 7
    %v384 = vsub.s32 %v381, %v383
    %v385 = vrot.slane %v377, %v384
    %v387 = vunpack.c.l.s4 1983009808
    %v388 = vunpack.c.0.s8 %v387
    %v389 = vlaneseq
    %v390 = vshrl.u32 %v389, 7
    %v391 = vsub.s32 %v388, %v390
    %v392 = vrot.slane %v378, %v391
    %v393 = vcombine.high %v385, %v385
    %v394 = vcombine.high %v392, %v392
    %v403 = vld [vmem:[#allocation7] sm:$0xff]
    %v404 = vld [vmem:[#allocation7 + $0x8] sm:$0xff]
    %v405 = vld [vmem:[#allocation7 + $0x10] sm:$0xff]
    %v406 = vld [vmem:[#allocation7 + $0x18] sm:$0xff]
    %vm407 = vcmask 261120
    %v409 = vsel %vm407, 0.0, 0
    %411 = vmatprep.subr.mxu0 0.0
    %412 = vmatpush1.msra.mxu0 %v403
    %413 = vmatprep.subr.mxu0 0.0
    %414 = vmatpush1.msra.mxu0 %v404
    %415 = vmatprep.subr.mxu0 0.0
    %416 = vmatpush1.msra.mxu0 %v405
    %417 = vmatprep.subr.mxu0 0.0
    %418 = vmatpush1.msra.mxu0 %v406
    %419 = vmatprep.subr.mxu0 0.0
    %420 = vmatpush1.msra.mxu0 0.0
    %421 = vmatprep.subr.mxu0 0.0
    %422 = vmatpush1.msra.mxu0 0.0
    %423 = vmatprep.subr.mxu0 0.0
    %424 = vmatpush1.msra.mxu0 0.0
    %425 = vmatprep.subr.mxu0 0.0
    %426 = vmatpush1.msra.mxu0 0.0
    %427 = vmatprep.subr.mxu0 0.0
    %428 = vmatpush1.msra.mxu0 0.0
    %429 = vmatprep.subr.mxu0 0.0
    %430 = vmatpush1.msra.mxu0 0.0
    %431 = vmatprep.subr.mxu0 0.0
    %432 = vmatpush1.msra.mxu0 0.0
    %433 = vmatprep.subr.mxu0 0.0
    %434 = vmatpush1.msra.mxu0 0.0
    %435 = vmatprep.subr.mxu0 0.0
    %436 = vmatpush1.msra.mxu0 0.0
    %437 = vmatprep.subr.mxu0 0.0
    %438 = vmatpush1.msra.mxu0 0.0
    %439 = vmatprep.subr.mxu0 0.0
    %440 = vmatpush1.msra.mxu0 0.0
    %441 = vmatprep.subr.mxu0 0.0
    %442 = vmatpush1.msra.mxu0 0.0
    %443 = vmatprep.subr.mxu0 0.0
    %444 = vmatpush1.msra.mxu0 0.0
    %445 = vmatprep.subr.mxu0 0.0
    %446 = vmatpush1.msra.mxu0 0.0
    %447 = vmatprep.subr.mxu0 0.0
    %448 = vmatpush1.msra.mxu0 0.0
    %449 = vmatprep.subr.mxu0 0.0
    %450 = vmatpush1.msra.mxu0 0.0
    %451 = vmatprep.subr.mxu0 0.0
    %452 = vmatpush1.msra.mxu0 0.0
    %453 = vmatprep.subr.mxu0 0.0
    %454 = vmatpush1.msra.mxu0 0.0
    %455 = vmatprep.subr.mxu0 0.0
    %456 = vmatpush1.msra.mxu0 0.0
    %457 = vmatprep.subr.mxu0 0.0
    %458 = vmatpush1.msra.mxu0 0.0
    %459 = vmatprep.subr.mxu0 0.0
    %460 = vmatpush1.msra.mxu0 0.0
    %461 = vmatprep.subr.mxu0 0.0
    %462 = vmatpush1.msra.mxu0 0.0
    %463 = vmatprep.subr.mxu0 0.0
    %464 = vmatpush1.msra.mxu0 0.0
    %465 = vmatprep.subr.mxu0 0.0
    %466 = vmatpush1.msra.mxu0 0.0
    %467 = vmatprep.subr.mxu0 0.0
    %468 = vmatpush1.msra.mxu0 0.0
    %469 = vmatprep.subr.mxu0 0.0
    %470 = vmatpush1.msra.mxu0 0.0
    %471 = vmatprep.subr.mxu0 0.0
    %472 = vmatpush1.msra.mxu0 0.0
    %473 = vmatprep.subr.mxu0 0.0
    %474 = vmatpush1.msra.mxu0 0.0
    %475 = vmatprep.mubr.f32.mxu0 0.0
    %476 = vmatmul.mubr.f32.gmra.mrb[0].mxu0 %v409
    %v477 = vpop.f32.mrb[0].mxu0
    %v478 = vadd.f32 0.0, %v477
    %v479 = vpop.f32.mrb[0].mxu0
    %480 = vdwg.mxu0
    %v481 = vadd.f32 %v367, %v478
    %v482 = vmul.f32 %v481, %v205
    %v483 = vtanh.pop %v482
    %v484 = vmul.f32 %v483, %v205
    %v485 = vadd.f32 %v484, %v206
    %v486 = vmul.f32 %v485, 0.0
    %488 = vrot.lane.b32.xlu0 %v485, 64
    %v489 = vpop.permute.xlu0 %488
    %v491 = vmul.f32 %v485, %v489
    %493 = vrot.lane.b32.xlu0 %v491, 32
    %v494 = vpop.permute.xlu0 %493
    %v496 = vadd.f32 %v486, %v494
    %v497 = vtanh.pop %v496
    %499 = vrot.lane.b32.xlu0 %v497, 64
    %v500 = vpop.permute.xlu0 %499
    %v502 = vmul.f32 %v485, %v500
    %v503 = vld [vmem:[#allocation8] sm:$0xff]
    %v504 = vld [vmem:[#allocation8 + $0x8] sm:$0xff]
    %v505 = vld [vmem:[#allocation8 + $0x10] sm:$0xff]
    %v506 = vld [vmem:[#allocation8 + $0x18] sm:$0xff]
    %507 = vmatprep.subr.mxu0 0.0
    %508 = vmatpush1.msra.mxu0 %v503
    %509 = vmatprep.subr.mxu0 0.0
    %510 = vmatpush1.msra.mxu0 %v504
    %511 = vmatprep.subr.mxu0 0.0
    %512 = vmatpush1.msra.mxu0 %v505
    %513 = vmatprep.subr.mxu0 0.0
    %514 = vmatpush1.msra.mxu0 %v506
    %515 = vmatprep.subr.mxu0 0.0
    %516 = vmatpush1.msra.mxu0 0.0
    %517 = vmatprep.subr.mxu0 0.0
    %518 = vmatpush1.msra.mxu0 0.0
    %519 = vmatprep.subr.mxu0 0.0
    %520 = vmatpush1.msra.mxu0 0.0
    %521 = vmatprep.subr.mxu0 0.0
    %522 = vmatpush1.msra.mxu0 0.0
    %523 = vmatprep.subr.mxu0 0.0
    %524 = vmatpush1.msra.mxu0 0.0
    %525 = vmatprep.subr.mxu0 0.0
    %526 = vmatpush1.msra.mxu0 0.0
    %527 = vmatprep.subr.mxu0 0.0
    %528 = vmatpush1.msra.mxu0 0.0
    %529 = vmatprep.subr.mxu0 0.0
    %530 = vmatpush1.msra.mxu0 0.0
    %531 = vmatprep.subr.mxu0 0.0
    %532 = vmatpush1.msra.mxu0 0.0
    %533 = vmatprep.subr.mxu0 0.0
    %534 = vmatpush1.msra.mxu0 0.0
    %535 = vmatprep.subr.mxu0 0.0
    %536 = vmatpush1.msra.mxu0 0.0
    %537 = vmatprep.subr.mxu0 0.0
    %538 = vmatpush1.msra.mxu0 0.0
    %539 = vmatprep.subr.mxu0 0.0
    %540 = vmatpush1.msra.mxu0 0.0
    %541 = vmatprep.subr.mxu0 0.0
    %542 = vmatpush1.msra.mxu0 0.0
    %543 = vmatprep.subr.mxu0 0.0
    %544 = vmatpush1.msra.mxu0 0.0
    %545 = vmatprep.subr.mxu0 0.0
    %546 = vmatpush1.msra.mxu0 0.0
    %547 = vmatprep.subr.mxu0 0.0
    %548 = vmatpush1.msra.mxu0 0.0
    %549 = vmatprep.subr.mxu0 0.0
    %550 = vmatpush1.msra.mxu0 0.0
    %551 = vmatprep.subr.mxu0 0.0
    %552 = vmatpush1.msra.mxu0 0.0
    %553 = vmatprep.subr.mxu0 0.0
    %554 = vmatpush1.msra.mxu0 0.0
    %555 = vmatprep.subr.mxu0 0.0
    %556 = vmatpush1.msra.mxu0 0.0
    %557 = vmatprep.subr.mxu0 0.0
    %558 = vmatpush1.msra.mxu0 0.0
    %559 = vmatprep.subr.mxu0 0.0
    %560 = vmatpush1.msra.mxu0 0.0
    %561 = vmatprep.subr.mxu0 0.0
    %562 = vmatpush1.msra.mxu0 0.0
    %563 = vmatprep.subr.mxu0 0.0
    %564 = vmatpush1.msra.mxu0 0.0
    %565 = vmatprep.subr.mxu0 0.0
    %566 = vmatpush1.msra.mxu0 0.0
    %567 = vmatprep.subr.mxu0 0.0
    %568 = vmatpush1.msra.mxu0 0.0
    %569 = vmatprep.subr.mxu0 0.0
    %570 = vmatpush1.msra.mxu0 0.0
    %571 = vmatprep.mubr.f32.mxu0 0.0
    %572 = vmatmul.mubr.f32.gmra.mrb[0].mxu0 %v409
    %v573 = vpop.f32.mrb[0].mxu0
    %v574 = vadd.f32 0.0, %v573
    %v575 = vpop.f32.mrb[0].mxu0
    %576 = vdwg.mxu0
    %v577 = vrot.slane %v394, 2
    %v579 = vadd.f32 %v577, %v574
    %v580 = vmul.f32 %v579, %v205
    %v581 = vtanh.pop %v580
    %v582 = vmul.f32 %v581, %v205
    %v583 = vadd.f32 %v582, %v206
    %v584 = vmul.f32 %v583, 0.0
    %586 = vrot.lane.b32.xlu0 %v583, 64
    %v587 = vpop.permute.xlu0 %586
    %v589 = vmul.f32 %v583, %v587
    %591 = vrot.lane.b32.xlu0 %v589, 32
    %v592 = vpop.permute.xlu0 %591
    %v594 = vadd.f32 %v584, %v592
    %v595 = vtanh.pop %v594
    %597 = vrot.lane.b32.xlu0 %v595, 64
    %v598 = vpop.permute.xlu0 %597
    %v600 = vmul.f32 %v583, %v598
    %v603 = vunpack.c.l.s4 1983009808
    %v604 = vunpack.c.0.s8 %v603
    %v605 = vlaneseq
    %v606 = vshrl.u32 %v605, 7
    %v607 = vsub.s32 %v604, %v606
    %v608 = vrot.slane %v502, %v607
    %609 = vrot.lane.b32.xlu0 %v608, 32
    %v610 = vpop.permute.xlu0 %609
    %v611 = vsel %vm407, %v610, 0
    %613 = vmatprep.subr.mxu0 0.0
    %614 = vmatpush1.msra.mxu0 %v403
    %615 = vmatprep.subr.mxu0 0.0
    %616 = vmatpush1.msra.mxu0 %v404
    %617 = vmatprep.subr.mxu0 0.0
    %618 = vmatpush1.msra.mxu0 %v405
    %619 = vmatprep.subr.mxu0 0.0
    %620 = vmatpush1.msra.mxu0 %v406
    %621 = vmatprep.subr.mxu0 0.0
    %622 = vmatpush1.msra.mxu0 0.0
    %623 = vmatprep.subr.mxu0 0.0
    %624 = vmatpush1.msra.mxu0 0.0
    %625 = vmatprep.subr.mxu0 0.0
    %626 = vmatpush1.msra.mxu0 0.0
    %627 = vmatprep.subr.mxu0 0.0
    %628 = vmatpush1.msra.mxu0 0.0
    %629 = vmatprep.subr.mxu0 0.0
    %630 = vmatpush1.msra.mxu0 0.0
    %631 = vmatprep.subr.mxu0 0.0
    %632 = vmatpush1.msra.mxu0 0.0
    %633 = vmatprep.subr.mxu0 0.0
    %634 = vmatpush1.msra.mxu0 0.0
    %635 = vmatprep.subr.mxu0 0.0
    %636 = vmatpush1.msra.mxu0 0.0
    %637 = vmatprep.subr.mxu0 0.0
    %638 = vmatpush1.msra.mxu0 0.0
    %639 = vmatprep.subr.mxu0 0.0
    %640 = vmatpush1.msra.mxu0 0.0
    %641 = vmatprep.subr.mxu0 0.0
    %642 = vmatpush1.msra.mxu0 0.0
    %643 = vmatprep.subr.mxu0 0.0
    %644 = vmatpush1.msra.mxu0 0.0
    %645 = vmatprep.subr.mxu0 0.0
    %646 = vmatpush1.msra.mxu0 0.0
    %647 = vmatprep.subr.mxu0 0.0
    %648 = vmatpush1.msra.mxu0 0.0
    %649 = vmatprep.subr.mxu0 0.0
    %650 = vmatpush1.msra.mxu0 0.0
    %651 = vmatprep.subr.mxu0 0.0
    %652 = vmatpush1.msra.mxu0 0.0
    %653 = vmatprep.subr.mxu0 0.0
    %654 = vmatpush1.msra.mxu0 0.0
    %655 = vmatprep.subr.mxu0 0.0
    %656 = vmatpush1.msra.mxu0 0.0
    %657 = vmatprep.subr.mxu0 0.0
    %658 = vmatpush1.msra.mxu0 0.0
    %659 = vmatprep.subr.mxu0 0.0
    %660 = vmatpush1.msra.mxu0 0.0
    %661 = vmatprep.subr.mxu0 0.0
    %662 = vmatpush1.msra.mxu0 0.0
    %663 = vmatprep.subr.mxu0 0.0
    %664 = vmatpush1.msra.mxu0 0.0
    %665 = vmatprep.subr.mxu0 0.0
    %666 = vmatpush1.msra.mxu0 0.0
    %667 = vmatprep.subr.mxu0 0.0
    %668 = vmatpush1.msra.mxu0 0.0
    %669 = vmatprep.subr.mxu0 0.0
    %670 = vmatpush1.msra.mxu0 0.0
    %671 = vmatprep.subr.mxu0 0.0
    %672 = vmatpush1.msra.mxu0 0.0
    %673 = vmatprep.subr.mxu0 0.0
    %674 = vmatpush1.msra.mxu0 0.0
    %675 = vmatprep.subr.mxu0 0.0
    %676 = vmatpush1.msra.mxu0 0.0
    %677 = vmatprep.mubr.f32.mxu0 0.0
    %678 = vmatmul.mubr.f32.gmra.mrb[0].mxu0 %v611
    %v679 = vpop.f32.mrb[0].mxu0
    %v680 = vadd.f32 0.0, %v679
    %v681 = vpop.f32.mrb[0].mxu0
    %682 = vdwg.mxu0
    %v683 = vadd.f32 %v375, %v680
    %v684 = vmul.f32 %v683, %v205
    %v685 = vtanh.pop %v684
    %v686 = vmul.f32 %v685, %v205
    %v687 = vadd.f32 %v686, %v206
    %v688 = vmul.f32 %v687, %v496
    %690 = vrot.lane.b32.xlu0 %v687, 64
    %v691 = vpop.permute.xlu0 %690
    %v693 = vmul.f32 %v687, %v691
    %695 = vrot.lane.b32.xlu0 %v693, 32
    %v696 = vpop.permute.xlu0 %695
    %v698 = vadd.f32 %v688, %v696
    %v699 = vtanh.pop %v698
    %701 = vrot.lane.b32.xlu0 %v699, 64
    %v702 = vpop.permute.xlu0 %701
    %v704 = vmul.f32 %v687, %v702
    %v707 = vunpack.c.l.s4 1983009808
    %v708 = vunpack.c.0.s8 %v707
    %v709 = vlaneseq
    %v710 = vshrl.u32 %v709, 7
    %v711 = vsub.s32 %v708, %v710
    %v712 = vrot.slane %v600, %v711
    %713 = vrot.lane.b32.xlu0 %v712, 32
    %v714 = vpop.permute.xlu0 %713
    %v715 = vsel %vm407, %v714, 0
    %717 = vmatprep.subr.mxu0 0.0
    %718 = vmatpush1.msra.mxu0 %v503
    %719 = vmatprep.subr.mxu0 0.0
    %720 = vmatpush1.msra.mxu0 %v504
    %721 = vmatprep.subr.mxu0 0.0
    %722 = vmatpush1.msra.mxu0 %v505
    %723 = vmatprep.subr.mxu0 0.0
    %724 = vmatpush1.msra.mxu0 %v506
    %725 = vmatprep.subr.mxu0 0.0
    %726 = vmatpush1.msra.mxu0 0.0
    %727 = vmatprep.subr.mxu0 0.0
    %728 = vmatpush1.msra.mxu0 0.0
    %729 = vmatprep.subr.mxu0 0.0
    %730 = vmatpush1.msra.mxu0 0.0
    %731 = vmatprep.subr.mxu0 0.0
    %732 = vmatpush1.msra.mxu0 0.0
    %733 = vmatprep.subr.mxu0 0.0
    %734 = vmatpush1.msra.mxu0 0.0
    %735 = vmatprep.subr.mxu0 0.0
    %736 = vmatpush1.msra.mxu0 0.0
    %737 = vmatprep.subr.mxu0 0.0
    %738 = vmatpush1.msra.mxu0 0.0
    %739 = vmatprep.subr.mxu0 0.0
    %740 = vmatpush1.msra.mxu0 0.0
    %741 = vmatprep.subr.mxu0 0.0
    %742 = vmatpush1.msra.mxu0 0.0
    %743 = vmatprep.subr.mxu0 0.0
    %744 = vmatpush1.msra.mxu0 0.0
    %745 = vmatprep.subr.mxu0 0.0
    %746 = vmatpush1.msra.mxu0 0.0
    %747 = vmatprep.subr.mxu0 0.0
    %748 = vmatpush1.msra.mxu0 0.0
    %749 = vmatprep.subr.mxu0 0.0
    %750 = vmatpush1.msra.mxu0 0.0
    %751 = vmatprep.subr.mxu0 0.0
    %752 = vmatpush1.msra.mxu0 0.0
    %753 = vmatprep.subr.mxu0 0.0
    %754 = vmatpush1.msra.mxu0 0.0
    %755 = vmatprep.subr.mxu0 0.0
    %756 = vmatpush1.msra.mxu0 0.0
    %757 = vmatprep.subr.mxu0 0.0
    %758 = vmatpush1.msra.mxu0 0.0
    %759 = vmatprep.subr.mxu0 0.0
    %760 = vmatpush1.msra.mxu0 0.0
    %761 = vmatprep.subr.mxu0 0.0
    %762 = vmatpush1.msra.mxu0 0.0
    %763 = vmatprep.subr.mxu0 0.0
    %764 = vmatpush1.msra.mxu0 0.0
    %765 = vmatprep.subr.mxu0 0.0
    %766 = vmatpush1.msra.mxu0 0.0
    %767 = vmatprep.subr.mxu0 0.0
    %768 = vmatpush1.msra.mxu0 0.0
    %769 = vmatprep.subr.mxu0 0.0
    %770 = vmatpush1.msra.mxu0 0.0
    %771 = vmatprep.subr.mxu0 0.0
    %772 = vmatpush1.msra.mxu0 0.0
    %773 = vmatprep.subr.mxu0 0.0
    %774 = vmatpush1.msra.mxu0 0.0
    %775 = vmatprep.subr.mxu0 0.0
    %776 = vmatpush1.msra.mxu0 0.0
    %777 = vmatprep.subr.mxu0 0.0
    %778 = vmatpush1.msra.mxu0 0.0
    %779 = vmatprep.subr.mxu0 0.0
    %780 = vmatpush1.msra.mxu0 0.0
    %781 = vmatprep.mubr.f32.mxu0 0.0
    %782 = vmatmul.mubr.f32.gmra.mrb[0].mxu0 %v715
    %v783 = vpop.f32.mrb[0].mxu0
    %v784 = vadd.f32 0.0, %v783
    %v785 = vpop.f32.mrb[0].mxu0
    %786 = vdwg.mxu0
    %v787 = vrot.slane %v392, 2
    %v789 = vadd.f32 %v787, %v784
    %v790 = vmul.f32 %v789, %v205
    %v791 = vtanh.pop %v790
    %v792 = vmul.f32 %v791, %v205
    %v793 = vadd.f32 %v792, %v206
    %v794 = vmul.f32 %v793, %v594
    %796 = vrot.lane.b32.xlu0 %v793, 64
    %v797 = vpop.permute.xlu0 %796
    %v799 = vmul.f32 %v793, %v797
    %801 = vrot.lane.b32.xlu0 %v799, 32
    %v802 = vpop.permute.xlu0 %801
    %v804 = vadd.f32 %v794, %v802
    %v805 = vtanh.pop %v804
    %807 = vrot.lane.b32.xlu0 %v805, 64
    %v808 = vpop.permute.xlu0 %807
    %v810 = vmul.f32 %v793, %v808
    %v813 = vunpack.c.l.s4 1983009808
    %v814 = vunpack.c.0.s8 %v813
    %v815 = vlaneseq
    %v816 = vshrl.u32 %v815, 7
    %v817 = vsub.s32 %v814, %v816
    %v818 = vrot.slane %v704, %v817
    %819 = vrot.lane.b32.xlu0 %v818, 32
    %v820 = vpop.permute.xlu0 %819
    %v821 = vsel %vm407, %v820, 0
    %823 = vmatprep.subr.mxu0 0.0
    %824 = vmatpush1.msra.mxu0 %v403
    %825 = vmatprep.subr.mxu0 0.0
    %826 = vmatpush1.msra.mxu0 %v404
    %827 = vmatprep.subr.mxu0 0.0
    %828 = vmatpush1.msra.mxu0 %v405
    %829 = vmatprep.subr.mxu0 0.0
    %830 = vmatpush1.msra.mxu0 %v406
    %831 = vmatprep.subr.mxu0 0.0
    %832 = vmatpush1.msra.mxu0 0.0
    %833 = vmatprep.subr.mxu0 0.0
    %834 = vmatpush1.msra.mxu0 0.0
    %835 = vmatprep.subr.mxu0 0.0
    %836 = vmatpush1.msra.mxu0 0.0
    %837 = vmatprep.subr.mxu0 0.0
    %838 = vmatpush1.msra.mxu0 0.0
    %839 = vmatprep.subr.mxu0 0.0
    %840 = vmatpush1.msra.mxu0 0.0
    %841 = vmatprep.subr.mxu0 0.0
    %842 = vmatpush1.msra.mxu0 0.0
    %843 = vmatprep.subr.mxu0 0.0
    %844 = vmatpush1.msra.mxu0 0.0
    %845 = vmatprep.subr.mxu0 0.0
    %846 = vmatpush1.msra.mxu0 0.0
    %847 = vmatprep.subr.mxu0 0.0
    %848 = vmatpush1.msra.mxu0 0.0
    %849 = vmatprep.subr.mxu0 0.0
    %850 = vmatpush1.msra.mxu0 0.0
    %851 = vmatprep.subr.mxu0 0.0
    %852 = vmatpush1.msra.mxu0 0.0
    %853 = vmatprep.subr.mxu0 0.0
    %854 = vmatpush1.msra.mxu0 0.0
    %855 = vmatprep.subr.mxu0 0.0
    %856 = vmatpush1.msra.mxu0 0.0
    %857 = vmatprep.subr.mxu0 0.0
    %858 = vmatpush1.msra.mxu0 0.0
    %859 = vmatprep.subr.mxu0 0.0
    %860 = vmatpush1.msra.mxu0 0.0
    %861 = vmatprep.subr.mxu0 0.0
    %862 = vmatpush1.msra.mxu0 0.0
    %863 = vmatprep.subr.mxu0 0.0
    %864 = vmatpush1.msra.mxu0 0.0
    %865 = vmatprep.subr.mxu0 0.0
    %866 = vmatpush1.msra.mxu0 0.0
    %867 = vmatprep.subr.mxu0 0.0
    %868 = vmatpush1.msra.mxu0 0.0
    %869 = vmatprep.subr.mxu0 0.0
    %870 = vmatpush1.msra.mxu0 0.0
    %871 = vmatprep.subr.mxu0 0.0
    %872 = vmatpush1.msra.mxu0 0.0
    %873 = vmatprep.subr.mxu0 0.0
    %874 = vmatpush1.msra.mxu0 0.0
    %875 = vmatprep.subr.mxu0 0.0
    %876 = vmatpush1.msra.mxu0 0.0
    %877 = vmatprep.subr.mxu0 0.0
    %878 = vmatpush1.msra.mxu0 0.0
    %879 = vmatprep.subr.mxu0 0.0
    %880 = vmatpush1.msra.mxu0 0.0
    %881 = vmatprep.subr.mxu0 0.0
    %882 = vmatpush1.msra.mxu0 0.0
    %883 = vmatprep.subr.mxu0 0.0
    %884 = vmatpush1.msra.mxu0 0.0
    %885 = vmatprep.subr.mxu0 0.0
    %886 = vmatpush1.msra.mxu0 0.0
    %887 = vmatprep.mubr.f32.mxu0 0.0
    %888 = vmatmul.mubr.f32.gmra.mrb[0].mxu0 %v821
    %v889 = vpop.f32.mrb[0].mxu0
    %v890 = vadd.f32 0.0, %v889
    %v891 = vpop.f32.mrb[0].mxu0
    %892 = vdwg.mxu0
    %v893 = vadd.f32 %v374, %v890
    %v894 = vmul.f32 %v893, %v205
    %v895 = vtanh.pop %v894
    %v896 = vmul.f32 %v895, %v205
    %v897 = vadd.f32 %v896, %v206
    %v898 = vmul.f32 %v897, %v698
    %900 = vrot.lane.b32.xlu0 %v897, 64
    %v901 = vpop.permute.xlu0 %900
    %v903 = vmul.f32 %v897, %v901
    %905 = vrot.lane.b32.xlu0 %v903, 32
    %v906 = vpop.permute.xlu0 %905
    %v908 = vadd.f32 %v898, %v906
    %v909 = vtanh.pop %v908
    %911 = vrot.lane.b32.xlu0 %v909, 64
    %v912 = vpop.permute.xlu0 %911
    %v914 = vmul.f32 %v897, %v912
    %v917 = vunpack.c.l.s4 1983009808
    %v918 = vunpack.c.0.s8 %v917
    %v919 = vlaneseq
    %v920 = vshrl.u32 %v919, 7
    %v921 = vsub.s32 %v918, %v920
    %v922 = vrot.slane %v810, %v921
    %923 = vrot.lane.b32.xlu0 %v922, 32
    %v924 = vpop.permute.xlu0 %923
    %v925 = vsel %vm407, %v924, 0
    %927 = vmatprep.subr.mxu0 0.0
    %928 = vmatpush1.msra.mxu0 %v503
    %929 = vmatprep.subr.mxu0 0.0
    %930 = vmatpush1.msra.mxu0 %v504
    %931 = vmatprep.subr.mxu0 0.0
    %932 = vmatpush1.msra.mxu0 %v505
    %933 = vmatprep.subr.mxu0 0.0
    %934 = vmatpush1.msra.mxu0 %v506
    %935 = vmatprep.subr.mxu0 0.0
    %936 = vmatpush1.msra.mxu0 0.0
    %937 = vmatprep.subr.mxu0 0.0
    %938 = vmatpush1.msra.mxu0 0.0
    %939 = vmatprep.subr.mxu0 0.0
    %940 = vmatpush1.msra.mxu0 0.0
    %941 = vmatprep.subr.mxu0 0.0
    %942 = vmatpush1.msra.mxu0 0.0
    %943 = vmatprep.subr.mxu0 0.0
    %944 = vmatpush1.msra.mxu0 0.0
    %945 = vmatprep.subr.mxu0 0.0
    %946 = vmatpush1.msra.mxu0 0.0
    %947 = vmatprep.subr.mxu0 0.0
    %948 = vmatpush1.msra.mxu0 0.0
    %949 = vmatprep.subr.mxu0 0.0
    %950 = vmatpush1.msra.mxu0 0.0
    %951 = vmatprep.subr.mxu0 0.0
    %952 = vmatpush1.msra.mxu0 0.0
    %953 = vmatprep.subr.mxu0 0.0
    %954 = vmatpush1.msra.mxu0 0.0
    %955 = vmatprep.subr.mxu0 0.0
    %956 = vmatpush1.msra.mxu0 0.0
    %957 = vmatprep.subr.mxu0 0.0
    %958 = vmatpush1.msra.mxu0 0.0
    %959 = vmatprep.subr.mxu0 0.0
    %960 = vmatpush1.msra.mxu0 0.0
    %961 = vmatprep.subr.mxu0 0.0
    %962 = vmatpush1.msra.mxu0 0.0
    %963 = vmatprep.subr.mxu0 0.0
    %964 = vmatpush1.msra.mxu0 0.0
    %965 = vmatprep.subr.mxu0 0.0
    %966 = vmatpush1.msra.mxu0 0.0
    %967 = vmatprep.subr.mxu0 0.0
    %968 = vmatpush1.msra.mxu0 0.0
    %969 = vmatprep.subr.mxu0 0.0
    %970 = vmatpush1.msra.mxu0 0.0
    %971 = vmatprep.subr.mxu0 0.0
    %972 = vmatpush1.msra.mxu0 0.0
    %973 = vmatprep.subr.mxu0 0.0
    %974 = vmatpush1.msra.mxu0 0.0
    %975 = vmatprep.subr.mxu0 0.0
    %976 = vmatpush1.msra.mxu0 0.0
    %977 = vmatprep.subr.mxu0 0.0
    %978 = vmatpush1.msra.mxu0 0.0
    %979 = vmatprep.subr.mxu0 0.0
    %980 = vmatpush1.msra.mxu0 0.0
    %981 = vmatprep.subr.mxu0 0.0
    %982 = vmatpush1.msra.mxu0 0.0
    %983 = vmatprep.subr.mxu0 0.0
    %984 = vmatpush1.msra.mxu0 0.0
    %985 = vmatprep.subr.mxu0 0.0
    %986 = vmatpush1.msra.mxu0 0.0
    %987 = vmatprep.subr.mxu0 0.0
    %988 = vmatpush1.msra.mxu0 0.0
    %989 = vmatprep.subr.mxu0 0.0
    %990 = vmatpush1.msra.mxu0 0.0
    %991 = vmatprep.mubr.f32.mxu0 0.0
    %992 = vmatmul.mubr.f32.gmra.mrb[0].mxu0 %v925
    %v993 = vpop.f32.mrb[0].mxu0
    %v994 = vadd.f32 0.0, %v993
    %v995 = vpop.f32.mrb[0].mxu0
    %996 = vdwg.mxu0
    %v997 = vrot.slane %v393, 2
    %v999 = vadd.f32 %v997, %v994
    %v1000 = vmul.f32 %v999, %v205
    %v1001 = vtanh.pop %v1000
    %v1002 = vmul.f32 %v1001, %v205
    %v1003 = vadd.f32 %v1002, %v206
    %v1004 = vmul.f32 %v1003, %v804
    %1006 = vrot.lane.b32.xlu0 %v1003, 64
    %v1007 = vpop.permute.xlu0 %1006
    %v1009 = vmul.f32 %v1003, %v1007
    %1011 = vrot.lane.b32.xlu0 %v1009, 32
    %v1012 = vpop.permute.xlu0 %1011
    %v1014 = vadd.f32 %v1004, %v1012
    %v1015 = vtanh.pop %v1014
    %1017 = vrot.lane.b32.xlu0 %v1015, 64
    %v1018 = vpop.permute.xlu0 %1017
    %v1020 = vmul.f32 %v1003, %v1018
    %v1023 = vunpack.c.l.s4 1983009808
    %v1024 = vunpack.c.0.s8 %v1023
    %v1025 = vlaneseq
    %v1026 = vshrl.u32 %v1025, 7
    %v1027 = vsub.s32 %v1024, %v1026
    %v1028 = vrot.slane %v914, %v1027
    %1029 = vrot.lane.b32.xlu0 %v1028, 32
    %v1030 = vpop.permute.xlu0 %1029
    %v1031 = vsel %vm407, %v1030, 0
    %1033 = vmatprep.subr.mxu0 0.0
    %1034 = vmatpush1.msra.mxu0 %v403
    %1035 = vmatprep.subr.mxu0 0.0
    %1036 = vmatpush1.msra.mxu0 %v404
    %1037 = vmatprep.subr.mxu0 0.0
    %1038 = vmatpush1.msra.mxu0 %v405
    %1039 = vmatprep.subr.mxu0 0.0
    %1040 = vmatpush1.msra.mxu0 %v406
    %1041 = vmatprep.subr.mxu0 0.0
    %1042 = vmatpush1.msra.mxu0 0.0
    %1043 = vmatprep.subr.mxu0 0.0
    %1044 = vmatpush1.msra.mxu0 0.0
    %1045 = vmatprep.subr.mxu0 0.0
    %1046 = vmatpush1.msra.mxu0 0.0
    %1047 = vmatprep.subr.mxu0 0.0
    %1048 = vmatpush1.msra.mxu0 0.0
    %1049 = vmatprep.subr.mxu0 0.0
    %1050 = vmatpush1.msra.mxu0 0.0
    %1051 = vmatprep.subr.mxu0 0.0
    %1052 = vmatpush1.msra.mxu0 0.0
    %1053 = vmatprep.subr.mxu0 0.0
    %1054 = vmatpush1.msra.mxu0 0.0
    %1055 = vmatprep.subr.mxu0 0.0
    %1056 = vmatpush1.msra.mxu0 0.0
    %1057 = vmatprep.subr.mxu0 0.0
    %1058 = vmatpush1.msra.mxu0 0.0
    %1059 = vmatprep.subr.mxu0 0.0
    %1060 = vmatpush1.msra.mxu0 0.0
    %1061 = vmatprep.subr.mxu0 0.0
    %1062 = vmatpush1.msra.mxu0 0.0
    %1063 = vmatprep.subr.mxu0 0.0
    %1064 = vmatpush1.msra.mxu0 0.0
    %1065 = vmatprep.subr.mxu0 0.0
    %1066 = vmatpush1.msra.mxu0 0.0
    %1067 = vmatprep.subr.mxu0 0.0
    %1068 = vmatpush1.msra.mxu0 0.0
    %1069 = vmatprep.subr.mxu0 0.0
    %1070 = vmatpush1.msra.mxu0 0.0
    %1071 = vmatprep.subr.mxu0 0.0
    %1072 = vmatpush1.msra.mxu0 0.0
    %1073 = vmatprep.subr.mxu0 0.0
    %1074 = vmatpush1.msra.mxu0 0.0
    %1075 = vmatprep.subr.mxu0 0.0
    %1076 = vmatpush1.msra.mxu0 0.0
    %1077 = vmatprep.subr.mxu0 0.0
    %1078 = vmatpush1.msra.mxu0 0.0
    %1079 = vmatprep.subr.mxu0 0.0
    %1080 = vmatpush1.msra.mxu0 0.0
    %1081 = vmatprep.subr.mxu0 0.0
    %1082 = vmatpush1.msra.mxu0 0.0
    %1083 = vmatprep.subr.mxu0 0.0
    %1084 = vmatpush1.msra.mxu0 0.0
    %1085 = vmatprep.subr.mxu0 0.0
    %1086 = vmatpush1.msra.mxu0 0.0
    %1087 = vmatprep.subr.mxu0 0.0
    %1088 = vmatpush1.msra.mxu0 0.0
    %1089 = vmatprep.subr.mxu0 0.0
    %1090 = vmatpush1.msra.mxu0 0.0
    %1091 = vmatprep.subr.mxu0 0.0
    %1092 = vmatpush1.msra.mxu0 0.0
    %1093 = vmatprep.subr.mxu0 0.0
    %1094 = vmatpush1.msra.mxu0 0.0
    %1095 = vmatprep.subr.mxu0 0.0
    %1096 = vmatpush1.msra.mxu0 0.0
    %1097 = vmatprep.mubr.f32.mxu0 0.0
    %1098 = vmatmul.mubr.f32.gmra.mrb[0].mxu0 %v1031
    %v1099 = vpop.f32.mrb[0].mxu0
    %v1100 = vadd.f32 0.0, %v1099
    %v1101 = vpop.f32.mrb[0].mxu0
    %1102 = vdwg.mxu0
    %v1103 = vadd.f32 %v376, %v1100
    %v1104 = vmul.f32 %v1103, %v205
    %v1105 = vtanh.pop %v1104
    %v1106 = vmul.f32 %v1105, %v205
    %v1107 = vadd.f32 %v1106, %v206
    %v1108 = vmul.f32 %v1107, %v908
    %1110 = vrot.lane.b32.xlu0 %v1107, 64
    %v1111 = vpop.permute.xlu0 %1110
    %v1113 = vmul.f32 %v1107, %v1111
    %1115 = vrot.lane.b32.xlu0 %v1113, 32
    %v1116 = vpop.permute.xlu0 %1115
    %v1118 = vadd.f32 %v1108, %v1116
    %v1119 = vtanh.pop %v1118
    %1121 = vrot.lane.b32.xlu0 %v1119, 64
    %v1122 = vpop.permute.xlu0 %1121
    %v1124 = vmul.f32 %v1107, %v1122
    %v1127 = vunpack.c.l.s4 1983009808
    %v1128 = vunpack.c.0.s8 %v1127
    %v1129 = vlaneseq
    %v1130 = vshrl.u32 %v1129, 7
    %v1131 = vsub.s32 %v1128, %v1130
    %v1132 = vrot.slane %v1020, %v1131
    %1133 = vrot.lane.b32.xlu0 %v1132, 32
    %v1134 = vpop.permute.xlu0 %1133
    %v1135 = vsel %vm407, %v1134, 0
    %1137 = vmatprep.subr.mxu0 0.0
    %1138 = vmatpush1.msra.mxu0 %v503
    %1139 = vmatprep.subr.mxu0 0.0
    %1140 = vmatpush1.msra.mxu0 %v504
    %1141 = vmatprep.subr.mxu0 0.0
    %1142 = vmatpush1.msra.mxu0 %v505
    %1143 = vmatprep.subr.mxu0 0.0
    %1144 = vmatpush1.msra.mxu0 %v506
    %1145 = vmatprep.subr.mxu0 0.0
    %1146 = vmatpush1.msra.mxu0 0.0
    %1147 = vmatprep.subr.mxu0 0.0
    %1148 = vmatpush1.msra.mxu0 0.0
    %1149 = vmatprep.subr.mxu0 0.0
    %1150 = vmatpush1.msra.mxu0 0.0
    %1151 = vmatprep.subr.mxu0 0.0
    %1152 = vmatpush1.msra.mxu0 0.0
    %1153 = vmatprep.subr.mxu0 0.0
    %1154 = vmatpush1.msra.mxu0 0.0
    %1155 = vmatprep.subr.mxu0 0.0
    %1156 = vmatpush1.msra.mxu0 0.0
    %1157 = vmatprep.subr.mxu0 0.0
    %1158 = vmatpush1.msra.mxu0 0.0
    %1159 = vmatprep.subr.mxu0 0.0
    %1160 = vmatpush1.msra.mxu0 0.0
    %1161 = vmatprep.subr.mxu0 0.0
    %1162 = vmatpush1.msra.mxu0 0.0
    %1163 = vmatprep.subr.mxu0 0.0
    %1164 = vmatpush1.msra.mxu0 0.0
    %1165 = vmatprep.subr.mxu0 0.0
    %1166 = vmatpush1.msra.mxu0 0.0
    %1167 = vmatprep.subr.mxu0 0.0
    %1168 = vmatpush1.msra.mxu0 0.0
    %1169 = vmatprep.subr.mxu0 0.0
    %1170 = vmatpush1.msra.mxu0 0.0
    %1171 = vmatprep.subr.mxu0 0.0
    %1172 = vmatpush1.msra.mxu0 0.0
    %1173 = vmatprep.subr.mxu0 0.0
    %1174 = vmatpush1.msra.mxu0 0.0
    %1175 = vmatprep.subr.mxu0 0.0
    %1176 = vmatpush1.msra.mxu0 0.0
    %1177 = vmatprep.subr.mxu0 0.0
    %1178 = vmatpush1.msra.mxu0 0.0
    %1179 = vmatprep.subr.mxu0 0.0
    %1180 = vmatpush1.msra.mxu0 0.0
    %1181 = vmatprep.subr.mxu0 0.0
    %1182 = vmatpush1.msra.mxu0 0.0
    %1183 = vmatprep.subr.mxu0 0.0
    %1184 = vmatpush1.msra.mxu0 0.0
    %1185 = vmatprep.subr.mxu0 0.0
    %1186 = vmatpush1.msra.mxu0 0.0
    %1187 = vmatprep.subr.mxu0 0.0
    %1188 = vmatpush1.msra.mxu0 0.0
    %1189 = vmatprep.subr.mxu0 0.0
    %1190 = vmatpush1.msra.mxu0 0.0
    %1191 = vmatprep.subr.mxu0 0.0
    %1192 = vmatpush1.msra.mxu0 0.0
    %1193 = vmatprep.subr.mxu0 0.0
    %1194 = vmatpush1.msra.mxu0 0.0
    %1195 = vmatprep.subr.mxu0 0.0
    %1196 = vmatpush1.msra.mxu0 0.0
    %1197 = vmatprep.subr.mxu0 0.0
    %1198 = vmatpush1.msra.mxu0 0.0
    %1199 = vmatprep.subr.mxu0 0.0
    %1200 = vmatpush1.msra.mxu0 0.0
    %1201 = vmatprep.mubr.f32.mxu0 0.0
    %1202 = vmatmul.mubr.f32.gmra.mrb[0].mxu0 %v1135
    %v1203 = vpop.f32.mrb[0].mxu0
    %v1204 = vadd.f32 0.0, %v1203
    %v1205 = vpop.f32.mrb[0].mxu0
    %1206 = vdwg.mxu0
    %v1207 = vrot.slane %v385, 2
    %v1209 = vadd.f32 %v1207, %v1204
    %v1210 = vmul.f32 %v1209, %v205
    %v1211 = vtanh.pop %v1210
    %v1212 = vmul.f32 %v1211, %v205
    %v1213 = vadd.f32 %v1212, %v206
    %v1214 = vmul.f32 %v1213, %v1014
    %1216 = vrot.lane.b32.xlu0 %v1213, 64
    %v1217 = vpop.permute.xlu0 %1216
    %v1219 = vmul.f32 %v1213, %v1217
    %1221 = vrot.lane.b32.xlu0 %v1219, 32
    %v1222 = vpop.permute.xlu0 %1221
    %v1224 = vadd.f32 %v1214, %v1222
    %v1225 = vtanh.pop %v1224
    %1227 = vrot.lane.b32.xlu0 %v1225, 64
    %v1228 = vpop.permute.xlu0 %1227
    %v1230 = vmul.f32 %v1213, %v1228
    %v1233 = vunpack.c.l.s4 1983009808
    %v1234 = vunpack.c.0.s8 %v1233
    %v1235 = vlaneseq
    %v1236 = vshrl.u32 %v1235, 7
    %v1237 = vsub.s32 %v1234, %v1236
    %v1238 = vrot.slane %v1124, %v1237
    %1239 = vrot.lane.b32.xlu0 %v1238, 32
    %v1240 = vpop.permute.xlu0 %1239
    %v1241 = vsel %vm407, %v1240, 0
    %1243 = vmatprep.subr.mxu0 0.0
    %1244 = vmatpush1.msra.mxu0 %v403
    %1245 = vmatprep.subr.mxu0 0.0
    %1246 = vmatpush1.msra.mxu0 %v404
    %1247 = vmatprep.subr.mxu0 0.0
    %1248 = vmatpush1.msra.mxu0 %v405
    %1249 = vmatprep.subr.mxu0 0.0
    %1250 = vmatpush1.msra.mxu0 %v406
    %1251 = vmatprep.subr.mxu0 0.0
    %1252 = vmatpush1.msra.mxu0 0.0
    %1253 = vmatprep.subr.mxu0 0.0
    %1254 = vmatpush1.msra.mxu0 0.0
    %1255 = vmatprep.subr.mxu0 0.0
    %1256 = vmatpush1.msra.mxu0 0.0
    %1257 = vmatprep.subr.mxu0 0.0
    %1258 = vmatpush1.msra.mxu0 0.0
    %1259 = vmatprep.subr.mxu0 0.0
    %1260 = vmatpush1.msra.mxu0 0.0
    %1261 = vmatprep.subr.mxu0 0.0
    %1262 = vmatpush1.msra.mxu0 0.0
    %1263 = vmatprep.subr.mxu0 0.0
    %1264 = vmatpush1.msra.mxu0 0.0
    %1265 = vmatprep.subr.mxu0 0.0
    %1266 = vmatpush1.msra.mxu0 0.0
    %1267 = vmatprep.subr.mxu0 0.0
    %1268 = vmatpush1.msra.mxu0 0.0
    %1269 = vmatprep.subr.mxu0 0.0
    %1270 = vmatpush1.msra.mxu0 0.0
    %1271 = vmatprep.subr.mxu0 0.0
    %1272 = vmatpush1.msra.mxu0 0.0
    %1273 = vmatprep.subr.mxu0 0.0
    %1274 = vmatpush1.msra.mxu0 0.0
    %1275 = vmatprep.subr.mxu0 0.0
    %1276 = vmatpush1.msra.mxu0 0.0
    %1277 = vmatprep.subr.mxu0 0.0
    %1278 = vmatpush1.msra.mxu0 0.0
    %1279 = vmatprep.subr.mxu0 0.0
    %1280 = vmatpush1.msra.mxu0 0.0
    %1281 = vmatprep.subr.mxu0 0.0
    %1282 = vmatpush1.msra.mxu0 0.0
    %1283 = vmatprep.subr.mxu0 0.0
    %1284 = vmatpush1.msra.mxu0 0.0
    %1285 = vmatprep.subr.mxu0 0.0
    %1286 = vmatpush1.msra.mxu0 0.0
    %1287 = vmatprep.subr.mxu0 0.0
    %1288 = vmatpush1.msra.mxu0 0.0
    %1289 = vmatprep.subr.mxu0 0.0
    %1290 = vmatpush1.msra.mxu0 0.0
    %1291 = vmatprep.subr.mxu0 0.0
    %1292 = vmatpush1.msra.mxu0 0.0
    %1293 = vmatprep.subr.mxu0 0.0
    %1294 = vmatpush1.msra.mxu0 0.0
    %1295 = vmatprep.subr.mxu0 0.0
    %1296 = vmatpush1.msra.mxu0 0.0
    %1297 = vmatprep.subr.mxu0 0.0
    %1298 = vmatpush1.msra.mxu0 0.0
    %1299 = vmatprep.subr.mxu0 0.0
    %1300 = vmatpush1.msra.mxu0 0.0
    %1301 = vmatprep.subr.mxu0 0.0
    %1302 = vmatpush1.msra.mxu0 0.0
    %1303 = vmatprep.subr.mxu0 0.0
    %1304 = vmatpush1.msra.mxu0 0.0
    %1305 = vmatprep.subr.mxu0 0.0
    %1306 = vmatpush1.msra.mxu0 0.0
    %1307 = vmatprep.mubr.f32.mxu0 0.0
    %1308 = vmatmul.mubr.f32.gmra.mrb[0].mxu0 %v1241
    %v1309 = vpop.f32.mrb[0].mxu0
    %v1310 = vadd.f32 0.0, %v1309
    %v1311 = vpop.f32.mrb[0].mxu0
    %1312 = vdwg.mxu0
    %v1313 = vadd.f32 %v385, %v1310
    %v1314 = vmul.f32 %v1313, %v205
    %v1315 = vtanh.pop %v1314
    %v1316 = vmul.f32 %v1315, %v205
    %v1317 = vadd.f32 %v1316, %v206
    %v1318 = vmul.f32 %v1317, %v1118
    %1320 = vrot.lane.b32.xlu0 %v1317, 64
    %v1321 = vpop.permute.xlu0 %1320
    %v1323 = vmul.f32 %v1317, %v1321
    %1325 = vrot.lane.b32.xlu0 %v1323, 32
    %v1326 = vpop.permute.xlu0 %1325
    %v1328 = vadd.f32 %v1318, %v1326
    %v1329 = vtanh.pop %v1328
    %1331 = vrot.lane.b32.xlu0 %v1329, 64
    %v1332 = vpop.permute.xlu0 %1331
    %v1334 = vmul.f32 %v1317, %v1332
    %v1337 = vunpack.c.l.s4 1983009808
    %v1338 = vunpack.c.0.s8 %v1337
    %v1339 = vlaneseq
    %v1340 = vshrl.u32 %v1339, 7
    %v1341 = vsub.s32 %v1338, %v1340
    %v1342 = vrot.slane %v1230, %v1341
    %1343 = vrot.lane.b32.xlu0 %v1342, 32
    %v1344 = vpop.permute.xlu0 %1343
    %v1345 = vsel %vm407, %v1344, 0
    %1347 = vmatprep.subr.mxu0 0.0
    %1348 = vmatpush1.msra.mxu0 %v503
    %1349 = vmatprep.subr.mxu0 0.0
    %1350 = vmatpush1.msra.mxu0 %v504
    %1351 = vmatprep.subr.mxu0 0.0
    %1352 = vmatpush1.msra.mxu0 %v505
    %1353 = vmatprep.subr.mxu0 0.0
    %1354 = vmatpush1.msra.mxu0 %v506
    %1355 = vmatprep.subr.mxu0 0.0
    %1356 = vmatpush1.msra.mxu0 0.0
    %1357 = vmatprep.subr.mxu0 0.0
    %1358 = vmatpush1.msra.mxu0 0.0
    %1359 = vmatprep.subr.mxu0 0.0
    %1360 = vmatpush1.msra.mxu0 0.0
    %1361 = vmatprep.subr.mxu0 0.0
    %1362 = vmatpush1.msra.mxu0 0.0
    %1363 = vmatprep.subr.mxu0 0.0
    %1364 = vmatpush1.msra.mxu0 0.0
    %1365 = vmatprep.subr.mxu0 0.0
    %1366 = vmatpush1.msra.mxu0 0.0
    %1367 = vmatprep.subr.mxu0 0.0
    %1368 = vmatpush1.msra.mxu0 0.0
    %1369 = vmatprep.subr.mxu0 0.0
    %1370 = vmatpush1.msra.mxu0 0.0
    %1371 = vmatprep.subr.mxu0 0.0
    %1372 = vmatpush1.msra.mxu0 0.0
    %1373 = vmatprep.subr.mxu0 0.0
    %1374 = vmatpush1.msra.mxu0 0.0
    %1375 = vmatprep.subr.mxu0 0.0
    %1376 = vmatpush1.msra.mxu0 0.0
    %1377 = vmatprep.subr.mxu0 0.0
    %1378 = vmatpush1.msra.mxu0 0.0
    %1379 = vmatprep.subr.mxu0 0.0
    %1380 = vmatpush1.msra.mxu0 0.0
    %1381 = vmatprep.subr.mxu0 0.0
    %1382 = vmatpush1.msra.mxu0 0.0
    %1383 = vmatprep.subr.mxu0 0.0
    %1384 = vmatpush1.msra.mxu0 0.0
    %1385 = vmatprep.subr.mxu0 0.0
    %1386 = vmatpush1.msra.mxu0 0.0
    %1387 = vmatprep.subr.mxu0 0.0
    %1388 = vmatpush1.msra.mxu0 0.0
    %1389 = vmatprep.subr.mxu0 0.0
    %1390 = vmatpush1.msra.mxu0 0.0
    %1391 = vmatprep.subr.mxu0 0.0
    %1392 = vmatpush1.msra.mxu0 0.0
    %1393 = vmatprep.subr.mxu0 0.0
    %1394 = vmatpush1.msra.mxu0 0.0
    %1395 = vmatprep.subr.mxu0 0.0
    %1396 = vmatpush1.msra.mxu0 0.0
    %1397 = vmatprep.subr.mxu0 0.0
    %1398 = vmatpush1.msra.mxu0 0.0
    %1399 = vmatprep.subr.mxu0 0.0
    %1400 = vmatpush1.msra.mxu0 0.0
    %1401 = vmatprep.subr.mxu0 0.0
    %1402 = vmatpush1.msra.mxu0 0.0
    %1403 = vmatprep.subr.mxu0 0.0
    %1404 = vmatpush1.msra.mxu0 0.0
    %1405 = vmatprep.subr.mxu0 0.0
    %1406 = vmatpush1.msra.mxu0 0.0
    %1407 = vmatprep.subr.mxu0 0.0
    %1408 = vmatpush1.msra.mxu0 0.0
    %1409 = vmatprep.subr.mxu0 0.0
    %1410 = vmatpush1.msra.mxu0 0.0
    %1411 = vmatprep.mubr.f32.mxu0 0.0
    %1412 = vmatmul.mubr.f32.gmra.mrb[0].mxu0 %v1345
    %v1413 = vpop.f32.mrb[0].mxu0
    %v1414 = vadd.f32 0.0, %v1413
    %v1415 = vpop.f32.mrb[0].mxu0
    %1416 = vdwg.mxu0
    %v1417 = vrot.slane %v376, 2
    %v1419 = vadd.f32 %v1417, %v1414
    %v1420 = vmul.f32 %v1419, %v205
    %v1421 = vtanh.pop %v1420
    %v1422 = vmul.f32 %v1421, %v205
    %v1423 = vadd.f32 %v1422, %v206
    %v1424 = vmul.f32 %v1423, %v1224
    %1426 = vrot.lane.b32.xlu0 %v1423, 64
    %v1427 = vpop.permute.xlu0 %1426
    %v1429 = vmul.f32 %v1423, %v1427
    %1431 = vrot.lane.b32.xlu0 %v1429, 32
    %v1432 = vpop.permute.xlu0 %1431
    %v1434 = vadd.f32 %v1424, %v1432
    %v1435 = vtanh.pop %v1434
    %1437 = vrot.lane.b32.xlu0 %v1435, 64
    %v1438 = vpop.permute.xlu0 %1437
    %v1440 = vmul.f32 %v1423, %v1438
    %v1443 = vunpack.c.l.s4 1983009808
    %v1444 = vunpack.c.0.s8 %v1443
    %v1445 = vlaneseq
    %v1446 = vshrl.u32 %v1445, 7
    %v1447 = vsub.s32 %v1444, %v1446
    %v1448 = vrot.slane %v1334, %v1447
    %1449 = vrot.lane.b32.xlu0 %v1448, 32
    %v1450 = vpop.permute.xlu0 %1449
    %v1451 = vsel %vm407, %v1450, 0
    %1453 = vmatprep.subr.mxu0 0.0
    %1454 = vmatpush1.msra.mxu0 %v403
    %1455 = vmatprep.subr.mxu0 0.0
    %1456 = vmatpush1.msra.mxu0 %v404
    %1457 = vmatprep.subr.mxu0 0.0
    %1458 = vmatpush1.msra.mxu0 %v405
    %1459 = vmatprep.subr.mxu0 0.0
    %1460 = vmatpush1.msra.mxu0 %v406
    %1461 = vmatprep.subr.mxu0 0.0
    %1462 = vmatpush1.msra.mxu0 0.0
    %1463 = vmatprep.subr.mxu0 0.0
    %1464 = vmatpush1.msra.mxu0 0.0
    %1465 = vmatprep.subr.mxu0 0.0
    %1466 = vmatpush1.msra.mxu0 0.0
    %1467 = vmatprep.subr.mxu0 0.0
    %1468 = vmatpush1.msra.mxu0 0.0
    %1469 = vmatprep.subr.mxu0 0.0
    %1470 = vmatpush1.msra.mxu0 0.0
    %1471 = vmatprep.subr.mxu0 0.0
    %1472 = vmatpush1.msra.mxu0 0.0
    %1473 = vmatprep.subr.mxu0 0.0
    %1474 = vmatpush1.msra.mxu0 0.0
    %1475 = vmatprep.subr.mxu0 0.0
    %1476 = vmatpush1.msra.mxu0 0.0
    %1477 = vmatprep.subr.mxu0 0.0
    %1478 = vmatpush1.msra.mxu0 0.0
    %1479 = vmatprep.subr.mxu0 0.0
    %1480 = vmatpush1.msra.mxu0 0.0
    %1481 = vmatprep.subr.mxu0 0.0
    %1482 = vmatpush1.msra.mxu0 0.0
    %1483 = vmatprep.subr.mxu0 0.0
    %1484 = vmatpush1.msra.mxu0 0.0
    %1485 = vmatprep.subr.mxu0 0.0
    %1486 = vmatpush1.msra.mxu0 0.0
    %1487 = vmatprep.subr.mxu0 0.0
    %1488 = vmatpush1.msra.mxu0 0.0
    %1489 = vmatprep.subr.mxu0 0.0
    %1490 = vmatpush1.msra.mxu0 0.0
    %1491 = vmatprep.subr.mxu0 0.0
    %1492 = vmatpush1.msra.mxu0 0.0
    %1493 = vmatprep.subr.mxu0 0.0
    %1494 = vmatpush1.msra.mxu0 0.0
    %1495 = vmatprep.subr.mxu0 0.0
    %1496 = vmatpush1.msra.mxu0 0.0
    %1497 = vmatprep.subr.mxu0 0.0
    %1498 = vmatpush1.msra.mxu0 0.0
    %1499 = vmatprep.subr.mxu0 0.0
    %1500 = vmatpush1.msra.mxu0 0.0
    %1501 = vmatprep.subr.mxu0 0.0
    %1502 = vmatpush1.msra.mxu0 0.0
    %1503 = vmatprep.subr.mxu0 0.0
    %1504 = vmatpush1.msra.mxu0 0.0
    %1505 = vmatprep.subr.mxu0 0.0
    %1506 = vmatpush1.msra.mxu0 0.0
    %1507 = vmatprep.subr.mxu0 0.0
    %1508 = vmatpush1.msra.mxu0 0.0
    %1509 = vmatprep.subr.mxu0 0.0
    %1510 = vmatpush1.msra.mxu0 0.0
    %1511 = vmatprep.subr.mxu0 0.0
    %1512 = vmatpush1.msra.mxu0 0.0
    %1513 = vmatprep.subr.mxu0 0.0
    %1514 = vmatpush1.msra.mxu0 0.0
    %1515 = vmatprep.subr.mxu0 0.0
    %1516 = vmatpush1.msra.mxu0 0.0
    %1517 = vmatprep.mubr.f32.mxu0 0.0
    %1518 = vmatmul.mubr.f32.gmra.mrb[0].mxu0 %v1451
    %v1519 = vpop.f32.mrb[0].mxu0
    %v1520 = vadd.f32 0.0, %v1519
    %v1521 = vpop.f32.mrb[0].mxu0
    %1522 = vdwg.mxu0
    %v1523 = vadd.f32 %v393, %v1520
    %v1524 = vmul.f32 %v1523, %v205
    %v1525 = vtanh.pop %v1524
    %v1526 = vmul.f32 %v1525, %v205
    %v1527 = vadd.f32 %v1526, %v206
    %v1528 = vmul.f32 %v1527, %v1328
    %1530 = vrot.lane.b32.xlu0 %v1527, 64
    %v1531 = vpop.permute.xlu0 %1530
    %v1533 = vmul.f32 %v1527, %v1531
    %1535 = vrot.lane.b32.xlu0 %v1533, 32
    %v1536 = vpop.permute.xlu0 %1535
    %v1538 = vadd.f32 %v1528, %v1536
    %v1539 = vtanh.pop %v1538
    %1541 = vrot.lane.b32.xlu0 %v1539, 64
    %v1542 = vpop.permute.xlu0 %1541
    %v1544 = vmul.f32 %v1527, %v1542
    %v1547 = vunpack.c.l.s4 1983009808
    %v1548 = vunpack.c.0.s8 %v1547
    %v1549 = vlaneseq
    %v1550 = vshrl.u32 %v1549, 7
    %v1551 = vsub.s32 %v1548, %v1550
    %v1552 = vrot.slane %v1440, %v1551
    %1553 = vrot.lane.b32.xlu0 %v1552, 32
    %v1554 = vpop.permute.xlu0 %1553
    %v1555 = vsel %vm407, %v1554, 0
    %1557 = vmatprep.subr.mxu0 0.0
    %1558 = vmatpush1.msra.mxu0 %v503
    %1559 = vmatprep.subr.mxu0 0.0
    %1560 = vmatpush1.msra.mxu0 %v504
    %1561 = vmatprep.subr.mxu0 0.0
    %1562 = vmatpush1.msra.mxu0 %v505
    %1563 = vmatprep.subr.mxu0 0.0
    %1564 = vmatpush1.msra.mxu0 %v506
    %1565 = vmatprep.subr.mxu0 0.0
    %1566 = vmatpush1.msra.mxu0 0.0
    %1567 = vmatprep.subr.mxu0 0.0
    %1568 = vmatpush1.msra.mxu0 0.0
    %1569 = vmatprep.subr.mxu0 0.0
    %1570 = vmatpush1.msra.mxu0 0.0
    %1571 = vmatprep.subr.mxu0 0.0
    %1572 = vmatpush1.msra.mxu0 0.0
    %1573 = vmatprep.subr.mxu0 0.0
    %1574 = vmatpush1.msra.mxu0 0.0
    %1575 = vmatprep.subr.mxu0 0.0
    %1576 = vmatpush1.msra.mxu0 0.0
    %1577 = vmatprep.subr.mxu0 0.0
    %1578 = vmatpush1.msra.mxu0 0.0
    %1579 = vmatprep.subr.mxu0 0.0
    %1580 = vmatpush1.msra.mxu0 0.0
    %1581 = vmatprep.subr.mxu0 0.0
    %1582 = vmatpush1.msra.mxu0 0.0
    %1583 = vmatprep.subr.mxu0 0.0
    %1584 = vmatpush1.msra.mxu0 0.0
    %1585 = vmatprep.subr.mxu0 0.0
    %1586 = vmatpush1.msra.mxu0 0.0
    %1587 = vmatprep.subr.mxu0 0.0
    %1588 = vmatpush1.msra.mxu0 0.0
    %1589 = vmatprep.subr.mxu0 0.0
    %1590 = vmatpush1.msra.mxu0 0.0
    %1591 = vmatprep.subr.mxu0 0.0
    %1592 = vmatpush1.msra.mxu0 0.0
    %1593 = vmatprep.subr.mxu0 0.0
    %1594 = vmatpush1.msra.mxu0 0.0
    %1595 = vmatprep.subr.mxu0 0.0
    %1596 = vmatpush1.msra.mxu0 0.0
    %1597 = vmatprep.subr.mxu0 0.0
    %1598 = vmatpush1.msra.mxu0 0.0
    %1599 = vmatprep.subr.mxu0 0.0
    %1600 = vmatpush1.msra.mxu0 0.0
    %1601 = vmatprep.subr.mxu0 0.0
    %1602 = vmatpush1.msra.mxu0 0.0
    %1603 = vmatprep.subr.mxu0 0.0
    %1604 = vmatpush1.msra.mxu0 0.0
    %1605 = vmatprep.subr.mxu0 0.0
    %1606 = vmatpush1.msra.mxu0 0.0
    %1607 = vmatprep.subr.mxu0 0.0
    %1608 = vmatpush1.msra.mxu0 0.0
    %1609 = vmatprep.subr.mxu0 0.0
    %1610 = vmatpush1.msra.mxu0 0.0
    %1611 = vmatprep.subr.mxu0 0.0
    %1612 = vmatpush1.msra.mxu0 0.0
    %1613 = vmatprep.subr.mxu0 0.0
    %1614 = vmatpush1.msra.mxu0 0.0
    %1615 = vmatprep.subr.mxu0 0.0
    %1616 = vmatpush1.msra.mxu0 0.0
    %1617 = vmatprep.subr.mxu0 0.0
    %1618 = vmatpush1.msra.mxu0 0.0
    %1619 = vmatprep.subr.mxu0 0.0
    %1620 = vmatpush1.msra.mxu0 0.0
    %1621 = vmatprep.mubr.f32.mxu0 0.0
    %1622 = vmatmul.mubr.f32.gmra.mrb[0].mxu0 %v1555
    %v1623 = vpop.f32.mrb[0].mxu0
    %v1624 = vadd.f32 0.0, %v1623
    %v1625 = vpop.f32.mrb[0].mxu0
    %1626 = vdwg.mxu0
    %v1627 = vrot.slane %v374, 2
    %v1629 = vadd.f32 %v1627, %v1624
    %v1630 = vmul.f32 %v1629, %v205
    %v1631 = vtanh.pop %v1630
    %v1632 = vmul.f32 %v1631, %v205
    %v1633 = vadd.f32 %v1632, %v206
    %v1634 = vmul.f32 %v1633, %v1434
    %1636 = vrot.lane.b32.xlu0 %v1633, 64
    %v1637 = vpop.permute.xlu0 %1636
    %v1639 = vmul.f32 %v1633, %v1637
    %1641 = vrot.lane.b32.xlu0 %v1639, 32
    %v1642 = vpop.permute.xlu0 %1641
    %v1644 = vadd.f32 %v1634, %v1642
    %v1645 = vtanh.pop %v1644
    %1647 = vrot.lane.b32.xlu0 %v1645, 64
    %v1648 = vpop.permute.xlu0 %1647
    %v1650 = vmul.f32 %v1633, %v1648
    %v1653 = vunpack.c.l.s4 1983009808
    %v1654 = vunpack.c.0.s8 %v1653
    %v1655 = vlaneseq
    %v1656 = vshrl.u32 %v1655, 7
    %v1657 = vsub.s32 %v1654, %v1656
    %v1658 = vrot.slane %v1544, %v1657
    %1659 = vrot.lane.b32.xlu0 %v1658, 32
    %v1660 = vpop.permute.xlu0 %1659
    %v1661 = vsel %vm407, %v1660, 0
    %1663 = vmatprep.subr.mxu0 0.0
    %1664 = vmatpush1.msra.mxu0 %v403
    %1665 = vmatprep.subr.mxu0 0.0
    %1666 = vmatpush1.msra.mxu0 %v404
    %1667 = vmatprep.subr.mxu0 0.0
    %1668 = vmatpush1.msra.mxu0 %v405
    %1669 = vmatprep.subr.mxu0 0.0
    %1670 = vmatpush1.msra.mxu0 %v406
    %1671 = vmatprep.subr.mxu0 0.0
    %1672 = vmatpush1.msra.mxu0 0.0
    %1673 = vmatprep.subr.mxu0 0.0
    %1674 = vmatpush1.msra.mxu0 0.0
    %1675 = vmatprep.subr.mxu0 0.0
    %1676 = vmatpush1.msra.mxu0 0.0
    %1677 = vmatprep.subr.mxu0 0.0
    %1678 = vmatpush1.msra.mxu0 0.0
    %1679 = vmatprep.subr.mxu0 0.0
    %1680 = vmatpush1.msra.mxu0 0.0
    %1681 = vmatprep.subr.mxu0 0.0
    %1682 = vmatpush1.msra.mxu0 0.0
    %1683 = vmatprep.subr.mxu0 0.0
    %1684 = vmatpush1.msra.mxu0 0.0
    %1685 = vmatprep.subr.mxu0 0.0
    %1686 = vmatpush1.msra.mxu0 0.0
    %1687 = vmatprep.subr.mxu0 0.0
    %1688 = vmatpush1.msra.mxu0 0.0
    %1689 = vmatprep.subr.mxu0 0.0
    %1690 = vmatpush1.msra.mxu0 0.0
    %1691 = vmatprep.subr.mxu0 0.0
    %1692 = vmatpush1.msra.mxu0 0.0
    %1693 = vmatprep.subr.mxu0 0.0
    %1694 = vmatpush1.msra.mxu0 0.0
    %1695 = vmatprep.subr.mxu0 0.0
    %1696 = vmatpush1.msra.mxu0 0.0
    %1697 = vmatprep.subr.mxu0 0.0
    %1698 = vmatpush1.msra.mxu0 0.0
    %1699 = vmatprep.subr.mxu0 0.0
    %1700 = vmatpush1.msra.mxu0 0.0
    %1701 = vmatprep.subr.mxu0 0.0
    %1702 = vmatpush1.msra.mxu0 0.0
    %1703 = vmatprep.subr.mxu0 0.0
    %1704 = vmatpush1.msra.mxu0 0.0
    %1705 = vmatprep.subr.mxu0 0.0
    %1706 = vmatpush1.msra.mxu0 0.0
    %1707 = vmatprep.subr.mxu0 0.0
    %1708 = vmatpush1.msra.mxu0 0.0
    %1709 = vmatprep.subr.mxu0 0.0
    %1710 = vmatpush1.msra.mxu0 0.0
    %1711 = vmatprep.subr.mxu0 0.0
    %1712 = vmatpush1.msra.mxu0 0.0
    %1713 = vmatprep.subr.mxu0 0.0
    %1714 = vmatpush1.msra.mxu0 0.0
    %1715 = vmatprep.subr.mxu0 0.0
    %1716 = vmatpush1.msra.mxu0 0.0
    %1717 = vmatprep.subr.mxu0 0.0
    %1718 = vmatpush1.msra.mxu0 0.0
    %1719 = vmatprep.subr.mxu0 0.0
    %1720 = vmatpush1.msra.mxu0 0.0
    %1721 = vmatprep.subr.mxu0 0.0
    %1722 = vmatpush1.msra.mxu0 0.0
    %1723 = vmatprep.subr.mxu0 0.0
    %1724 = vmatpush1.msra.mxu0 0.0
    %1725 = vmatprep.subr.mxu0 0.0
    %1726 = vmatpush1.msra.mxu0 0.0
    %1727 = vmatprep.mubr.f32.mxu0 0.0
    %1728 = vmatmul.mubr.f32.gmra.mrb[0].mxu0 %v1661
    %v1729 = vpop.f32.mrb[0].mxu0
    %v1730 = vadd.f32 0.0, %v1729
    %v1731 = vpop.f32.mrb[0].mxu0
    %1732 = vdwg.mxu0
    %v1733 = vadd.f32 %v392, %v1730
    %v1734 = vmul.f32 %v1733, %v205
    %v1735 = vtanh.pop %v1734
    %v1736 = vmul.f32 %v1735, %v205
    %v1737 = vadd.f32 %v1736, %v206
    %v1738 = vmul.f32 %v1737, %v1538
    %1740 = vrot.lane.b32.xlu0 %v1737, 64
    %v1741 = vpop.permute.xlu0 %1740
    %v1743 = vmul.f32 %v1737, %v1741
    %1745 = vrot.lane.b32.xlu0 %v1743, 32
    %v1746 = vpop.permute.xlu0 %1745
    %v1748 = vadd.f32 %v1738, %v1746
    %v1749 = vtanh.pop %v1748
    %1751 = vrot.lane.b32.xlu0 %v1749, 64
    %v1752 = vpop.permute.xlu0 %1751
    %v1754 = vmul.f32 %v1737, %v1752
    %v1757 = vunpack.c.l.s4 1983009808
    %v1758 = vunpack.c.0.s8 %v1757
    %v1759 = vlaneseq
    %v1760 = vshrl.u32 %v1759, 7
    %v1761 = vsub.s32 %v1758, %v1760
    %v1762 = vrot.slane %v1650, %v1761
    %1763 = vrot.lane.b32.xlu0 %v1762, 32
    %v1764 = vpop.permute.xlu0 %1763
    %v1765 = vsel %vm407, %v1764, 0
    %1767 = vmatprep.subr.mxu0 0.0
    %1768 = vmatpush1.msra.mxu0 %v503
    %1769 = vmatprep.subr.mxu0 0.0
    %1770 = vmatpush1.msra.mxu0 %v504
    %1771 = vmatprep.subr.mxu0 0.0
    %1772 = vmatpush1.msra.mxu0 %v505
    %1773 = vmatprep.subr.mxu0 0.0
    %1774 = vmatpush1.msra.mxu0 %v506
    %1775 = vmatprep.subr.mxu0 0.0
    %1776 = vmatpush1.msra.mxu0 0.0
    %1777 = vmatprep.subr.mxu0 0.0
    %1778 = vmatpush1.msra.mxu0 0.0
    %1779 = vmatprep.subr.mxu0 0.0
    %1780 = vmatpush1.msra.mxu0 0.0
    %1781 = vmatprep.subr.mxu0 0.0
    %1782 = vmatpush1.msra.mxu0 0.0
    %1783 = vmatprep.subr.mxu0 0.0
    %1784 = vmatpush1.msra.mxu0 0.0
    %1785 = vmatprep.subr.mxu0 0.0
    %1786 = vmatpush1.msra.mxu0 0.0
    %1787 = vmatprep.subr.mxu0 0.0
    %1788 = vmatpush1.msra.mxu0 0.0
    %1789 = vmatprep.subr.mxu0 0.0
    %1790 = vmatpush1.msra.mxu0 0.0
    %1791 = vmatprep.subr.mxu0 0.0
    %1792 = vmatpush1.msra.mxu0 0.0
    %1793 = vmatprep.subr.mxu0 0.0
    %1794 = vmatpush1.msra.mxu0 0.0
    %1795 = vmatprep.subr.mxu0 0.0
    %1796 = vmatpush1.msra.mxu0 0.0
    %1797 = vmatprep.subr.mxu0 0.0
    %1798 = vmatpush1.msra.mxu0 0.0
    %1799 = vmatprep.subr.mxu0 0.0
    %1800 = vmatpush1.msra.mxu0 0.0
    %1801 = vmatprep.subr.mxu0 0.0
    %1802 = vmatpush1.msra.mxu0 0.0
    %1803 = vmatprep.subr.mxu0 0.0
    %1804 = vmatpush1.msra.mxu0 0.0
    %1805 = vmatprep.subr.mxu0 0.0
    %1806 = vmatpush1.msra.mxu0 0.0
    %1807 = vmatprep.subr.mxu0 0.0
    %1808 = vmatpush1.msra.mxu0 0.0
    %1809 = vmatprep.subr.mxu0 0.0
    %1810 = vmatpush1.msra.mxu0 0.0
    %1811 = vmatprep.subr.mxu0 0.0
    %1812 = vmatpush1.msra.mxu0 0.0
    %1813 = vmatprep.subr.mxu0 0.0
    %1814 = vmatpush1.msra.mxu0 0.0
    %1815 = vmatprep.subr.mxu0 0.0
    %1816 = vmatpush1.msra.mxu0 0.0
    %1817 = vmatprep.subr.mxu0 0.0
    %1818 = vmatpush1.msra.mxu0 0.0
    %1819 = vmatprep.subr.mxu0 0.0
    %1820 = vmatpush1.msra.mxu0 0.0
    %1821 = vmatprep.subr.mxu0 0.0
    %1822 = vmatpush1.msra.mxu0 0.0
    %1823 = vmatprep.subr.mxu0 0.0
    %1824 = vmatpush1.msra.mxu0 0.0
    %1825 = vmatprep.subr.mxu0 0.0
    %1826 = vmatpush1.msra.mxu0 0.0
    %1827 = vmatprep.subr.mxu0 0.0
    %1828 = vmatpush1.msra.mxu0 0.0
    %1829 = vmatprep.subr.mxu0 0.0
    %1830 = vmatpush1.msra.mxu0 0.0
    %1831 = vmatprep.mubr.f32.mxu0 0.0
    %1832 = vmatmul.mubr.f32.gmra.mrb[0].mxu0 %v1765
    %v1833 = vpop.f32.mrb[0].mxu0
    %v1834 = vadd.f32 0.0, %v1833
    %v1835 = vpop.f32.mrb[0].mxu0
    %1836 = vdwg.mxu0
    %v1837 = vrot.slane %v375, 2
    %v1839 = vadd.f32 %v1837, %v1834
    %v1840 = vmul.f32 %v1839, %v205
    %v1841 = vtanh.pop %v1840
    %v1842 = vmul.f32 %v1841, %v205
    %v1843 = vadd.f32 %v1842, %v206
    %v1844 = vmul.f32 %v1843, %v1644
    %1846 = vrot.lane.b32.xlu0 %v1843, 64
    %v1847 = vpop.permute.xlu0 %1846
    %v1849 = vmul.f32 %v1843, %v1847
    %1851 = vrot.lane.b32.xlu0 %v1849, 32
    %v1852 = vpop.permute.xlu0 %1851
    %v1854 = vadd.f32 %v1844, %v1852
    %v1855 = vtanh.pop %v1854
    %1857 = vrot.lane.b32.xlu0 %v1855, 64
    %v1858 = vpop.permute.xlu0 %1857
    %v1860 = vmul.f32 %v1843, %v1858
    %v1863 = vunpack.c.l.s4 1983009808
    %v1864 = vunpack.c.0.s8 %v1863
    %v1865 = vlaneseq
    %v1866 = vshrl.u32 %v1865, 7
    %v1867 = vsub.s32 %v1864, %v1866
    %v1868 = vrot.slane %v1754, %v1867
    %1869 = vrot.lane.b32.xlu0 %v1868, 32
    %v1870 = vpop.permute.xlu0 %1869
    %v1871 = vsel %vm407, %v1870, 0
    %1873 = vmatprep.subr.mxu0 0.0
    %1874 = vmatpush1.msra.mxu0 %v403
    %1875 = vmatprep.subr.mxu0 0.0
    %1876 = vmatpush1.msra.mxu0 %v404
    %1877 = vmatprep.subr.mxu0 0.0
    %1878 = vmatpush1.msra.mxu0 %v405
    %1879 = vmatprep.subr.mxu0 0.0
    %1880 = vmatpush1.msra.mxu0 %v406
    %1881 = vmatprep.subr.mxu0 0.0
    %1882 = vmatpush1.msra.mxu0 0.0
    %1883 = vmatprep.subr.mxu0 0.0
    %1884 = vmatpush1.msra.mxu0 0.0
    %1885 = vmatprep.subr.mxu0 0.0
    %1886 = vmatpush1.msra.mxu0 0.0
    %1887 = vmatprep.subr.mxu0 0.0
    %1888 = vmatpush1.msra.mxu0 0.0
    %1889 = vmatprep.subr.mxu0 0.0
    %1890 = vmatpush1.msra.mxu0 0.0
    %1891 = vmatprep.subr.mxu0 0.0
    %1892 = vmatpush1.msra.mxu0 0.0
    %1893 = vmatprep.subr.mxu0 0.0
    %1894 = vmatpush1.msra.mxu0 0.0
    %1895 = vmatprep.subr.mxu0 0.0
    %1896 = vmatpush1.msra.mxu0 0.0
    %1897 = vmatprep.subr.mxu0 0.0
    %1898 = vmatpush1.msra.mxu0 0.0
    %1899 = vmatprep.subr.mxu0 0.0
    %1900 = vmatpush1.msra.mxu0 0.0
    %1901 = vmatprep.subr.mxu0 0.0
    %1902 = vmatpush1.msra.mxu0 0.0
    %1903 = vmatprep.subr.mxu0 0.0
    %1904 = vmatpush1.msra.mxu0 0.0
    %1905 = vmatprep.subr.mxu0 0.0
    %1906 = vmatpush1.msra.mxu0 0.0
    %1907 = vmatprep.subr.mxu0 0.0
    %1908 = vmatpush1.msra.mxu0 0.0
    %1909 = vmatprep.subr.mxu0 0.0
    %1910 = vmatpush1.msra.mxu0 0.0
    %1911 = vmatprep.subr.mxu0 0.0
    %1912 = vmatpush1.msra.mxu0 0.0
    %1913 = vmatprep.subr.mxu0 0.0
    %1914 = vmatpush1.msra.mxu0 0.0
    %1915 = vmatprep.subr.mxu0 0.0
    %1916 = vmatpush1.msra.mxu0 0.0
    %1917 = vmatprep.subr.mxu0 0.0
    %1918 = vmatpush1.msra.mxu0 0.0
    %1919 = vmatprep.subr.mxu0 0.0
    %1920 = vmatpush1.msra.mxu0 0.0
    %1921 = vmatprep.subr.mxu0 0.0
    %1922 = vmatpush1.msra.mxu0 0.0
    %1923 = vmatprep.subr.mxu0 0.0
    %1924 = vmatpush1.msra.mxu0 0.0
    %1925 = vmatprep.subr.mxu0 0.0
    %1926 = vmatpush1.msra.mxu0 0.0
    %1927 = vmatprep.subr.mxu0 0.0
    %1928 = vmatpush1.msra.mxu0 0.0
    %1929 = vmatprep.subr.mxu0 0.0
    %1930 = vmatpush1.msra.mxu0 0.0
    %1931 = vmatprep.subr.mxu0 0.0
    %1932 = vmatpush1.msra.mxu0 0.0
    %1933 = vmatprep.subr.mxu0 0.0
    %1934 = vmatpush1.msra.mxu0 0.0
    %1935 = vmatprep.subr.mxu0 0.0
    %1936 = vmatpush1.msra.mxu0 0.0
    %1937 = vmatprep.mubr.f32.mxu0 0.0
    %1938 = vmatmul.mubr.f32.gmra.mrb[0].mxu0 %v1871
    %v1939 = vpop.f32.mrb[0].mxu0
    %v1940 = vadd.f32 0.0, %v1939
    %v1941 = vpop.f32.mrb[0].mxu0
    %1942 = vdwg.mxu0
    %v1943 = vadd.f32 %v394, %v1940
    %v1944 = vmul.f32 %v1943, %v205
    %v1945 = vtanh.pop %v1944
    %v1946 = vmul.f32 %v1945, %v205
    %v1947 = vadd.f32 %v1946, %v206
    %v1948 = vmul.f32 %v1947, %v1748
    %1950 = vrot.lane.b32.xlu0 %v1947, 64
    %v1951 = vpop.permute.xlu0 %1950
    %v1953 = vmul.f32 %v1947, %v1951
    %1955 = vrot.lane.b32.xlu0 %v1953, 32
    %v1956 = vpop.permute.xlu0 %1955
    %v1958 = vadd.f32 %v1948, %v1956
    %v1959 = vtanh.pop %v1958
    %1961 = vrot.lane.b32.xlu0 %v1959, 64
    %v1962 = vpop.permute.xlu0 %1961
    %v1964 = vmul.f32 %v1947, %v1962
    %v1967 = vunpack.c.l.s4 1983009808
    %v1968 = vunpack.c.0.s8 %v1967
    %v1969 = vlaneseq
    %v1970 = vshrl.u32 %v1969, 7
    %v1971 = vsub.s32 %v1968, %v1970
    %v1972 = vrot.slane %v1860, %v1971
    %1973 = vrot.lane.b32.xlu0 %v1972, 32
    %v1974 = vpop.permute.xlu0 %1973
    %v1975 = vsel %vm407, %v1974, 0
    %1977 = vmatprep.subr.mxu0 0.0
    %1978 = vmatpush1.msra.mxu0 %v503
    %1979 = vmatprep.subr.mxu0 0.0
    %1980 = vmatpush1.msra.mxu0 %v504
    %1981 = vmatprep.subr.mxu0 0.0
    %1982 = vmatpush1.msra.mxu0 %v505
    %1983 = vmatprep.subr.mxu0 0.0
    %1984 = vmatpush1.msra.mxu0 %v506
    %1985 = vmatprep.subr.mxu0 0.0
    %1986 = vmatpush1.msra.mxu0 0.0
    %1987 = vmatprep.subr.mxu0 0.0
    %1988 = vmatpush1.msra.mxu0 0.0
    %1989 = vmatprep.subr.mxu0 0.0
    %1990 = vmatpush1.msra.mxu0 0.0
    %1991 = vmatprep.subr.mxu0 0.0
    %1992 = vmatpush1.msra.mxu0 0.0
    %1993 = vmatprep.subr.mxu0 0.0
    %1994 = vmatpush1.msra.mxu0 0.0
    %1995 = vmatprep.subr.mxu0 0.0
    %1996 = vmatpush1.msra.mxu0 0.0
    %1997 = vmatprep.subr.mxu0 0.0
    %1998 = vmatpush1.msra.mxu0 0.0
    %1999 = vmatprep.subr.mxu0 0.0
    %2000 = vmatpush1.msra.mxu0 0.0
    %2001 = vmatprep.subr.mxu0 0.0
    %2002 = vmatpush1.msra.mxu0 0.0
    %2003 = vmatprep.subr.mxu0 0.0
    %2004 = vmatpush1.msra.mxu0 0.0
    %2005 = vmatprep.subr.mxu0 0.0
    %2006 = vmatpush1.msra.mxu0 0.0
    %2007 = vmatprep.subr.mxu0 0.0
    %2008 = vmatpush1.msra.mxu0 0.0
    %2009 = vmatprep.subr.mxu0 0.0
    %2010 = vmatpush1.msra.mxu0 0.0
    %2011 = vmatprep.subr.mxu0 0.0
    %2012 = vmatpush1.msra.mxu0 0.0
    %2013 = vmatprep.subr.mxu0 0.0
    %2014 = vmatpush1.msra.mxu0 0.0
    %2015 = vmatprep.subr.mxu0 0.0
    %2016 = vmatpush1.msra.mxu0 0.0
    %2017 = vmatprep.subr.mxu0 0.0
    %2018 = vmatpush1.msra.mxu0 0.0
    %2019 = vmatprep.subr.mxu0 0.0
    %2020 = vmatpush1.msra.mxu0 0.0
    %2021 = vmatprep.subr.mxu0 0.0
    %2022 = vmatpush1.msra.mxu0 0.0
    %2023 = vmatprep.subr.mxu0 0.0
    %2024 = vmatpush1.msra.mxu0 0.0
    %2025 = vmatprep.subr.mxu0 0.0
    %2026 = vmatpush1.msra.mxu0 0.0
    %2027 = vmatprep.subr.mxu0 0.0
    %2028 = vmatpush1.msra.mxu0 0.0
    %2029 = vmatprep.subr.mxu0 0.0
    %2030 = vmatpush1.msra.mxu0 0.0
    %2031 = vmatprep.subr.mxu0 0.0
    %2032 = vmatpush1.msra.mxu0 0.0
    %2033 = vmatprep.subr.mxu0 0.0
    %2034 = vmatpush1.msra.mxu0 0.0
    %2035 = vmatprep.subr.mxu0 0.0
    %2036 = vmatpush1.msra.mxu0 0.0
    %2037 = vmatprep.subr.mxu0 0.0
    %2038 = vmatpush1.msra.mxu0 0.0
    %2039 = vmatprep.subr.mxu0 0.0
    %2040 = vmatpush1.msra.mxu0 0.0
    %2041 = vmatprep.mubr.f32.mxu0 0.0
    %2042 = vmatmul.mubr.f32.gmra.mrb[0].mxu0 %v1975
    %v2043 = vpop.f32.mrb[0].mxu0
    %v2044 = vadd.f32 0.0, %v2043
    %v2045 = vpop.f32.mrb[0].mxu0
    %2046 = vdwg.mxu0
    %v2047 = vrot.slane %v367, 2
    %v2049 = vadd.f32 %v2047, %v2044
    %v2050 = vmul.f32 %v2049, %v205
    %v2051 = vtanh.pop %v2050
    %v2052 = vmul.f32 %v2051, %v205
    %v2053 = vadd.f32 %v2052, %v206
    %v2054 = vmul.f32 %v2053, %v1854
    %2056 = vrot.lane.b32.xlu0 %v2053, 64
    %v2057 = vpop.permute.xlu0 %2056
    %v2059 = vmul.f32 %v2053, %v2057
    %2061 = vrot.lane.b32.xlu0 %v2059, 32
    %v2062 = vpop.permute.xlu0 %2061
    %v2064 = vadd.f32 %v2054, %v2062
    %v2065 = vtanh.pop %v2064
    %2067 = vrot.lane.b32.xlu0 %v2065, 64
    %v2068 = vpop.permute.xlu0 %2067
    %v2070 = vmul.f32 %v2053, %v2068
    %v2071 = vld [vmem:[#allocation10] sm:$0xff]
    %v2072 = vld [vmem:[#allocation10 + $0x8] sm:$0xff]
    %v2073 = vld [vmem:[#allocation10 + $0x10] sm:$0xff]
    %v2074 = vld [vmem:[#allocation10 + $0x18] sm:$0xff]
    %v2075 = vld [vmem:[#allocation10 + $0x20] sm:$0xff]
    %v2076 = vld [vmem:[#allocation10 + $0x28] sm:$0xff]
    %v2077 = vld [vmem:[#allocation10 + $0x30] sm:$0xff]
    %v2078 = vld [vmem:[#allocation10 + $0x38] sm:$0xff]
    %v2079 = vld [vmem:[#allocation11] sm:$0xff]
    %v2080 = vld [vmem:[#allocation11 + $0x8] sm:$0xff]
    %v2081 = vld [vmem:[#allocation11 + $0x10] sm:$0xff]
    %v2082 = vld [vmem:[#allocation11 + $0x18] sm:$0xff]
    %v2083 = vld [vmem:[#allocation11 + $0x20] sm:$0xff]
    %v2084 = vld [vmem:[#allocation11 + $0x28] sm:$0xff]
    %v2085 = vld [vmem:[#allocation11 + $0x30] sm:$0xff]
    %v2086 = vld [vmem:[#allocation11 + $0x38] sm:$0xff]
    %v2088 = vcombine.low %v2070, %v1860
    %v2089 = vcombine.low %v1650, %v1440
    %v2091 = vunpack.c.l.s4 1983009808
    %v2092 = vunpack.c.0.s8 %v2091
    %v2093 = vlaneseq
    %v2094 = vshrl.u32 %v2093, 7
    %v2095 = vsub.s32 %v2092, %v2094
    %v2096 = vrot.slane %v2088, %v2095
    %v2098 = vunpack.c.l.s4 1983009808
    %v2099 = vunpack.c.0.s8 %v2098
    %v2100 = vlaneseq
    %v2101 = vshrl.u32 %v2100, 7
    %v2102 = vsub.s32 %v2099, %v2101
    %v2103 = vrot.slane %v2089, %v2102
    %v2104 = vcombine.low %v2096, %v2103
    %v2105 = vcombine.low %v1230, %v1020
    %v2106 = vcombine.low %v810, %v600
    %v2108 = vunpack.c.l.s4 1983009808
    %v2109 = vunpack.c.0.s8 %v2108
    %v2110 = vlaneseq
    %v2111 = vshrl.u32 %v2110, 7
    %v2112 = vsub.s32 %v2109, %v2111
    %v2113 = vrot.slane %v2105, %v2112
    %v2115 = vunpack.c.l.s4 1983009808
    %v2116 = vunpack.c.0.s8 %v2115
    %v2117 = vlaneseq
    %v2118 = vshrl.u32 %v2117, 7
    %v2119 = vsub.s32 %v2116, %v2118
    %v2120 = vrot.slane %v2106, %v2119
    %v2121 = vcombine.low %v2113, %v2120
    %2122 = vrot.lane.b32.xlu0 %v2104, 32
    %v2123 = vpop.permute.xlu0 %2122
    %2124 = vrot.lane.b32.xlu0 %v2121, 32
    %v2125 = vpop.permute.xlu0 %2124
    %v2126 = vsel %vm407, %v2123, 0
    %v2128 = vsel %vm407, %v2125, 0
    %2130 = vmatprep.subr.mxu0 %v2080
    %2131 = vmatpush1.msra.mxu0 %v2079
    %2132 = vmatprep.subr.mxu0 %v2082
    %2133 = vmatpush1.msra.mxu0 %v2081
    %2134 = vmatprep.subr.mxu0 %v2084
    %2135 = vmatpush1.msra.mxu0 %v2083
    %2136 = vmatprep.subr.mxu0 %v2086
    %2137 = vmatpush1.msra.mxu0 %v2085
    %2138 = vmatprep.subr.mxu0 0.0
    %2139 = vmatpush1.msra.mxu0 0.0
    %2140 = vmatprep.subr.mxu0 0.0
    %2141 = vmatpush1.msra.mxu0 0.0
    %2142 = vmatprep.subr.mxu0 0.0
    %2143 = vmatpush1.msra.mxu0 0.0
    %2144 = vmatprep.subr.mxu0 0.0
    %2145 = vmatpush1.msra.mxu0 0.0
    %2146 = vmatprep.subr.mxu0 0.0
    %2147 = vmatpush1.msra.mxu0 0.0
    %2148 = vmatprep.subr.mxu0 0.0
    %2149 = vmatpush1.msra.mxu0 0.0
    %2150 = vmatprep.subr.mxu0 0.0
    %2151 = vmatpush1.msra.mxu0 0.0
    %2152 = vmatprep.subr.mxu0 0.0
    %2153 = vmatpush1.msra.mxu0 0.0
    %2154 = vmatprep.subr.mxu0 0.0
    %2155 = vmatpush1.msra.mxu0 0.0
    %2156 = vmatprep.subr.mxu0 0.0
    %2157 = vmatpush1.msra.mxu0 0.0
    %2158 = vmatprep.subr.mxu0 0.0
    %2159 = vmatpush1.msra.mxu0 0.0
    %2160 = vmatprep.subr.mxu0 0.0
    %2161 = vmatpush1.msra.mxu0 0.0
    %2162 = vmatprep.subr.mxu0 0.0
    %2163 = vmatpush1.msra.mxu0 0.0
    %2164 = vmatprep.subr.mxu0 0.0
    %2165 = vmatpush1.msra.mxu0 0.0
    %2166 = vmatprep.subr.mxu0 0.0
    %2167 = vmatpush1.msra.mxu0 0.0
    %2168 = vmatprep.subr.mxu0 0.0
    %2169 = vmatpush1.msra.mxu0 0.0
    %2170 = vmatprep.subr.mxu0 0.0
    %2171 = vmatpush1.msra.mxu0 0.0
    %2172 = vmatprep.subr.mxu0 0.0
    %2173 = vmatpush1.msra.mxu0 0.0
    %2174 = vmatprep.subr.mxu0 0.0
    %2175 = vmatpush1.msra.mxu0 0.0
    %2176 = vmatprep.subr.mxu0 0.0
    %2177 = vmatpush1.msra.mxu0 0.0
    %2178 = vmatprep.subr.mxu0 0.0
    %2179 = vmatpush1.msra.mxu0 0.0
    %2180 = vmatprep.subr.mxu0 0.0
    %2181 = vmatpush1.msra.mxu0 0.0
    %2182 = vmatprep.subr.mxu0 0.0
    %2183 = vmatpush1.msra.mxu0 0.0
    %2184 = vmatprep.subr.mxu0 0.0
    %2185 = vmatpush1.msra.mxu0 0.0
    %2186 = vmatprep.subr.mxu0 0.0
    %2187 = vmatpush1.msra.mxu0 0.0
    %2188 = vmatprep.subr.mxu0 0.0
    %2189 = vmatpush1.msra.mxu0 0.0
    %2190 = vmatprep.subr.mxu0 0.0
    %2191 = vmatpush1.msra.mxu0 0.0
    %2192 = vmatprep.subr.mxu0 0.0
    %2193 = vmatpush1.msra.mxu0 0.0
    %2194 = vmatprep.mubr.f32.mxu0 0.0
    %2195 = vmatmul.mubr.f32.gmra.mrb[0].mxu0 %v2126
    %v2196 = vpop.f32.mrb[0].mxu0
    %v2197 = vadd.f32 0.0, %v2196
    %v2198 = vpop.f32.mrb[0].mxu0
    %v2199 = vadd.f32 0.0, %v2198
    %2200 = vmatprep.mubr.f32.mxu0 0.0
    %2201 = vmatmul.mubr.f32.gmra.mrb[0].mxu0 %v2128
    %v2202 = vpop.f32.mrb[0].mxu0
    %v2203 = vadd.f32 0.0, %v2202
    %v2204 = vpop.f32.mrb[0].mxu0
    %v2205 = vadd.f32 0.0, %v2204
    %2206 = vdwg.mxu0
    %v2208 = vcombine.low %v502, %v704
    %v2209 = vcombine.low %v914, %v1124
    %v2211 = vunpack.c.l.s4 1983009808
    %v2212 = vunpack.c.0.s8 %v2211
    %v2213 = vlaneseq
    %v2214 = vshrl.u32 %v2213, 7
    %v2215 = vsub.s32 %v2212, %v2214
    %v2216 = vrot.slane %v2208, %v2215
    %v2218 = vunpack.c.l.s4 1983009808
    %v2219 = vunpack.c.0.s8 %v2218
    %v2220 = vlaneseq
    %v2221 = vshrl.u32 %v2220, 7
    %v2222 = vsub.s32 %v2219, %v2221
    %v2223 = vrot.slane %v2209, %v2222
    %v2224 = vcombine.low %v2216, %v2223
    %v2225 = vcombine.low %v1334, %v1544
    %v2226 = vcombine.low %v1754, %v1964
    %v2228 = vunpack.c.l.s4 1983009808
    %v2229 = vunpack.c.0.s8 %v2228
    %v2230 = vlaneseq
    %v2231 = vshrl.u32 %v2230, 7
    %v2232 = vsub.s32 %v2229, %v2231
    %v2233 = vrot.slane %v2225, %v2232
    %v2235 = vunpack.c.l.s4 1983009808
    %v2236 = vunpack.c.0.s8 %v2235
    %v2237 = vlaneseq
    %v2238 = vshrl.u32 %v2237, 7
    %v2239 = vsub.s32 %v2236, %v2238
    %v2240 = vrot.slane %v2226, %v2239
    %v2241 = vcombine.low %v2233, %v2240
    %2242 = vrot.lane.b32.xlu0 %v2224, 32
    %v2243 = vpop.permute.xlu0 %2242
    %2244 = vrot.lane.b32.xlu0 %v2241, 32
    %v2245 = vpop.permute.xlu0 %2244
    %v2246 = vsel %vm407, %v2243, 0
    %v2248 = vsel %vm407, %v2245, 0
    %2250 = vmatprep.subr.mxu0 %v2072
    %2251 = vmatpush1.msra.mxu0 %v2071
    %2252 = vmatprep.subr.mxu0 %v2074
    %2253 = vmatpush1.msra.mxu0 %v2073
    %2254 = vmatprep.subr.mxu0 %v2076
    %2255 = vmatpush1.msra.mxu0 %v2075
    %2256 = vmatprep.subr.mxu0 %v2078
    %2257 = vmatpush1.msra.mxu0 %v2077
    %2258 = vmatprep.subr.mxu0 0.0
    %2259 = vmatpush1.msra.mxu0 0.0
    %2260 = vmatprep.subr.mxu0 0.0
    %2261 = vmatpush1.msra.mxu0 0.0
    %2262 = vmatprep.subr.mxu0 0.0
    %2263 = vmatpush1.msra.mxu0 0.0
    %2264 = vmatprep.subr.mxu0 0.0
    %2265 = vmatpush1.msra.mxu0 0.0
    %2266 = vmatprep.subr.mxu0 0.0
    %2267 = vmatpush1.msra.mxu0 0.0
    %2268 = vmatprep.subr.mxu0 0.0
    %2269 = vmatpush1.msra.mxu0 0.0
    %2270 = vmatprep.subr.mxu0 0.0
    %2271 = vmatpush1.msra.mxu0 0.0
    %2272 = vmatprep.subr.mxu0 0.0
    %2273 = vmatpush1.msra.mxu0 0.0
    %2274 = vmatprep.subr.mxu0 0.0
    %2275 = vmatpush1.msra.mxu0 0.0
    %2276 = vmatprep.subr.mxu0 0.0
    %2277 = vmatpush1.msra.mxu0 0.0
    %2278 = vmatprep.subr.mxu0 0.0
    %2279 = vmatpush1.msra.mxu0 0.0
    %2280 = vmatprep.subr.mxu0 0.0
    %2281 = vmatpush1.msra.mxu0 0.0
    %2282 = vmatprep.subr.mxu0 0.0
    %2283 = vmatpush1.msra.mxu0 0.0
    %2284 = vmatprep.subr.mxu0 0.0
    %2285 = vmatpush1.msra.mxu0 0.0
    %2286 = vmatprep.subr.mxu0 0.0
    %2287 = vmatpush1.msra.mxu0 0.0
    %2288 = vmatprep.subr.mxu0 0.0
    %2289 = vmatpush1.msra.mxu0 0.0
    %2290 = vmatprep.subr.mxu0 0.0
    %2291 = vmatpush1.msra.mxu0 0.0
    %2292 = vmatprep.subr.mxu0 0.0
    %2293 = vmatpush1.msra.mxu0 0.0
    %2294 = vmatprep.subr.mxu0 0.0
    %2295 = vmatpush1.msra.mxu0 0.0
    %2296 = vmatprep.subr.mxu0 0.0
    %2297 = vmatpush1.msra.mxu0 0.0
    %2298 = vmatprep.subr.mxu0 0.0
    %2299 = vmatpush1.msra.mxu0 0.0
    %2300 = vmatprep.subr.mxu0 0.0
    %2301 = vmatpush1.msra.mxu0 0.0
    %2302 = vmatprep.subr.mxu0 0.0
    %2303 = vmatpush1.msra.mxu0 0.0
    %2304 = vmatprep.subr.mxu0 0.0
    %2305 = vmatpush1.msra.mxu0 0.0
    %2306 = vmatprep.subr.mxu0 0.0
    %2307 = vmatpush1.msra.mxu0 0.0
    %2308 = vmatprep.subr.mxu0 0.0
    %2309 = vmatpush1.msra.mxu0 0.0
    %2310 = vmatprep.subr.mxu0 0.0
    %2311 = vmatpush1.msra.mxu0 0.0
    %2312 = vmatprep.subr.mxu0 0.0
    %2313 = vmatpush1.msra.mxu0 0.0
    %2314 = vmatprep.mubr.f32.mxu0 0.0
    %2315 = vmatmul.mubr.f32.gmra.mrb[0].mxu0 %v2246
    %v2316 = vpop.f32.mrb[0].mxu0
    %v2317 = vadd.f32 %v2197, %v2316
    %v2318 = vpop.f32.mrb[0].mxu0
    %v2319 = vadd.f32 %v2199, %v2318
    %2320 = vmatprep.mubr.f32.mxu0 0.0
    %2321 = vmatmul.mubr.f32.gmra.mrb[0].mxu0 %v2248
    %v2322 = vpop.f32.mrb[0].mxu0
    %v2323 = vadd.f32 %v2203, %v2322
    %v2324 = vpop.f32.mrb[0].mxu0
    %v2325 = vadd.f32 %v2205, %v2324
    %2326 = vdwg.mxu0
    %v2327 = vld [vmem:[%s9] sm:$0x3]
    %v2329 = vlaneseq
    %v2330 = vshrl.u32 %v2329, 7
    %v2331 = vsub.s32 0, %v2330
    %v2332 = vrot.slane %v2327, %v2331
    %v2333 = vlaneseq
    %v2334 = vshrl.u32 %v2333, 7
    %v2335 = vsub.s32 1, %v2334
    %v2336 = vrot.slane %v2327, %v2335
    %v2339 = vadd.f32 %v2317, %v2332
    %v2340 = vadd.f32 %v2319, %v2336
    %v2341 = vadd.f32 %v2323, %v2332
    %v2342 = vadd.f32 %v2325, %v2336
    %v2347 = vcombine.low %v2339, %v2340
    %v2348 = vcombine.high %v2339, %v2340
    %v2350 = vunpack.c.l.s4 1983009808
    %v2351 = vunpack.c.0.s8 %v2350
    %v2352 = vlaneseq
    %v2353 = vshrl.u32 %v2352, 7
    %v2354 = vsub.s32 %v2351, %v2353
    %v2355 = vrot.slane %v2347, %v2354
    %v2357 = vunpack.c.l.s4 1983009808
    %v2358 = vunpack.c.0.s8 %v2357
    %v2359 = vlaneseq
    %v2360 = vshrl.u32 %v2359, 7
    %v2361 = vsub.s32 %v2358, %v2360
    %v2362 = vrot.slane %v2348, %v2361
    %v2363 = vcombine.high %v2355, %v2355
    %v2364 = vcombine.high %v2362, %v2362
    %v2365 = vcombine.low %v2341, %v2342
    %v2366 = vcombine.high %v2341, %v2342
    %v2368 = vunpack.c.l.s4 1983009808
    %v2369 = vunpack.c.0.s8 %v2368
    %v2370 = vlaneseq
    %v2371 = vshrl.u32 %v2370, 7
    %v2372 = vsub.s32 %v2369, %v2371
    %v2373 = vrot.slane %v2365, %v2372
    %v2375 = vunpack.c.l.s4 1983009808
    %v2376 = vunpack.c.0.s8 %v2375
    %v2377 = vlaneseq
    %v2378 = vshrl.u32 %v2377, 7
    %v2379 = vsub.s32 %v2376, %v2378
    %v2380 = vrot.slane %v2366, %v2379
    %v2381 = vcombine.high %v2373, %v2373
    %v2382 = vcombine.high %v2380, %v2380
    %v2391 = vld [vmem:[#allocation13] sm:$0xff]
    %v2392 = vld [vmem:[#allocation13 + $0x8] sm:$0xff]
    %v2393 = vld [vmem:[#allocation13 + $0x10] sm:$0xff]
    %v2394 = vld [vmem:[#allocation13 + $0x18] sm:$0xff]
    %2395 = vmatprep.subr.mxu0 0.0
    %2396 = vmatpush1.msra.mxu0 %v2391
    %2397 = vmatprep.subr.mxu0 0.0
    %2398 = vmatpush1.msra.mxu0 %v2392
    %2399 = vmatprep.subr.mxu0 0.0
    %2400 = vmatpush1.msra.mxu0 %v2393
    %2401 = vmatprep.subr.mxu0 0.0
    %2402 = vmatpush1.msra.mxu0 %v2394
    %2403 = vmatprep.subr.mxu0 0.0
    %2404 = vmatpush1.msra.mxu0 0.0
    %2405 = vmatprep.subr.mxu0 0.0
    %2406 = vmatpush1.msra.mxu0 0.0
    %2407 = vmatprep.subr.mxu0 0.0
    %2408 = vmatpush1.msra.mxu0 0.0
    %2409 = vmatprep.subr.mxu0 0.0
    %2410 = vmatpush1.msra.mxu0 0.0
    %2411 = vmatprep.subr.mxu0 0.0
    %2412 = vmatpush1.msra.mxu0 0.0
    %2413 = vmatprep.subr.mxu0 0.0
    %2414 = vmatpush1.msra.mxu0 0.0
    %2415 = vmatprep.subr.mxu0 0.0
    %2416 = vmatpush1.msra.mxu0 0.0
    %2417 = vmatprep.subr.mxu0 0.0
    %2418 = vmatpush1.msra.mxu0 0.0
    %2419 = vmatprep.subr.mxu0 0.0
    %2420 = vmatpush1.msra.mxu0 0.0
    %2421 = vmatprep.subr.mxu0 0.0
    %2422 = vmatpush1.msra.mxu0 0.0
    %2423 = vmatprep.subr.mxu0 0.0
    %2424 = vmatpush1.msra.mxu0 0.0
    %2425 = vmatprep.subr.mxu0 0.0
    %2426 = vmatpush1.msra.mxu0 0.0
    %2427 = vmatprep.subr.mxu0 0.0
    %2428 = vmatpush1.msra.mxu0 0.0
    %2429 = vmatprep.subr.mxu0 0.0
    %2430 = vmatpush1.msra.mxu0 0.0
    %2431 = vmatprep.subr.mxu0 0.0
    %2432 = vmatpush1.msra.mxu0 0.0
    %2433 = vmatprep.subr.mxu0 0.0
    %2434 = vmatpush1.msra.mxu0 0.0
    %2435 = vmatprep.subr.mxu0 0.0
    %2436 = vmatpush1.msra.mxu0 0.0
    %2437 = vmatprep.subr.mxu0 0.0
    %2438 = vmatpush1.msra.mxu0 0.0
    %2439 = vmatprep.subr.mxu0 0.0
    %2440 = vmatpush1.msra.mxu0 0.0
    %2441 = vmatprep.subr.mxu0 0.0
    %2442 = vmatpush1.msra.mxu0 0.0
    %2443 = vmatprep.subr.mxu0 0.0
    %2444 = vmatpush1.msra.mxu0 0.0
    %2445 = vmatprep.subr.mxu0 0.0
    %2446 = vmatpush1.msra.mxu0 0.0
    %2447 = vmatprep.subr.mxu0 0.0
    %2448 = vmatpush1.msra.mxu0 0.0
    %2449 = vmatprep.subr.mxu0 0.0
    %2450 = vmatpush1.msra.mxu0 0.0
    %2451 = vmatprep.subr.mxu0 0.0
    %2452 = vmatpush1.msra.mxu0 0.0
    %2453 = vmatprep.subr.mxu0 0.0
    %2454 = vmatpush1.msra.mxu0 0.0
    %2455 = vmatprep.subr.mxu0 0.0
    %2456 = vmatpush1.msra.mxu0 0.0
    %2457 = vmatprep.subr.mxu0 0.0
    %2458 = vmatpush1.msra.mxu0 0.0
    %2459 = vmatprep.mubr.f32.mxu0 0.0
    %2460 = vmatmul.mubr.f32.gmra.mrb[0].mxu0 %v409
    %v2461 = vpop.f32.mrb[0].mxu0
    %v2462 = vadd.f32 0.0, %v2461
    %v2463 = vpop.f32.mrb[0].mxu0
    %2464 = vdwg.mxu0
    %v2465 = vadd.f32 %v2355, %v2462
    %v2466 = vmul.f32 %v2465, %v205
    %v2467 = vtanh.pop %v2466
    %v2468 = vmul.f32 %v2467, %v205
    %v2469 = vadd.f32 %v2468, %v206
    %v2470 = vmul.f32 %v2469, 0.0
    %2472 = vrot.lane.b32.xlu0 %v2469, 64
    %v2473 = vpop.permute.xlu0 %2472
    %v2475 = vmul.f32 %v2469, %v2473
    %2477 = vrot.lane.b32.xlu0 %v2475, 32
    %v2478 = vpop.permute.xlu0 %2477
    %v2480 = vadd.f32 %v2470, %v2478
    %v2481 = vtanh.pop %v2480
    %2483 = vrot.lane.b32.xlu0 %v2481, 64
    %v2484 = vpop.permute.xlu0 %2483
    %v2486 = vmul.f32 %v2469, %v2484
    %v2487 = vld [vmem:[#allocation14] sm:$0xff]
    %v2488 = vld [vmem:[#allocation14 + $0x8] sm:$0xff]
    %v2489 = vld [vmem:[#allocation14 + $0x10] sm:$0xff]
    %v2490 = vld [vmem:[#allocation14 + $0x18] sm:$0xff]
    %2491 = vmatprep.subr.mxu0 0.0
    %2492 = vmatpush1.msra.mxu0 %v2487
    %2493 = vmatprep.subr.mxu0 0.0
    %2494 = vmatpush1.msra.mxu0 %v2488
    %2495 = vmatprep.subr.mxu0 0.0
    %2496 = vmatpush1.msra.mxu0 %v2489
    %2497 = vmatprep.subr.mxu0 0.0
    %2498 = vmatpush1.msra.mxu0 %v2490
    %2499 = vmatprep.subr.mxu0 0.0
    %2500 = vmatpush1.msra.mxu0 0.0
    %2501 = vmatprep.subr.mxu0 0.0
    %2502 = vmatpush1.msra.mxu0 0.0
    %2503 = vmatprep.subr.mxu0 0.0
    %2504 = vmatpush1.msra.mxu0 0.0
    %2505 = vmatprep.subr.mxu0 0.0
    %2506 = vmatpush1.msra.mxu0 0.0
    %2507 = vmatprep.subr.mxu0 0.0
    %2508 = vmatpush1.msra.mxu0 0.0
    %2509 = vmatprep.subr.mxu0 0.0
    %2510 = vmatpush1.msra.mxu0 0.0
    %2511 = vmatprep.subr.mxu0 0.0
    %2512 = vmatpush1.msra.mxu0 0.0
    %2513 = vmatprep.subr.mxu0 0.0
    %2514 = vmatpush1.msra.mxu0 0.0
    %2515 = vmatprep.subr.mxu0 0.0
    %2516 = vmatpush1.msra.mxu0 0.0
    %2517 = vmatprep.subr.mxu0 0.0
    %2518 = vmatpush1.msra.mxu0 0.0
    %2519 = vmatprep.subr.mxu0 0.0
    %2520 = vmatpush1.msra.mxu0 0.0
    %2521 = vmatprep.subr.mxu0 0.0
    %2522 = vmatpush1.msra.mxu0 0.0
    %2523 = vmatprep.subr.mxu0 0.0
    %2524 = vmatpush1.msra.mxu0 0.0
    %2525 = vmatprep.subr.mxu0 0.0
    %2526 = vmatpush1.msra.mxu0 0.0
    %2527 = vmatprep.subr.mxu0 0.0
    %2528 = vmatpush1.msra.mxu0 0.0
    %2529 = vmatprep.subr.mxu0 0.0
    %2530 = vmatpush1.msra.mxu0 0.0
    %2531 = vmatprep.subr.mxu0 0.0
    %2532 = vmatpush1.msra.mxu0 0.0
    %2533 = vmatprep.subr.mxu0 0.0
    %2534 = vmatpush1.msra.mxu0 0.0
    %2535 = vmatprep.subr.mxu0 0.0
    %2536 = vmatpush1.msra.mxu0 0.0
    %2537 = vmatprep.subr.mxu0 0.0
    %2538 = vmatpush1.msra.mxu0 0.0
    %2539 = vmatprep.subr.mxu0 0.0
    %2540 = vmatpush1.msra.mxu0 0.0
    %2541 = vmatprep.subr.mxu0 0.0
    %2542 = vmatpush1.msra.mxu0 0.0
    %2543 = vmatprep.subr.mxu0 0.0
    %2544 = vmatpush1.msra.mxu0 0.0
    %2545 = vmatprep.subr.mxu0 0.0
    %2546 = vmatpush1.msra.mxu0 0.0
    %2547 = vmatprep.subr.mxu0 0.0
    %2548 = vmatpush1.msra.mxu0 0.0
    %2549 = vmatprep.subr.mxu0 0.0
    %2550 = vmatpush1.msra.mxu0 0.0
    %2551 = vmatprep.subr.mxu0 0.0
    %2552 = vmatpush1.msra.mxu0 0.0
    %2553 = vmatprep.subr.mxu0 0.0
    %2554 = vmatpush1.msra.mxu0 0.0
    %2555 = vmatprep.mubr.f32.mxu0 0.0
    %2556 = vmatmul.mubr.f32.gmra.mrb[0].mxu0 %v409
    %v2557 = vpop.f32.mrb[0].mxu0
    %v2558 = vadd.f32 0.0, %v2557
    %v2559 = vpop.f32.mrb[0].mxu0
    %2560 = vdwg.mxu0
    %v2561 = vrot.slane %v2382, 2
    %v2563 = vadd.f32 %v2561, %v2558
    %v2564 = vmul.f32 %v2563, %v205
    %v2565 = vtanh.pop %v2564
    %v2566 = vmul.f32 %v2565, %v205
    %v2567 = vadd.f32 %v2566, %v206
    %v2568 = vmul.f32 %v2567, 0.0
    %2570 = vrot.lane.b32.xlu0 %v2567, 64
    %v2571 = vpop.permute.xlu0 %2570
    %v2573 = vmul.f32 %v2567, %v2571
    %2575 = vrot.lane.b32.xlu0 %v2573, 32
    %v2576 = vpop.permute.xlu0 %2575
    %v2578 = vadd.f32 %v2568, %v2576
    %v2579 = vtanh.pop %v2578
    %2581 = vrot.lane.b32.xlu0 %v2579, 64
    %v2582 = vpop.permute.xlu0 %2581
    %v2584 = vmul.f32 %v2567, %v2582
    %v2585 = vadd.f32 %v2486, 0.0
    %v2586 = vmul.f32 %v2486, %v2486
    %v2587 = vadd.f32 %v2586, 0.0
    %v2588 = vadd.f32 %v2584, 0.0
    %v2589 = vmul.f32 %v2584, %v2584
    %v2590 = vadd.f32 %v2589, 0.0
    %v2593 = vunpack.c.l.s4 1983009808
    %v2594 = vunpack.c.0.s8 %v2593
    %v2595 = vlaneseq
    %v2596 = vshrl.u32 %v2595, 7
    %v2597 = vsub.s32 %v2594, %v2596
    %v2598 = vrot.slane %v2486, %v2597
    %2599 = vrot.lane.b32.xlu0 %v2598, 32
    %v2600 = vpop.permute.xlu0 %2599
    %v2601 = vsel %vm407, %v2600, 0
    %2603 = vmatprep.subr.mxu0 0.0
    %2604 = vmatpush1.msra.mxu0 %v2391
    %2605 = vmatprep.subr.mxu0 0.0
    %2606 = vmatpush1.msra.mxu0 %v2392
    %2607 = vmatprep.subr.mxu0 0.0
    %2608 = vmatpush1.msra.mxu0 %v2393
    %2609 = vmatprep.subr.mxu0 0.0
    %2610 = vmatpush1.msra.mxu0 %v2394
    %2611 = vmatprep.subr.mxu0 0.0
    %2612 = vmatpush1.msra.mxu0 0.0
    %2613 = vmatprep.subr.mxu0 0.0
    %2614 = vmatpush1.msra.mxu0 0.0
    %2615 = vmatprep.subr.mxu0 0.0
    %2616 = vmatpush1.msra.mxu0 0.0
    %2617 = vmatprep.subr.mxu0 0.0
    %2618 = vmatpush1.msra.mxu0 0.0
    %2619 = vmatprep.subr.mxu0 0.0
    %2620 = vmatpush1.msra.mxu0 0.0
    %2621 = vmatprep.subr.mxu0 0.0
    %2622 = vmatpush1.msra.mxu0 0.0
    %2623 = vmatprep.subr.mxu0 0.0
    %2624 = vmatpush1.msra.mxu0 0.0
    %2625 = vmatprep.subr.mxu0 0.0
    %2626 = vmatpush1.msra.mxu0 0.0
    %2627 = vmatprep.subr.mxu0 0.0
    %2628 = vmatpush1.msra.mxu0 0.0
    %2629 = vmatprep.subr.mxu0 0.0
    %2630 = vmatpush1.msra.mxu0 0.0
    %2631 = vmatprep.subr.mxu0 0.0
    %2632 = vmatpush1.msra.mxu0 0.0
    %2633 = vmatprep.subr.mxu0 0.0
    %2634 = vmatpush1.msra.mxu0 0.0
    %2635 = vmatprep.subr.mxu0 0.0
    %2636 = vmatpush1.msra.mxu0 0.0
    %2637 = vmatprep.subr.mxu0 0.0
    %2638 = vmatpush1.msra.mxu0 0.0
    %2639 = vmatprep.subr.mxu0 0.0
    %2640 = vmatpush1.msra.mxu0 0.0
    %2641 = vmatprep.subr.mxu0 0.0
    %2642 = vmatpush1.msra.mxu0 0.0
    %2643 = vmatprep.subr.mxu0 0.0
    %2644 = vmatpush1.msra.mxu0 0.0
    %2645 = vmatprep.subr.mxu0 0.0
    %2646 = vmatpush1.msra.mxu0 0.0
    %2647 = vmatprep.subr.mxu0 0.0
    %2648 = vmatpush1.msra.mxu0 0.0
    %2649 = vmatprep.subr.mxu0 0.0
    %2650 = vmatpush1.msra.mxu0 0.0
    %2651 = vmatprep.subr.mxu0 0.0
    %2652 = vmatpush1.msra.mxu0 0.0
    %2653 = vmatprep.subr.mxu0 0.0
    %2654 = vmatpush1.msra.mxu0 0.0
    %2655 = vmatprep.subr.mxu0 0.0
    %2656 = vmatpush1.msra.mxu0 0.0
    %2657 = vmatprep.subr.mxu0 0.0
    %2658 = vmatpush1.msra.mxu0 0.0
    %2659 = vmatprep.subr.mxu0 0.0
    %2660 = vmatpush1.msra.mxu0 0.0
    %2661 = vmatprep.subr.mxu0 0.0
    %2662 = vmatpush1.msra.mxu0 0.0
    %2663 = vmatprep.subr.mxu0 0.0
    %2664 = vmatpush1.msra.mxu0 0.0
    %2665 = vmatprep.subr.mxu0 0.0
    %2666 = vmatpush1.msra.mxu0 0.0
    %2667 = vmatprep.mubr.f32.mxu0 0.0
    %2668 = vmatmul.mubr.f32.gmra.mrb[0].mxu0 %v2601
    %v2669 = vpop.f32.mrb[0].mxu0
    %v2670 = vadd.f32 0.0, %v2669
    %v2671 = vpop.f32.mrb[0].mxu0
    %2672 = vdwg.mxu0
    %v2673 = vadd.f32 %v2363, %v2670
    %v2674 = vmul.f32 %v2673, %v205
    %v2675 = vtanh.pop %v2674
    %v2676 = vmul.f32 %v2675, %v205
    %v2677 = vadd.f32 %v2676, %v206
    %v2678 = vmul.f32 %v2677, %v2480
    %2680 = vrot.lane.b32.xlu0 %v2677, 64
    %v2681 = vpop.permute.xlu0 %2680
    %v2683 = vmul.f32 %v2677, %v2681
    %2685 = vrot.lane.b32.xlu0 %v2683, 32
    %v2686 = vpop.permute.xlu0 %2685
    %v2688 = vadd.f32 %v2678, %v2686
    %v2689 = vtanh.pop %v2688
    %2691 = vrot.lane.b32.xlu0 %v2689, 64
    %v2692 = vpop.permute.xlu0 %2691
    %v2694 = vmul.f32 %v2677, %v2692
    %v2697 = vunpack.c.l.s4 1983009808
    %v2698 = vunpack.c.0.s8 %v2697
    %v2699 = vlaneseq
    %v2700 = vshrl.u32 %v2699, 7
    %v2701 = vsub.s32 %v2698, %v2700
    %v2702 = vrot.slane %v2584, %v2701
    %2703 = vrot.lane.b32.xlu0 %v2702, 32
    %v2704 = vpop.permute.xlu0 %2703
    %v2705 = vsel %vm407, %v2704, 0
    %2707 = vmatprep.subr.mxu0 0.0
    %2708 = vmatpush1.msra.mxu0 %v2487
    %2709 = vmatprep.subr.mxu0 0.0
    %2710 = vmatpush1.msra.mxu0 %v2488
    %2711 = vmatprep.subr.mxu0 0.0
    %2712 = vmatpush1.msra.mxu0 %v2489
    %2713 = vmatprep.subr.mxu0 0.0
    %2714 = vmatpush1.msra.mxu0 %v2490
    %2715 = vmatprep.subr.mxu0 0.0
    %2716 = vmatpush1.msra.mxu0 0.0
    %2717 = vmatprep.subr.mxu0 0.0
    %2718 = vmatpush1.msra.mxu0 0.0
    %2719 = vmatprep.subr.mxu0 0.0
    %2720 = vmatpush1.msra.mxu0 0.0
    %2721 = vmatprep.subr.mxu0 0.0
    %2722 = vmatpush1.msra.mxu0 0.0
    %2723 = vmatprep.subr.mxu0 0.0
    %2724 = vmatpush1.msra.mxu0 0.0
    %2725 = vmatprep.subr.mxu0 0.0
    %2726 = vmatpush1.msra.mxu0 0.0
    %2727 = vmatprep.subr.mxu0 0.0
    %2728 = vmatpush1.msra.mxu0 0.0
    %2729 = vmatprep.subr.mxu0 0.0
    %2730 = vmatpush1.msra.mxu0 0.0
    %2731 = vmatprep.subr.mxu0 0.0
    %2732 = vmatpush1.msra.mxu0 0.0
    %2733 = vmatprep.subr.mxu0 0.0
    %2734 = vmatpush1.msra.mxu0 0.0
    %2735 = vmatprep.subr.mxu0 0.0
    %2736 = vmatpush1.msra.mxu0 0.0
    %2737 = vmatprep.subr.mxu0 0.0
    %2738 = vmatpush1.msra.mxu0 0.0
    %2739 = vmatprep.subr.mxu0 0.0
    %2740 = vmatpush1.msra.mxu0 0.0
    %2741 = vmatprep.subr.mxu0 0.0
    %2742 = vmatpush1.msra.mxu0 0.0
    %2743 = vmatprep.subr.mxu0 0.0
    %2744 = vmatpush1.msra.mxu0 0.0
    %2745 = vmatprep.subr.mxu0 0.0
    %2746 = vmatpush1.msra.mxu0 0.0
    %2747 = vmatprep.subr.mxu0 0.0
    %2748 = vmatpush1.msra.mxu0 0.0
    %2749 = vmatprep.subr.mxu0 0.0
    %2750 = vmatpush1.msra.mxu0 0.0
    %2751 = vmatprep.subr.mxu0 0.0
    %2752 = vmatpush1.msra.mxu0 0.0
    %2753 = vmatprep.subr.mxu0 0.0
    %2754 = vmatpush1.msra.mxu0 0.0
    %2755 = vmatprep.subr.mxu0 0.0
    %2756 = vmatpush1.msra.mxu0 0.0
    %2757 = vmatprep.subr.mxu0 0.0
    %2758 = vmatpush1.msra.mxu0 0.0
    %2759 = vmatprep.subr.mxu0 0.0
    %2760 = vmatpush1.msra.mxu0 0.0
    %2761 = vmatprep.subr.mxu0 0.0
    %2762 = vmatpush1.msra.mxu0 0.0
    %2763 = vmatprep.subr.mxu0 0.0
    %2764 = vmatpush1.msra.mxu0 0.0
    %2765 = vmatprep.subr.mxu0 0.0
    %2766 = vmatpush1.msra.mxu0 0.0
    %2767 = vmatprep.subr.mxu0 0.0
    %2768 = vmatpush1.msra.mxu0 0.0
    %2769 = vmatprep.subr.mxu0 0.0
    %2770 = vmatpush1.msra.mxu0 0.0
    %2771 = vmatprep.mubr.f32.mxu0 0.0
    %2772 = vmatmul.mubr.f32.gmra.mrb[0].mxu0 %v2705
    %v2773 = vpop.f32.mrb[0].mxu0
    %v2774 = vadd.f32 0.0, %v2773
    %v2775 = vpop.f32.mrb[0].mxu0
    %2776 = vdwg.mxu0
    %v2777 = vrot.slane %v2380, 2
    %v2779 = vadd.f32 %v2777, %v2774
    %v2780 = vmul.f32 %v2779, %v205
    %v2781 = vtanh.pop %v2780
    %v2782 = vmul.f32 %v2781, %v205
    %v2783 = vadd.f32 %v2782, %v206
    %v2784 = vmul.f32 %v2783, %v2578
    %2786 = vrot.lane.b32.xlu0 %v2783, 64
    %v2787 = vpop.permute.xlu0 %2786
    %v2789 = vmul.f32 %v2783, %v2787
    %2791 = vrot.lane.b32.xlu0 %v2789, 32
    %v2792 = vpop.permute.xlu0 %2791
    %v2794 = vadd.f32 %v2784, %v2792
    %v2795 = vtanh.pop %v2794
    %2797 = vrot.lane.b32.xlu0 %v2795, 64
    %v2798 = vpop.permute.xlu0 %2797
    %v2800 = vmul.f32 %v2783, %v2798
    %v2801 = vadd.f32 %v2585, %v2694
    %v2802 = vmul.f32 %v2694, %v2694
    %v2803 = vadd.f32 %v2587, %v2802
    %v2804 = vadd.f32 %v2588, %v2800
    %v2805 = vmul.f32 %v2800, %v2800
    %v2806 = vadd.f32 %v2590, %v2805
    %v2809 = vunpack.c.l.s4 1983009808
    %v2810 = vunpack.c.0.s8 %v2809
    %v2811 = vlaneseq
    %v2812 = vshrl.u32 %v2811, 7
    %v2813 = vsub.s32 %v2810, %v2812
    %v2814 = vrot.slane %v2694, %v2813
    %2815 = vrot.lane.b32.xlu0 %v2814, 32
    %v2816 = vpop.permute.xlu0 %2815
    %v2817 = vsel %vm407, %v2816, 0
    %2819 = vmatprep.subr.mxu0 0.0
    %2820 = vmatpush1.msra.mxu0 %v2391
    %2821 = vmatprep.subr.mxu0 0.0
    %2822 = vmatpush1.msra.mxu0 %v2392
    %2823 = vmatprep.subr.mxu0 0.0
    %2824 = vmatpush1.msra.mxu0 %v2393
    %2825 = vmatprep.subr.mxu0 0.0
    %2826 = vmatpush1.msra.mxu0 %v2394
    %2827 = vmatprep.subr.mxu0 0.0
    %2828 = vmatpush1.msra.mxu0 0.0
    %2829 = vmatprep.subr.mxu0 0.0
    %2830 = vmatpush1.msra.mxu0 0.0
    %2831 = vmatprep.subr.mxu0 0.0
    %2832 = vmatpush1.msra.mxu0 0.0
    %2833 = vmatprep.subr.mxu0 0.0
    %2834 = vmatpush1.msra.mxu0 0.0
    %2835 = vmatprep.subr.mxu0 0.0
    %2836 = vmatpush1.msra.mxu0 0.0
    %2837 = vmatprep.subr.mxu0 0.0
    %2838 = vmatpush1.msra.mxu0 0.0
    %2839 = vmatprep.subr.mxu0 0.0
    %2840 = vmatpush1.msra.mxu0 0.0
    %2841 = vmatprep.subr.mxu0 0.0
    %2842 = vmatpush1.msra.mxu0 0.0
    %2843 = vmatprep.subr.mxu0 0.0
    %2844 = vmatpush1.msra.mxu0 0.0
    %2845 = vmatprep.subr.mxu0 0.0
    %2846 = vmatpush1.msra.mxu0 0.0
    %2847 = vmatprep.subr.mxu0 0.0
    %2848 = vmatpush1.msra.mxu0 0.0
    %2849 = vmatprep.subr.mxu0 0.0
    %2850 = vmatpush1.msra.mxu0 0.0
    %2851 = vmatprep.subr.mxu0 0.0
    %2852 = vmatpush1.msra.mxu0 0.0
    %2853 = vmatprep.subr.mxu0 0.0
    %2854 = vmatpush1.msra.mxu0 0.0
    %2855 = vmatprep.subr.mxu0 0.0
    %2856 = vmatpush1.msra.mxu0 0.0
    %2857 = vmatprep.subr.mxu0 0.0
    %2858 = vmatpush1.msra.mxu0 0.0
    %2859 = vmatprep.subr.mxu0 0.0
    %2860 = vmatpush1.msra.mxu0 0.0
    %2861 = vmatprep.subr.mxu0 0.0
    %2862 = vmatpush1.msra.mxu0 0.0
    %2863 = vmatprep.subr.mxu0 0.0
    %2864 = vmatpush1.msra.mxu0 0.0
    %2865 = vmatprep.subr.mxu0 0.0
    %2866 = vmatpush1.msra.mxu0 0.0
    %2867 = vmatprep.subr.mxu0 0.0
    %2868 = vmatpush1.msra.mxu0 0.0
    %2869 = vmatprep.subr.mxu0 0.0
    %2870 = vmatpush1.msra.mxu0 0.0
    %2871 = vmatprep.subr.mxu0 0.0
    %2872 = vmatpush1.msra.mxu0 0.0
    %2873 = vmatprep.subr.mxu0 0.0
    %2874 = vmatpush1.msra.mxu0 0.0
    %2875 = vmatprep.subr.mxu0 0.0
    %2876 = vmatpush1.msra.mxu0 0.0
    %2877 = vmatprep.subr.mxu0 0.0
    %2878 = vmatpush1.msra.mxu0 0.0
    %2879 = vmatprep.subr.mxu0 0.0
    %2880 = vmatpush1.msra.mxu0 0.0
    %2881 = vmatprep.subr.mxu0 0.0
    %2882 = vmatpush1.msra.mxu0 0.0
    %2883 = vmatprep.mubr.f32.mxu0 0.0
    %2884 = vmatmul.mubr.f32.gmra.mrb[0].mxu0 %v2817
    %v2885 = vpop.f32.mrb[0].mxu0
    %v2886 = vadd.f32 0.0, %v2885
    %v2887 = vpop.f32.mrb[0].mxu0
    %2888 = vdwg.mxu0
    %v2889 = vadd.f32 %v2362, %v2886
    %v2890 = vmul.f32 %v2889, %v205
    %v2891 = vtanh.pop %v2890
    %v2892 = vmul.f32 %v2891, %v205
    %v2893 = vadd.f32 %v2892, %v206
    %v2894 = vmul.f32 %v2893, %v2688
    %2896 = vrot.lane.b32.xlu0 %v2893, 64
    %v2897 = vpop.permute.xlu0 %2896
    %v2899 = vmul.f32 %v2893, %v2897
    %2901 = vrot.lane.b32.xlu0 %v2899, 32
    %v2902 = vpop.permute.xlu0 %2901
    %v2904 = vadd.f32 %v2894, %v2902
    %v2905 = vtanh.pop %v2904
    %2907 = vrot.lane.b32.xlu0 %v2905, 64
    %v2908 = vpop.permute.xlu0 %2907
    %v2910 = vmul.f32 %v2893, %v2908
    %v2913 = vunpack.c.l.s4 1983009808
    %v2914 = vunpack.c.0.s8 %v2913
    %v2915 = vlaneseq
    %v2916 = vshrl.u32 %v2915, 7
    %v2917 = vsub.s32 %v2914, %v2916
    %v2918 = vrot.slane %v2800, %v2917
    %2919 = vrot.lane.b32.xlu0 %v2918, 32
    %v2920 = vpop.permute.xlu0 %2919
    %v2921 = vsel %vm407, %v2920, 0
    %2923 = vmatprep.subr.mxu0 0.0
    %2924 = vmatpush1.msra.mxu0 %v2487
    %2925 = vmatprep.subr.mxu0 0.0
    %2926 = vmatpush1.msra.mxu0 %v2488
    %2927 = vmatprep.subr.mxu0 0.0
    %2928 = vmatpush1.msra.mxu0 %v2489
    %2929 = vmatprep.subr.mxu0 0.0
    %2930 = vmatpush1.msra.mxu0 %v2490
    %2931 = vmatprep.subr.mxu0 0.0
    %2932 = vmatpush1.msra.mxu0 0.0
    %2933 = vmatprep.subr.mxu0 0.0
    %2934 = vmatpush1.msra.mxu0 0.0
    %2935 = vmatprep.subr.mxu0 0.0
    %2936 = vmatpush1.msra.mxu0 0.0
    %2937 = vmatprep.subr.mxu0 0.0
    %2938 = vmatpush1.msra.mxu0 0.0
    %2939 = vmatprep.subr.mxu0 0.0
    %2940 = vmatpush1.msra.mxu0 0.0
    %2941 = vmatprep.subr.mxu0 0.0
    %2942 = vmatpush1.msra.mxu0 0.0
    %2943 = vmatprep.subr.mxu0 0.0
    %2944 = vmatpush1.msra.mxu0 0.0
    %2945 = vmatprep.subr.mxu0 0.0
    %2946 = vmatpush1.msra.mxu0 0.0
    %2947 = vmatprep.subr.mxu0 0.0
    %2948 = vmatpush1.msra.mxu0 0.0
    %2949 = vmatprep.subr.mxu0 0.0
    %2950 = vmatpush1.msra.mxu0 0.0
    %2951 = vmatprep.subr.mxu0 0.0
    %2952 = vmatpush1.msra.mxu0 0.0
    %2953 = vmatprep.subr.mxu0 0.0
    %2954 = vmatpush1.msra.mxu0 0.0
    %2955 = vmatprep.subr.mxu0 0.0
    %2956 = vmatpush1.msra.mxu0 0.0
    %2957 = vmatprep.subr.mxu0 0.0
    %2958 = vmatpush1.msra.mxu0 0.0
    %2959 = vmatprep.subr.mxu0 0.0
    %2960 = vmatpush1.msra.mxu0 0.0
    %2961 = vmatprep.subr.mxu0 0.0
    %2962 = vmatpush1.msra.mxu0 0.0
    %2963 = vmatprep.subr.mxu0 0.0
    %2964 = vmatpush1.msra.mxu0 0.0
    %2965 = vmatprep.subr.mxu0 0.0
    %2966 = vmatpush1.msra.mxu0 0.0
    %2967 = vmatprep.subr.mxu0 0.0
    %2968 = vmatpush1.msra.mxu0 0.0
    %2969 = vmatprep.subr.mxu0 0.0
    %2970 = vmatpush1.msra.mxu0 0.0
    %2971 = vmatprep.subr.mxu0 0.0
    %2972 = vmatpush1.msra.mxu0 0.0
    %2973 = vmatprep.subr.mxu0 0.0
    %2974 = vmatpush1.msra.mxu0 0.0
    %2975 = vmatprep.subr.mxu0 0.0
    %2976 = vmatpush1.msra.mxu0 0.0
    %2977 = vmatprep.subr.mxu0 0.0
    %2978 = vmatpush1.msra.mxu0 0.0
    %2979 = vmatprep.subr.mxu0 0.0
    %2980 = vmatpush1.msra.mxu0 0.0
    %2981 = vmatprep.subr.mxu0 0.0
    %2982 = vmatpush1.msra.mxu0 0.0
    %2983 = vmatprep.subr.mxu0 0.0
    %2984 = vmatpush1.msra.mxu0 0.0
    %2985 = vmatprep.subr.mxu0 0.0
    %2986 = vmatpush1.msra.mxu0 0.0
    %2987 = vmatprep.mubr.f32.mxu0 0.0
    %2988 = vmatmul.mubr.f32.gmra.mrb[0].mxu0 %v2921
    %v2989 = vpop.f32.mrb[0].mxu0
    %v2990 = vadd.f32 0.0, %v2989
    %v2991 = vpop.f32.mrb[0].mxu0
    %2992 = vdwg.mxu0
    %v2993 = vrot.slane %v2381, 2
    %v2995 = vadd.f32 %v2993, %v2990
    %v2996 = vmul.f32 %v2995, %v205
    %v2997 = vtanh.pop %v2996
    %v2998 = vmul.f32 %v2997, %v205
    %v2999 = vadd.f32 %v2998, %v206
    %v3000 = vmul.f32 %v2999, %v2794
    %3002 = vrot.lane.b32.xlu0 %v2999, 64
    %v3003 = vpop.permute.xlu0 %3002
    %v3005 = vmul.f32 %v2999, %v3003
    %3007 = vrot.lane.b32.xlu0 %v3005, 32
    %v3008 = vpop.permute.xlu0 %3007
    %v3010 = vadd.f32 %v3000, %v3008
    %v3011 = vtanh.pop %v3010
    %3013 = vrot.lane.b32.xlu0 %v3011, 64
    %v3014 = vpop.permute.xlu0 %3013
    %v3016 = vmul.f32 %v2999, %v3014
    %v3017 = vadd.f32 %v2801, %v2910
    %v3018 = vmul.f32 %v2910, %v2910
    %v3019 = vadd.f32 %v2803, %v3018
    %v3020 = vadd.f32 %v2804, %v3016
    %v3021 = vmul.f32 %v3016, %v3016
    %v3022 = vadd.f32 %v2806, %v3021
    %v3025 = vunpack.c.l.s4 1983009808
    %v3026 = vunpack.c.0.s8 %v3025
    %v3027 = vlaneseq
    %v3028 = vshrl.u32 %v3027, 7
    %v3029 = vsub.s32 %v3026, %v3028
    %v3030 = vrot.slane %v2910, %v3029
    %3031 = vrot.lane.b32.xlu0 %v3030, 32
    %v3032 = vpop.permute.xlu0 %3031
    %v3033 = vsel %vm407, %v3032, 0
    %3035 = vmatprep.subr.mxu0 0.0
    %3036 = vmatpush1.msra.mxu0 %v2391
    %3037 = vmatprep.subr.mxu0 0.0
    %3038 = vmatpush1.msra.mxu0 %v2392
    %3039 = vmatprep.subr.mxu0 0.0
    %3040 = vmatpush1.msra.mxu0 %v2393
    %3041 = vmatprep.subr.mxu0 0.0
    %3042 = vmatpush1.msra.mxu0 %v2394
    %3043 = vmatprep.subr.mxu0 0.0
    %3044 = vmatpush1.msra.mxu0 0.0
    %3045 = vmatprep.subr.mxu0 0.0
    %3046 = vmatpush1.msra.mxu0 0.0
    %3047 = vmatprep.subr.mxu0 0.0
    %3048 = vmatpush1.msra.mxu0 0.0
    %3049 = vmatprep.subr.mxu0 0.0
    %3050 = vmatpush1.msra.mxu0 0.0
    %3051 = vmatprep.subr.mxu0 0.0
    %3052 = vmatpush1.msra.mxu0 0.0
    %3053 = vmatprep.subr.mxu0 0.0
    %3054 = vmatpush1.msra.mxu0 0.0
    %3055 = vmatprep.subr.mxu0 0.0
    %3056 = vmatpush1.msra.mxu0 0.0
    %3057 = vmatprep.subr.mxu0 0.0
    %3058 = vmatpush1.msra.mxu0 0.0
    %3059 = vmatprep.subr.mxu0 0.0
    %3060 = vmatpush1.msra.mxu0 0.0
    %3061 = vmatprep.subr.mxu0 0.0
    %3062 = vmatpush1.msra.mxu0 0.0
    %3063 = vmatprep.subr.mxu0 0.0
    %3064 = vmatpush1.msra.mxu0 0.0
    %3065 = vmatprep.subr.mxu0 0.0
    %3066 = vmatpush1.msra.mxu0 0.0
    %3067 = vmatprep.subr.mxu0 0.0
    %3068 = vmatpush1.msra.mxu0 0.0
    %3069 = vmatprep.subr.mxu0 0.0
    %3070 = vmatpush1.msra.mxu0 0.0
    %3071 = vmatprep.subr.mxu0 0.0
    %3072 = vmatpush1.msra.mxu0 0.0
    %3073 = vmatprep.subr.mxu0 0.0
    %3074 = vmatpush1.msra.mxu0 0.0
    %3075 = vmatprep.subr.mxu0 0.0
    %3076 = vmatpush1.msra.mxu0 0.0
    %3077 = vmatprep.subr.mxu0 0.0
    %3078 = vmatpush1.msra.mxu0 0.0
    %3079 = vmatprep.subr.mxu0 0.0
    %3080 = vmatpush1.msra.mxu0 0.0
    %3081 = vmatprep.subr.mxu0 0.0
    %3082 = vmatpush1.msra.mxu0 0.0
    %3083 = vmatprep.subr.mxu0 0.0
    %3084 = vmatpush1.msra.mxu0 0.0
    %3085 = vmatprep.subr.mxu0 0.0
    %3086 = vmatpush1.msra.mxu0 0.0
    %3087 = vmatprep.subr.mxu0 0.0
    %3088 = vmatpush1.msra.mxu0 0.0
    %3089 = vmatprep.subr.mxu0 0.0
    %3090 = vmatpush1.msra.mxu0 0.0
    %3091 = vmatprep.subr.mxu0 0.0
    %3092 = vmatpush1.msra.mxu0 0.0
    %3093 = vmatprep.subr.mxu0 0.0
    %3094 = vmatpush1.msra.mxu0 0.0
    %3095 = vmatprep.subr.mxu0 0.0
    %3096 = vmatpush1.msra.mxu0 0.0
    %3097 = vmatprep.subr.mxu0 0.0
    %3098 = vmatpush1.msra.mxu0 0.0
    %3099 = vmatprep.mubr.f32.mxu0 0.0
    %3100 = vmatmul.mubr.f32.gmra.mrb[0].mxu0 %v3033
    %v3101 = vpop.f32.mrb[0].mxu0
    %v3102 = vadd.f32 0.0, %v3101
    %v3103 = vpop.f32.mrb[0].mxu0
    %3104 = vdwg.mxu0
    %v3105 = vadd.f32 %v2364, %v3102
    %v3106 = vmul.f32 %v3105, %v205
    %v3107 = vtanh.pop %v3106
    %v3108 = vmul.f32 %v3107, %v205
    %v3109 = vadd.f32 %v3108, %v206
    %v3110 = vmul.f32 %v3109, %v2904
    %3112 = vrot.lane.b32.xlu0 %v3109, 64
    %v3113 = vpop.permute.xlu0 %3112
    %v3115 = vmul.f32 %v3109, %v3113
    %3117 = vrot.lane.b32.xlu0 %v3115, 32
    %v3118 = vpop.permute.xlu0 %3117
    %v3120 = vadd.f32 %v3110, %v3118
    %v3121 = vtanh.pop %v3120
    %3123 = vrot.lane.b32.xlu0 %v3121, 64
    %v3124 = vpop.permute.xlu0 %3123
    %v3126 = vmul.f32 %v3109, %v3124
    %v3129 = vunpack.c.l.s4 1983009808
    %v3130 = vunpack.c.0.s8 %v3129
    %v3131 = vlaneseq
    %v3132 = vshrl.u32 %v3131, 7
    %v3133 = vsub.s32 %v3130, %v3132
    %v3134 = vrot.slane %v3016, %v3133
    %3135 = vrot.lane.b32.xlu0 %v3134, 32
    %v3136 = vpop.permute.xlu0 %3135
    %v3137 = vsel %vm407, %v3136, 0
    %3139 = vmatprep.subr.mxu0 0.0
    %3140 = vmatpush1.msra.mxu0 %v2487
    %3141 = vmatprep.subr.mxu0 0.0
    %3142 = vmatpush1.msra.mxu0 %v2488
    %3143 = vmatprep.subr.mxu0 0.0
    %3144 = vmatpush1.msra.mxu0 %v2489
    %3145 = vmatprep.subr.mxu0 0.0
    %3146 = vmatpush1.msra.mxu0 %v2490
    %3147 = vmatprep.subr.mxu0 0.0
    %3148 = vmatpush1.msra.mxu0 0.0
    %3149 = vmatprep.subr.mxu0 0.0
    %3150 = vmatpush1.msra.mxu0 0.0
    %3151 = vmatprep.subr.mxu0 0.0
    %3152 = vmatpush1.msra.mxu0 0.0
    %3153 = vmatprep.subr.mxu0 0.0
    %3154 = vmatpush1.msra.mxu0 0.0
    %3155 = vmatprep.subr.mxu0 0.0
    %3156 = vmatpush1.msra.mxu0 0.0
    %3157 = vmatprep.subr.mxu0 0.0
    %3158 = vmatpush1.msra.mxu0 0.0
    %3159 = vmatprep.subr.mxu0 0.0
    %3160 = vmatpush1.msra.mxu0 0.0
    %3161 = vmatprep.subr.mxu0 0.0
    %3162 = vmatpush1.msra.mxu0 0.0
    %3163 = vmatprep.subr.mxu0 0.0
    %3164 = vmatpush1.msra.mxu0 0.0
    %3165 = vmatprep.subr.mxu0 0.0
    %3166 = vmatpush1.msra.mxu0 0.0
    %3167 = vmatprep.subr.mxu0 0.0
    %3168 = vmatpush1.msra.mxu0 0.0
    %3169 = vmatprep.subr.mxu0 0.0
    %3170 = vmatpush1.msra.mxu0 0.0
    %3171 = vmatprep.subr.mxu0 0.0
    %3172 = vmatpush1.msra.mxu0 0.0
    %3173 = vmatprep.subr.mxu0 0.0
    %3174 = vmatpush1.msra.mxu0 0.0
    %3175 = vmatprep.subr.mxu0 0.0
    %3176 = vmatpush1.msra.mxu0 0.0
    %3177 = vmatprep.subr.mxu0 0.0
    %3178 = vmatpush1.msra.mxu0 0.0
    %3179 = vmatprep.subr.mxu0 0.0
    %3180 = vmatpush1.msra.mxu0 0.0
    %3181 = vmatprep.subr.mxu0 0.0
    %3182 = vmatpush1.msra.mxu0 0.0
    %3183 = vmatprep.subr.mxu0 0.0
    %3184 = vmatpush1.msra.mxu0 0.0
    %3185 = vmatprep.subr.mxu0 0.0
    %3186 = vmatpush1.msra.mxu0 0.0
    %3187 = vmatprep.subr.mxu0 0.0
    %3188 = vmatpush1.msra.mxu0 0.0
    %3189 = vmatprep.subr.mxu0 0.0
    %3190 = vmatpush1.msra.mxu0 0.0
    %3191 = vmatprep.subr.mxu0 0.0
    %3192 = vmatpush1.msra.mxu0 0.0
    %3193 = vmatprep.subr.mxu0 0.0
    %3194 = vmatpush1.msra.mxu0 0.0
    %3195 = vmatprep.subr.mxu0 0.0
    %3196 = vmatpush1.msra.mxu0 0.0
    %3197 = vmatprep.subr.mxu0 0.0
    %3198 = vmatpush1.msra.mxu0 0.0
    %3199 = vmatprep.subr.mxu0 0.0
    %3200 = vmatpush1.msra.mxu0 0.0
    %3201 = vmatprep.subr.mxu0 0.0
    %3202 = vmatpush1.msra.mxu0 0.0
    %3203 = vmatprep.mubr.f32.mxu0 0.0
    %3204 = vmatmul.mubr.f32.gmra.mrb[0].mxu0 %v3137
    %v3205 = vpop.f32.mrb[0].mxu0
    %v3206 = vadd.f32 0.0, %v3205
    %v3207 = vpop.f32.mrb[0].mxu0
    %3208 = vdwg.mxu0
    %v3209 = vrot.slane %v2373, 2
    %v3211 = vadd.f32 %v3209, %v3206
    %v3212 = vmul.f32 %v3211, %v205
    %v3213 = vtanh.pop %v3212
    %v3214 = vmul.f32 %v3213, %v205
    %v3215 = vadd.f32 %v3214, %v206
    %v3216 = vmul.f32 %v3215, %v3010
    %3218 = vrot.lane.b32.xlu0 %v3215, 64
    %v3219 = vpop.permute.xlu0 %3218
    %v3221 = vmul.f32 %v3215, %v3219
    %3223 = vrot.lane.b32.xlu0 %v3221, 32
    %v3224 = vpop.permute.xlu0 %3223
    %v3226 = vadd.f32 %v3216, %v3224
    %v3227 = vtanh.pop %v3226
    %3229 = vrot.lane.b32.xlu0 %v3227, 64
    %v3230 = vpop.permute.xlu0 %3229
    %v3232 = vmul.f32 %v3215, %v3230
    %v3233 = vadd.f32 %v3017, %v3126
    %v3234 = vmul.f32 %v3126, %v3126
    %v3235 = vadd.f32 %v3019, %v3234
    %v3236 = vadd.f32 %v3020, %v3232
    %v3237 = vmul.f32 %v3232, %v3232
    %v3238 = vadd.f32 %v3022, %v3237
    %v3241 = vunpack.c.l.s4 1983009808
    %v3242 = vunpack.c.0.s8 %v3241
    %v3243 = vlaneseq
    %v3244 = vshrl.u32 %v3243, 7
    %v3245 = vsub.s32 %v3242, %v3244
    %v3246 = vrot.slane %v3126, %v3245
    %3247 = vrot.lane.b32.xlu0 %v3246, 32
    %v3248 = vpop.permute.xlu0 %3247
    %v3249 = vsel %vm407, %v3248, 0
    %3251 = vmatprep.subr.mxu0 0.0
    %3252 = vmatpush1.msra.mxu0 %v2391
    %3253 = vmatprep.subr.mxu0 0.0
    %3254 = vmatpush1.msra.mxu0 %v2392
    %3255 = vmatprep.subr.mxu0 0.0
    %3256 = vmatpush1.msra.mxu0 %v2393
    %3257 = vmatprep.subr.mxu0 0.0
    %3258 = vmatpush1.msra.mxu0 %v2394
    %3259 = vmatprep.subr.mxu0 0.0
    %3260 = vmatpush1.msra.mxu0 0.0
    %3261 = vmatprep.subr.mxu0 0.0
    %3262 = vmatpush1.msra.mxu0 0.0
    %3263 = vmatprep.subr.mxu0 0.0
    %3264 = vmatpush1.msra.mxu0 0.0
    %3265 = vmatprep.subr.mxu0 0.0
    %3266 = vmatpush1.msra.mxu0 0.0
    %3267 = vmatprep.subr.mxu0 0.0
    %3268 = vmatpush1.msra.mxu0 0.0
    %3269 = vmatprep.subr.mxu0 0.0
    %3270 = vmatpush1.msra.mxu0 0.0
    %3271 = vmatprep.subr.mxu0 0.0
    %3272 = vmatpush1.msra.mxu0 0.0
    %3273 = vmatprep.subr.mxu0 0.0
    %3274 = vmatpush1.msra.mxu0 0.0
    %3275 = vmatprep.subr.mxu0 0.0
    %3276 = vmatpush1.msra.mxu0 0.0
    %3277 = vmatprep.subr.mxu0 0.0
    %3278 = vmatpush1.msra.mxu0 0.0
    %3279 = vmatprep.subr.mxu0 0.0
    %3280 = vmatpush1.msra.mxu0 0.0
    %3281 = vmatprep.subr.mxu0 0.0
    %3282 = vmatpush1.msra.mxu0 0.0
    %3283 = vmatprep.subr.mxu0 0.0
    %3284 = vmatpush1.msra.mxu0 0.0
    %3285 = vmatprep.subr.mxu0 0.0
    %3286 = vmatpush1.msra.mxu0 0.0
    %3287 = vmatprep.subr.mxu0 0.0
    %3288 = vmatpush1.msra.mxu0 0.0
    %3289 = vmatprep.subr.mxu0 0.0
    %3290 = vmatpush1.msra.mxu0 0.0
    %3291 = vmatprep.subr.mxu0 0.0
    %3292 = vmatpush1.msra.mxu0 0.0
    %3293 = vmatprep.subr.mxu0 0.0
    %3294 = vmatpush1.msra.mxu0 0.0
    %3295 = vmatprep.subr.mxu0 0.0
    %3296 = vmatpush1.msra.mxu0 0.0
    %3297 = vmatprep.subr.mxu0 0.0
    %3298 = vmatpush1.msra.mxu0 0.0
    %3299 = vmatprep.subr.mxu0 0.0
    %3300 = vmatpush1.msra.mxu0 0.0
    %3301 = vmatprep.subr.mxu0 0.0
    %3302 = vmatpush1.msra.mxu0 0.0
    %3303 = vmatprep.subr.mxu0 0.0
    %3304 = vmatpush1.msra.mxu0 0.0
    %3305 = vmatprep.subr.mxu0 0.0
    %3306 = vmatpush1.msra.mxu0 0.0
    %3307 = vmatprep.subr.mxu0 0.0
    %3308 = vmatpush1.msra.mxu0 0.0
    %3309 = vmatprep.subr.mxu0 0.0
    %3310 = vmatpush1.msra.mxu0 0.0
    %3311 = vmatprep.subr.mxu0 0.0
    %3312 = vmatpush1.msra.mxu0 0.0
    %3313 = vmatprep.subr.mxu0 0.0
    %3314 = vmatpush1.msra.mxu0 0.0
    %3315 = vmatprep.mubr.f32.mxu0 0.0
    %3316 = vmatmul.mubr.f32.gmra.mrb[0].mxu0 %v3249
    %v3317 = vpop.f32.mrb[0].mxu0
    %v3318 = vadd.f32 0.0, %v3317
    %v3319 = vpop.f32.mrb[0].mxu0
    %3320 = vdwg.mxu0
    %v3321 = vadd.f32 %v2373, %v3318
    %v3322 = vmul.f32 %v3321, %v205
    %v3323 = vtanh.pop %v3322
    %v3324 = vmul.f32 %v3323, %v205
    %v3325 = vadd.f32 %v3324, %v206
    %v3326 = vmul.f32 %v3325, %v3120
    %3328 = vrot.lane.b32.xlu0 %v3325, 64
    %v3329 = vpop.permute.xlu0 %3328
    %v3331 = vmul.f32 %v3325, %v3329
    %3333 = vrot.lane.b32.xlu0 %v3331, 32
    %v3334 = vpop.permute.xlu0 %3333
    %v3336 = vadd.f32 %v3326, %v3334
    %v3337 = vtanh.pop %v3336
    %3339 = vrot.lane.b32.xlu0 %v3337, 64
    %v3340 = vpop.permute.xlu0 %3339
    %v3342 = vmul.f32 %v3325, %v3340
    %v3345 = vunpack.c.l.s4 1983009808
    %v3346 = vunpack.c.0.s8 %v3345
    %v3347 = vlaneseq
    %v3348 = vshrl.u32 %v3347, 7
    %v3349 = vsub.s32 %v3346, %v3348
    %v3350 = vrot.slane %v3232, %v3349
    %3351 = vrot.lane.b32.xlu0 %v3350, 32
    %v3352 = vpop.permute.xlu0 %3351
    %v3353 = vsel %vm407, %v3352, 0
    %3355 = vmatprep.subr.mxu0 0.0
    %3356 = vmatpush1.msra.mxu0 %v2487
    %3357 = vmatprep.subr.mxu0 0.0
    %3358 = vmatpush1.msra.mxu0 %v2488
    %3359 = vmatprep.subr.mxu0 0.0
    %3360 = vmatpush1.msra.mxu0 %v2489
    %3361 = vmatprep.subr.mxu0 0.0
    %3362 = vmatpush1.msra.mxu0 %v2490
    %3363 = vmatprep.subr.mxu0 0.0
    %3364 = vmatpush1.msra.mxu0 0.0
    %3365 = vmatprep.subr.mxu0 0.0
    %3366 = vmatpush1.msra.mxu0 0.0
    %3367 = vmatprep.subr.mxu0 0.0
    %3368 = vmatpush1.msra.mxu0 0.0
    %3369 = vmatprep.subr.mxu0 0.0
    %3370 = vmatpush1.msra.mxu0 0.0
    %3371 = vmatprep.subr.mxu0 0.0
    %3372 = vmatpush1.msra.mxu0 0.0
    %3373 = vmatprep.subr.mxu0 0.0
    %3374 = vmatpush1.msra.mxu0 0.0
    %3375 = vmatprep.subr.mxu0 0.0
    %3376 = vmatpush1.msra.mxu0 0.0
    %3377 = vmatprep.subr.mxu0 0.0
    %3378 = vmatpush1.msra.mxu0 0.0
    %3379 = vmatprep.subr.mxu0 0.0
    %3380 = vmatpush1.msra.mxu0 0.0
    %3381 = vmatprep.subr.mxu0 0.0
    %3382 = vmatpush1.msra.mxu0 0.0
    %3383 = vmatprep.subr.mxu0 0.0
    %3384 = vmatpush1.msra.mxu0 0.0
    %3385 = vmatprep.subr.mxu0 0.0
    %3386 = vmatpush1.msra.mxu0 0.0
    %3387 = vmatprep.subr.mxu0 0.0
    %3388 = vmatpush1.msra.mxu0 0.0
    %3389 = vmatprep.subr.mxu0 0.0
    %3390 = vmatpush1.msra.mxu0 0.0
    %3391 = vmatprep.subr.mxu0 0.0
    %3392 = vmatpush1.msra.mxu0 0.0
    %3393 = vmatprep.subr.mxu0 0.0
    %3394 = vmatpush1.msra.mxu0 0.0
    %3395 = vmatprep.subr.mxu0 0.0
    %3396 = vmatpush1.msra.mxu0 0.0
    %3397 = vmatprep.subr.mxu0 0.0
    %3398 = vmatpush1.msra.mxu0 0.0
    %3399 = vmatprep.subr.mxu0 0.0
    %3400 = vmatpush1.msra.mxu0 0.0
    %3401 = vmatprep.subr.mxu0 0.0
    %3402 = vmatpush1.msra.mxu0 0.0
    %3403 = vmatprep.subr.mxu0 0.0
    %3404 = vmatpush1.msra.mxu0 0.0
    %3405 = vmatprep.subr.mxu0 0.0
    %3406 = vmatpush1.msra.mxu0 0.0
    %3407 = vmatprep.subr.mxu0 0.0
    %3408 = vmatpush1.msra.mxu0 0.0
    %3409 = vmatprep.subr.mxu0 0.0
    %3410 = vmatpush1.msra.mxu0 0.0
    %3411 = vmatprep.subr.mxu0 0.0
    %3412 = vmatpush1.msra.mxu0 0.0
    %3413 = vmatprep.subr.mxu0 0.0
    %3414 = vmatpush1.msra.mxu0 0.0
    %3415 = vmatprep.subr.mxu0 0.0
    %3416 = vmatpush1.msra.mxu0 0.0
    %3417 = vmatprep.subr.mxu0 0.0
    %3418 = vmatpush1.msra.mxu0 0.0
    %3419 = vmatprep.mubr.f32.mxu0 0.0
    %3420 = vmatmul.mubr.f32.gmra.mrb[0].mxu0 %v3353
    %v3421 = vpop.f32.mrb[0].mxu0
    %v3422 = vadd.f32 0.0, %v3421
    %v3423 = vpop.f32.mrb[0].mxu0
    %3424 = vdwg.mxu0
    %v3425 = vrot.slane %v2364, 2
    %v3427 = vadd.f32 %v3425, %v3422
    %v3428 = vmul.f32 %v3427, %v205
    %v3429 = vtanh.pop %v3428
    %v3430 = vmul.f32 %v3429, %v205
    %v3431 = vadd.f32 %v3430, %v206
    %v3432 = vmul.f32 %v3431, %v3226
    %3434 = vrot.lane.b32.xlu0 %v3431, 64
    %v3435 = vpop.permute.xlu0 %3434
    %v3437 = vmul.f32 %v3431, %v3435
    %3439 = vrot.lane.b32.xlu0 %v3437, 32
    %v3440 = vpop.permute.xlu0 %3439
    %v3442 = vadd.f32 %v3432, %v3440
    %v3443 = vtanh.pop %v3442
    %3445 = vrot.lane.b32.xlu0 %v3443, 64
    %v3446 = vpop.permute.xlu0 %3445
    %v3448 = vmul.f32 %v3431, %v3446
    %v3449 = vadd.f32 %v3233, %v3342
    %v3450 = vmul.f32 %v3342, %v3342
    %v3451 = vadd.f32 %v3235, %v3450
    %v3452 = vadd.f32 %v3236, %v3448
    %v3453 = vmul.f32 %v3448, %v3448
    %v3454 = vadd.f32 %v3238, %v3453
    %v3457 = vunpack.c.l.s4 1983009808
    %v3458 = vunpack.c.0.s8 %v3457
    %v3459 = vlaneseq
    %v3460 = vshrl.u32 %v3459, 7
    %v3461 = vsub.s32 %v3458, %v3460
    %v3462 = vrot.slane %v3342, %v3461
    %3463 = vrot.lane.b32.xlu0 %v3462, 32
    %v3464 = vpop.permute.xlu0 %3463
    %v3465 = vsel %vm407, %v3464, 0
    %3467 = vmatprep.subr.mxu0 0.0
    %3468 = vmatpush1.msra.mxu0 %v2391
    %3469 = vmatprep.subr.mxu0 0.0
    %3470 = vmatpush1.msra.mxu0 %v2392
    %3471 = vmatprep.subr.mxu0 0.0
    %3472 = vmatpush1.msra.mxu0 %v2393
    %3473 = vmatprep.subr.mxu0 0.0
    %3474 = vmatpush1.msra.mxu0 %v2394
    %3475 = vmatprep.subr.mxu0 0.0
    %3476 = vmatpush1.msra.mxu0 0.0
    %3477 = vmatprep.subr.mxu0 0.0
    %3478 = vmatpush1.msra.mxu0 0.0
    %3479 = vmatprep.subr.mxu0 0.0
    %3480 = vmatpush1.msra.mxu0 0.0
    %3481 = vmatprep.subr.mxu0 0.0
    %3482 = vmatpush1.msra.mxu0 0.0
    %3483 = vmatprep.subr.mxu0 0.0
    %3484 = vmatpush1.msra.mxu0 0.0
    %3485 = vmatprep.subr.mxu0 0.0
    %3486 = vmatpush1.msra.mxu0 0.0
    %3487 = vmatprep.subr.mxu0 0.0
    %3488 = vmatpush1.msra.mxu0 0.0
    %3489 = vmatprep.subr.mxu0 0.0
    %3490 = vmatpush1.msra.mxu0 0.0
    %3491 = vmatprep.subr.mxu0 0.0
    %3492 = vmatpush1.msra.mxu0 0.0
    %3493 = vmatprep.subr.mxu0 0.0
    %3494 = vmatpush1.msra.mxu0 0.0
    %3495 = vmatprep.subr.mxu0 0.0
    %3496 = vmatpush1.msra.mxu0 0.0
    %3497 = vmatprep.subr.mxu0 0.0
    %3498 = vmatpush1.msra.mxu0 0.0
    %3499 = vmatprep.subr.mxu0 0.0
    %3500 = vmatpush1.msra.mxu0 0.0
    %3501 = vmatprep.subr.mxu0 0.0
    %3502 = vmatpush1.msra.mxu0 0.0
    %3503 = vmatprep.subr.mxu0 0.0
    %3504 = vmatpush1.msra.mxu0 0.0
    %3505 = vmatprep.subr.mxu0 0.0
    %3506 = vmatpush1.msra.mxu0 0.0
    %3507 = vmatprep.subr.mxu0 0.0
    %3508 = vmatpush1.msra.mxu0 0.0
    %3509 = vmatprep.subr.mxu0 0.0
    %3510 = vmatpush1.msra.mxu0 0.0
    %3511 = vmatprep.subr.mxu0 0.0
    %3512 = vmatpush1.msra.mxu0 0.0
    %3513 = vmatprep.subr.mxu0 0.0
    %3514 = vmatpush1.msra.mxu0 0.0
    %3515 = vmatprep.subr.mxu0 0.0
    %3516 = vmatpush1.msra.mxu0 0.0
    %3517 = vmatprep.subr.mxu0 0.0
    %3518 = vmatpush1.msra.mxu0 0.0
    %3519 = vmatprep.subr.mxu0 0.0
    %3520 = vmatpush1.msra.mxu0 0.0
    %3521 = vmatprep.subr.mxu0 0.0
    %3522 = vmatpush1.msra.mxu0 0.0
    %3523 = vmatprep.subr.mxu0 0.0
    %3524 = vmatpush1.msra.mxu0 0.0
    %3525 = vmatprep.subr.mxu0 0.0
    %3526 = vmatpush1.msra.mxu0 0.0
    %3527 = vmatprep.subr.mxu0 0.0
    %3528 = vmatpush1.msra.mxu0 0.0
    %3529 = vmatprep.subr.mxu0 0.0
    %3530 = vmatpush1.msra.mxu0 0.0
    %3531 = vmatprep.mubr.f32.mxu0 0.0
    %3532 = vmatmul.mubr.f32.gmra.mrb[0].mxu0 %v3465
    %v3533 = vpop.f32.mrb[0].mxu0
    %v3534 = vadd.f32 0.0, %v3533
    %v3535 = vpop.f32.mrb[0].mxu0
    %3536 = vdwg.mxu0
    %v3537 = vadd.f32 %v2381, %v3534
    %v3538 = vmul.f32 %v3537, %v205
    %v3539 = vtanh.pop %v3538
    %v3540 = vmul.f32 %v3539, %v205
    %v3541 = vadd.f32 %v3540, %v206
    %v3542 = vmul.f32 %v3541, %v3336
    %3544 = vrot.lane.b32.xlu0 %v3541, 64
    %v3545 = vpop.permute.xlu0 %3544
    %v3547 = vmul.f32 %v3541, %v3545
    %3549 = vrot.lane.b32.xlu0 %v3547, 32
    %v3550 = vpop.permute.xlu0 %3549
    %v3552 = vadd.f32 %v3542, %v3550
    %v3553 = vtanh.pop %v3552
    %3555 = vrot.lane.b32.xlu0 %v3553, 64
    %v3556 = vpop.permute.xlu0 %3555
    %v3558 = vmul.f32 %v3541, %v3556
    %v3561 = vunpack.c.l.s4 1983009808
    %v3562 = vunpack.c.0.s8 %v3561
    %v3563 = vlaneseq
    %v3564 = vshrl.u32 %v3563, 7
    %v3565 = vsub.s32 %v3562, %v3564
    %v3566 = vrot.slane %v3448, %v3565
    %3567 = vrot.lane.b32.xlu0 %v3566, 32
    %v3568 = vpop.permute.xlu0 %3567
    %v3569 = vsel %vm407, %v3568, 0
    %3571 = vmatprep.subr.mxu0 0.0
    %3572 = vmatpush1.msra.mxu0 %v2487
    %3573 = vmatprep.subr.mxu0 0.0
    %3574 = vmatpush1.msra.mxu0 %v2488
    %3575 = vmatprep.subr.mxu0 0.0
    %3576 = vmatpush1.msra.mxu0 %v2489
    %3577 = vmatprep.subr.mxu0 0.0
    %3578 = vmatpush1.msra.mxu0 %v2490
    %3579 = vmatprep.subr.mxu0 0.0
    %3580 = vmatpush1.msra.mxu0 0.0
    %3581 = vmatprep.subr.mxu0 0.0
    %3582 = vmatpush1.msra.mxu0 0.0
    %3583 = vmatprep.subr.mxu0 0.0
    %3584 = vmatpush1.msra.mxu0 0.0
    %3585 = vmatprep.subr.mxu0 0.0
    %3586 = vmatpush1.msra.mxu0 0.0
    %3587 = vmatprep.subr.mxu0 0.0
    %3588 = vmatpush1.msra.mxu0 0.0
    %3589 = vmatprep.subr.mxu0 0.0
    %3590 = vmatpush1.msra.mxu0 0.0
    %3591 = vmatprep.subr.mxu0 0.0
    %3592 = vmatpush1.msra.mxu0 0.0
    %3593 = vmatprep.subr.mxu0 0.0
    %3594 = vmatpush1.msra.mxu0 0.0
    %3595 = vmatprep.subr.mxu0 0.0
    %3596 = vmatpush1.msra.mxu0 0.0
    %3597 = vmatprep.subr.mxu0 0.0
    %3598 = vmatpush1.msra.mxu0 0.0
    %3599 = vmatprep.subr.mxu0 0.0
    %3600 = vmatpush1.msra.mxu0 0.0
    %3601 = vmatprep.subr.mxu0 0.0
    %3602 = vmatpush1.msra.mxu0 0.0
    %3603 = vmatprep.subr.mxu0 0.0
    %3604 = vmatpush1.msra.mxu0 0.0
    %3605 = vmatprep.subr.mxu0 0.0
    %3606 = vmatpush1.msra.mxu0 0.0
    %3607 = vmatprep.subr.mxu0 0.0
    %3608 = vmatpush1.msra.mxu0 0.0
    %3609 = vmatprep.subr.mxu0 0.0
    %3610 = vmatpush1.msra.mxu0 0.0
    %3611 = vmatprep.subr.mxu0 0.0
    %3612 = vmatpush1.msra.mxu0 0.0
    %3613 = vmatprep.subr.mxu0 0.0
    %3614 = vmatpush1.msra.mxu0 0.0
    %3615 = vmatprep.subr.mxu0 0.0
    %3616 = vmatpush1.msra.mxu0 0.0
    %3617 = vmatprep.subr.mxu0 0.0
    %3618 = vmatpush1.msra.mxu0 0.0
    %3619 = vmatprep.subr.mxu0 0.0
    %3620 = vmatpush1.msra.mxu0 0.0
    %3621 = vmatprep.subr.mxu0 0.0
    %3622 = vmatpush1.msra.mxu0 0.0
    %3623 = vmatprep.subr.mxu0 0.0
    %3624 = vmatpush1.msra.mxu0 0.0
    %3625 = vmatprep.subr.mxu0 0.0
    %3626 = vmatpush1.msra.mxu0 0.0
    %3627 = vmatprep.subr.mxu0 0.0
    %3628 = vmatpush1.msra.mxu0 0.0
    %3629 = vmatprep.subr.mxu0 0.0
    %3630 = vmatpush1.msra.mxu0 0.0
    %3631 = vmatprep.subr.mxu0 0.0
    %3632 = vmatpush1.msra.mxu0 0.0
    %3633 = vmatprep.subr.mxu0 0.0
    %3634 = vmatpush1.msra.mxu0 0.0
    %3635 = vmatprep.mubr.f32.mxu0 0.0
    %3636 = vmatmul.mubr.f32.gmra.mrb[0].mxu0 %v3569
    %v3637 = vpop.f32.mrb[0].mxu0
    %v3638 = vadd.f32 0.0, %v3637
    %v3639 = vpop.f32.mrb[0].mxu0
    %3640 = vdwg.mxu0
    %v3641 = vrot.slane %v2362, 2
    %v3643 = vadd.f32 %v3641, %v3638
    %v3644 = vmul.f32 %v3643, %v205
    %v3645 = vtanh.pop %v3644
    %v3646 = vmul.f32 %v3645, %v205
    %v3647 = vadd.f32 %v3646, %v206
    %v3648 = vmul.f32 %v3647, %v3442
    %3650 = vrot.lane.b32.xlu0 %v3647, 64
    %v3651 = vpop.permute.xlu0 %3650
    %v3653 = vmul.f32 %v3647, %v3651
    %3655 = vrot.lane.b32.xlu0 %v3653, 32
    %v3656 = vpop.permute.xlu0 %3655
    %v3658 = vadd.f32 %v3648, %v3656
    %v3659 = vtanh.pop %v3658
    %3661 = vrot.lane.b32.xlu0 %v3659, 64
    %v3662 = vpop.permute.xlu0 %3661
    %v3664 = vmul.f32 %v3647, %v3662
    %v3665 = vadd.f32 %v3449, %v3558
    %v3666 = vmul.f32 %v3558, %v3558
    %v3667 = vadd.f32 %v3451, %v3666
    %v3668 = vadd.f32 %v3452, %v3664
    %v3669 = vmul.f32 %v3664, %v3664
    %v3670 = vadd.f32 %v3454, %v3669
    %v3673 = vunpack.c.l.s4 1983009808
    %v3674 = vunpack.c.0.s8 %v3673
    %v3675 = vlaneseq
    %v3676 = vshrl.u32 %v3675, 7
    %v3677 = vsub.s32 %v3674, %v3676
    %v3678 = vrot.slane %v3558, %v3677
    %3679 = vrot.lane.b32.xlu0 %v3678, 32
    %v3680 = vpop.permute.xlu0 %3679
    %v3681 = vsel %vm407, %v3680, 0
    %3683 = vmatprep.subr.mxu0 0.0
    %3684 = vmatpush1.msra.mxu0 %v2391
    %3685 = vmatprep.subr.mxu0 0.0
    %3686 = vmatpush1.msra.mxu0 %v2392
    %3687 = vmatprep.subr.mxu0 0.0
    %3688 = vmatpush1.msra.mxu0 %v2393
    %3689 = vmatprep.subr.mxu0 0.0
    %3690 = vmatpush1.msra.mxu0 %v2394
    %3691 = vmatprep.subr.mxu0 0.0
    %3692 = vmatpush1.msra.mxu0 0.0
    %3693 = vmatprep.subr.mxu0 0.0
    %3694 = vmatpush1.msra.mxu0 0.0
    %3695 = vmatprep.subr.mxu0 0.0
    %3696 = vmatpush1.msra.mxu0 0.0
    %3697 = vmatprep.subr.mxu0 0.0
    %3698 = vmatpush1.msra.mxu0 0.0
    %3699 = vmatprep.subr.mxu0 0.0
    %3700 = vmatpush1.msra.mxu0 0.0
    %3701 = vmatprep.subr.mxu0 0.0
    %3702 = vmatpush1.msra.mxu0 0.0
    %3703 = vmatprep.subr.mxu0 0.0
    %3704 = vmatpush1.msra.mxu0 0.0
    %3705 = vmatprep.subr.mxu0 0.0
    %3706 = vmatpush1.msra.mxu0 0.0
    %3707 = vmatprep.subr.mxu0 0.0
    %3708 = vmatpush1.msra.mxu0 0.0
    %3709 = vmatprep.subr.mxu0 0.0
    %3710 = vmatpush1.msra.mxu0 0.0
    %3711 = vmatprep.subr.mxu0 0.0
    %3712 = vmatpush1.msra.mxu0 0.0
    %3713 = vmatprep.subr.mxu0 0.0
    %3714 = vmatpush1.msra.mxu0 0.0
    %3715 = vmatprep.subr.mxu0 0.0
    %3716 = vmatpush1.msra.mxu0 0.0
    %3717 = vmatprep.subr.mxu0 0.0
    %3718 = vmatpush1.msra.mxu0 0.0
    %3719 = vmatprep.subr.mxu0 0.0
    %3720 = vmatpush1.msra.mxu0 0.0
    %3721 = vmatprep.subr.mxu0 0.0
    %3722 = vmatpush1.msra.mxu0 0.0
    %3723 = vmatprep.subr.mxu0 0.0
    %3724 = vmatpush1.msra.mxu0 0.0
    %3725 = vmatprep.subr.mxu0 0.0
    %3726 = vmatpush1.msra.mxu0 0.0
    %3727 = vmatprep.subr.mxu0 0.0
    %3728 = vmatpush1.msra.mxu0 0.0
    %3729 = vmatprep.subr.mxu0 0.0
    %3730 = vmatpush1.msra.mxu0 0.0
    %3731 = vmatprep.subr.mxu0 0.0
    %3732 = vmatpush1.msra.mxu0 0.0
    %3733 = vmatprep.subr.mxu0 0.0
    %3734 = vmatpush1.msra.mxu0 0.0
    %3735 = vmatprep.subr.mxu0 0.0
    %3736 = vmatpush1.msra.mxu0 0.0
    %3737 = vmatprep.subr.mxu0 0.0
    %3738 = vmatpush1.msra.mxu0 0.0
    %3739 = vmatprep.subr.mxu0 0.0
    %3740 = vmatpush1.msra.mxu0 0.0
    %3741 = vmatprep.subr.mxu0 0.0
    %3742 = vmatpush1.msra.mxu0 0.0
    %3743 = vmatprep.subr.mxu0 0.0
    %3744 = vmatpush1.msra.mxu0 0.0
    %3745 = vmatprep.subr.mxu0 0.0
    %3746 = vmatpush1.msra.mxu0 0.0
    %3747 = vmatprep.mubr.f32.mxu0 0.0
    %3748 = vmatmul.mubr.f32.gmra.mrb[0].mxu0 %v3681
    %v3749 = vpop.f32.mrb[0].mxu0
    %v3750 = vadd.f32 0.0, %v3749
    %v3751 = vpop.f32.mrb[0].mxu0
    %3752 = vdwg.mxu0
    %v3753 = vadd.f32 %v2380, %v3750
    %v3754 = vmul.f32 %v3753, %v205
    %v3755 = vtanh.pop %v3754
    %v3756 = vmul.f32 %v3755, %v205
    %v3757 = vadd.f32 %v3756, %v206
    %v3758 = vmul.f32 %v3757, %v3552
    %3760 = vrot.lane.b32.xlu0 %v3757, 64
    %v3761 = vpop.permute.xlu0 %3760
    %v3763 = vmul.f32 %v3757, %v3761
    %3765 = vrot.lane.b32.xlu0 %v3763, 32
    %v3766 = vpop.permute.xlu0 %3765
    %v3768 = vadd.f32 %v3758, %v3766
    %v3769 = vtanh.pop %v3768
    %3771 = vrot.lane.b32.xlu0 %v3769, 64
    %v3772 = vpop.permute.xlu0 %3771
    %v3774 = vmul.f32 %v3757, %v3772
    %v3777 = vunpack.c.l.s4 1983009808
    %v3778 = vunpack.c.0.s8 %v3777
    %v3779 = vlaneseq
    %v3780 = vshrl.u32 %v3779, 7
    %v3781 = vsub.s32 %v3778, %v3780
    %v3782 = vrot.slane %v3664, %v3781
    %3783 = vrot.lane.b32.xlu0 %v3782, 32
    %v3784 = vpop.permute.xlu0 %3783
    %v3785 = vsel %vm407, %v3784, 0
    %3787 = vmatprep.subr.mxu0 0.0
    %3788 = vmatpush1.msra.mxu0 %v2487
    %3789 = vmatprep.subr.mxu0 0.0
    %3790 = vmatpush1.msra.mxu0 %v2488
    %3791 = vmatprep.subr.mxu0 0.0
    %3792 = vmatpush1.msra.mxu0 %v2489
    %3793 = vmatprep.subr.mxu0 0.0
    %3794 = vmatpush1.msra.mxu0 %v2490
    %3795 = vmatprep.subr.mxu0 0.0
    %3796 = vmatpush1.msra.mxu0 0.0
    %3797 = vmatprep.subr.mxu0 0.0
    %3798 = vmatpush1.msra.mxu0 0.0
    %3799 = vmatprep.subr.mxu0 0.0
    %3800 = vmatpush1.msra.mxu0 0.0
    %3801 = vmatprep.subr.mxu0 0.0
    %3802 = vmatpush1.msra.mxu0 0.0
    %3803 = vmatprep.subr.mxu0 0.0
    %3804 = vmatpush1.msra.mxu0 0.0
    %3805 = vmatprep.subr.mxu0 0.0
    %3806 = vmatpush1.msra.mxu0 0.0
    %3807 = vmatprep.subr.mxu0 0.0
    %3808 = vmatpush1.msra.mxu0 0.0
    %3809 = vmatprep.subr.mxu0 0.0
    %3810 = vmatpush1.msra.mxu0 0.0
    %3811 = vmatprep.subr.mxu0 0.0
    %3812 = vmatpush1.msra.mxu0 0.0
    %3813 = vmatprep.subr.mxu0 0.0
    %3814 = vmatpush1.msra.mxu0 0.0
    %3815 = vmatprep.subr.mxu0 0.0
    %3816 = vmatpush1.msra.mxu0 0.0
    %3817 = vmatprep.subr.mxu0 0.0
    %3818 = vmatpush1.msra.mxu0 0.0
    %3819 = vmatprep.subr.mxu0 0.0
    %3820 = vmatpush1.msra.mxu0 0.0
    %3821 = vmatprep.subr.mxu0 0.0
    %3822 = vmatpush1.msra.mxu0 0.0
    %3823 = vmatprep.subr.mxu0 0.0
    %3824 = vmatpush1.msra.mxu0 0.0
    %3825 = vmatprep.subr.mxu0 0.0
    %3826 = vmatpush1.msra.mxu0 0.0
    %3827 = vmatprep.subr.mxu0 0.0
    %3828 = vmatpush1.msra.mxu0 0.0
    %3829 = vmatprep.subr.mxu0 0.0
    %3830 = vmatpush1.msra.mxu0 0.0
    %3831 = vmatprep.subr.mxu0 0.0
    %3832 = vmatpush1.msra.mxu0 0.0
    %3833 = vmatprep.subr.mxu0 0.0
    %3834 = vmatpush1.msra.mxu0 0.0
    %3835 = vmatprep.subr.mxu0 0.0
    %3836 = vmatpush1.msra.mxu0 0.0
    %3837 = vmatprep.subr.mxu0 0.0
    %3838 = vmatpush1.msra.mxu0 0.0
    %3839 = vmatprep.subr.mxu0 0.0
    %3840 = vmatpush1.msra.mxu0 0.0
    %3841 = vmatprep.subr.mxu0 0.0
    %3842 = vmatpush1.msra.mxu0 0.0
    %3843 = vmatprep.subr.mxu0 0.0
    %3844 = vmatpush1.msra.mxu0 0.0
    %3845 = vmatprep.subr.mxu0 0.0
    %3846 = vmatpush1.msra.mxu0 0.0
    %3847 = vmatprep.subr.mxu0 0.0
    %3848 = vmatpush1.msra.mxu0 0.0
    %3849 = vmatprep.subr.mxu0 0.0
    %3850 = vmatpush1.msra.mxu0 0.0
    %3851 = vmatprep.mubr.f32.mxu0 0.0
    %3852 = vmatmul.mubr.f32.gmra.mrb[0].mxu0 %v3785
    %v3853 = vpop.f32.mrb[0].mxu0
    %v3854 = vadd.f32 0.0, %v3853
    %v3855 = vpop.f32.mrb[0].mxu0
    %3856 = vdwg.mxu0
    %v3857 = vrot.slane %v2363, 2
    %v3859 = vadd.f32 %v3857, %v3854
    %v3860 = vmul.f32 %v3859, %v205
    %v3861 = vtanh.pop %v3860
    %v3862 = vmul.f32 %v3861, %v205
    %v3863 = vadd.f32 %v3862, %v206
    %v3864 = vmul.f32 %v3863, %v3658
    %3866 = vrot.lane.b32.xlu0 %v3863, 64
    %v3867 = vpop.permute.xlu0 %3866
    %v3869 = vmul.f32 %v3863, %v3867
    %3871 = vrot.lane.b32.xlu0 %v3869, 32
    %v3872 = vpop.permute.xlu0 %3871
    %v3874 = vadd.f32 %v3864, %v3872
    %v3875 = vtanh.pop %v3874
    %3877 = vrot.lane.b32.xlu0 %v3875, 64
    %v3878 = vpop.permute.xlu0 %3877
    %v3880 = vmul.f32 %v3863, %v3878
    %v3881 = vadd.f32 %v3665, %v3774
    %v3882 = vmul.f32 %v3774, %v3774
    %v3883 = vadd.f32 %v3667, %v3882
    %v3884 = vadd.f32 %v3668, %v3880
    %v3885 = vmul.f32 %v3880, %v3880
    %v3886 = vadd.f32 %v3670, %v3885
    %v3889 = vunpack.c.l.s4 1983009808
    %v3890 = vunpack.c.0.s8 %v3889
    %v3891 = vlaneseq
    %v3892 = vshrl.u32 %v3891, 7
    %v3893 = vsub.s32 %v3890, %v3892
    %v3894 = vrot.slane %v3774, %v3893
    %3895 = vrot.lane.b32.xlu0 %v3894, 32
    %v3896 = vpop.permute.xlu0 %3895
    %v3897 = vsel %vm407, %v3896, 0
    %3899 = vmatprep.subr.mxu0 0.0
    %3900 = vmatpush1.msra.mxu0 %v2391
    %3901 = vmatprep.subr.mxu0 0.0
    %3902 = vmatpush1.msra.mxu0 %v2392
    %3903 = vmatprep.subr.mxu0 0.0
    %3904 = vmatpush1.msra.mxu0 %v2393
    %3905 = vmatprep.subr.mxu0 0.0
    %3906 = vmatpush1.msra.mxu0 %v2394
    %3907 = vmatprep.subr.mxu0 0.0
    %3908 = vmatpush1.msra.mxu0 0.0
    %3909 = vmatprep.subr.mxu0 0.0
    %3910 = vmatpush1.msra.mxu0 0.0
    %3911 = vmatprep.subr.mxu0 0.0
    %3912 = vmatpush1.msra.mxu0 0.0
    %3913 = vmatprep.subr.mxu0 0.0
    %3914 = vmatpush1.msra.mxu0 0.0
    %3915 = vmatprep.subr.mxu0 0.0
    %3916 = vmatpush1.msra.mxu0 0.0
    %3917 = vmatprep.subr.mxu0 0.0
    %3918 = vmatpush1.msra.mxu0 0.0
    %3919 = vmatprep.subr.mxu0 0.0
    %3920 = vmatpush1.msra.mxu0 0.0
    %3921 = vmatprep.subr.mxu0 0.0
    %3922 = vmatpush1.msra.mxu0 0.0
    %3923 = vmatprep.subr.mxu0 0.0
    %3924 = vmatpush1.msra.mxu0 0.0
    %3925 = vmatprep.subr.mxu0 0.0
    %3926 = vmatpush1.msra.mxu0 0.0
    %3927 = vmatprep.subr.mxu0 0.0
    %3928 = vmatpush1.msra.mxu0 0.0
    %3929 = vmatprep.subr.mxu0 0.0
    %3930 = vmatpush1.msra.mxu0 0.0
    %3931 = vmatprep.subr.mxu0 0.0
    %3932 = vmatpush1.msra.mxu0 0.0
    %3933 = vmatprep.subr.mxu0 0.0
    %3934 = vmatpush1.msra.mxu0 0.0
    %3935 = vmatprep.subr.mxu0 0.0
    %3936 = vmatpush1.msra.mxu0 0.0
    %3937 = vmatprep.subr.mxu0 0.0
    %3938 = vmatpush1.msra.mxu0 0.0
    %3939 = vmatprep.subr.mxu0 0.0
    %3940 = vmatpush1.msra.mxu0 0.0
    %3941 = vmatprep.subr.mxu0 0.0
    %3942 = vmatpush1.msra.mxu0 0.0
    %3943 = vmatprep.subr.mxu0 0.0
    %3944 = vmatpush1.msra.mxu0 0.0
    %3945 = vmatprep.subr.mxu0 0.0
    %3946 = vmatpush1.msra.mxu0 0.0
    %3947 = vmatprep.subr.mxu0 0.0
    %3948 = vmatpush1.msra.mxu0 0.0
    %3949 = vmatprep.subr.mxu0 0.0
    %3950 = vmatpush1.msra.mxu0 0.0
    %3951 = vmatprep.subr.mxu0 0.0
    %3952 = vmatpush1.msra.mxu0 0.0
    %3953 = vmatprep.subr.mxu0 0.0
    %3954 = vmatpush1.msra.mxu0 0.0
    %3955 = vmatprep.subr.mxu0 0.0
    %3956 = vmatpush1.msra.mxu0 0.0
    %3957 = vmatprep.subr.mxu0 0.0
    %3958 = vmatpush1.msra.mxu0 0.0
    %3959 = vmatprep.subr.mxu0 0.0
    %3960 = vmatpush1.msra.mxu0 0.0
    %3961 = vmatprep.subr.mxu0 0.0
    %3962 = vmatpush1.msra.mxu0 0.0
    %3963 = vmatprep.mubr.f32.mxu0 0.0
    %3964 = vmatmul.mubr.f32.gmra.mrb[0].mxu0 %v3897
    %v3965 = vpop.f32.mrb[0].mxu0
    %v3966 = vadd.f32 0.0, %v3965
    %v3967 = vpop.f32.mrb[0].mxu0
    %3968 = vdwg.mxu0
    %v3969 = vadd.f32 %v2382, %v3966
    %v3970 = vmul.f32 %v3969, %v205
    %v3971 = vtanh.pop %v3970
    %v3972 = vmul.f32 %v3971, %v205
    %v3973 = vadd.f32 %v3972, %v206
    %v3974 = vmul.f32 %v3973, %v3768
    %3976 = vrot.lane.b32.xlu0 %v3973, 64
    %v3977 = vpop.permute.xlu0 %3976
    %v3979 = vmul.f32 %v3973, %v3977
    %3981 = vrot.lane.b32.xlu0 %v3979, 32
    %v3982 = vpop.permute.xlu0 %3981
    %v3984 = vadd.f32 %v3974, %v3982
    %v3985 = vtanh.pop %v3984
    %3987 = vrot.lane.b32.xlu0 %v3985, 64
    %v3988 = vpop.permute.xlu0 %3987
    %v3990 = vmul.f32 %v3973, %v3988
    %v3993 = vunpack.c.l.s4 1983009808
    %v3994 = vunpack.c.0.s8 %v3993
    %v3995 = vlaneseq
    %v3996 = vshrl.u32 %v3995, 7
    %v3997 = vsub.s32 %v3994, %v3996
    %v3998 = vrot.slane %v3880, %v3997
    %3999 = vrot.lane.b32.xlu0 %v3998, 32
    %v4000 = vpop.permute.xlu0 %3999
    %v4001 = vsel %vm407, %v4000, 0
    %4003 = vmatprep.subr.mxu0 0.0
    %4004 = vmatpush1.msra.mxu0 %v2487
    %4005 = vmatprep.subr.mxu0 0.0
    %4006 = vmatpush1.msra.mxu0 %v2488
    %4007 = vmatprep.subr.mxu0 0.0
    %4008 = vmatpush1.msra.mxu0 %v2489
    %4009 = vmatprep.subr.mxu0 0.0
    %4010 = vmatpush1.msra.mxu0 %v2490
    %4011 = vmatprep.subr.mxu0 0.0
    %4012 = vmatpush1.msra.mxu0 0.0
    %4013 = vmatprep.subr.mxu0 0.0
    %4014 = vmatpush1.msra.mxu0 0.0
    %4015 = vmatprep.subr.mxu0 0.0
    %4016 = vmatpush1.msra.mxu0 0.0
    %4017 = vmatprep.subr.mxu0 0.0
    %4018 = vmatpush1.msra.mxu0 0.0
    %4019 = vmatprep.subr.mxu0 0.0
    %4020 = vmatpush1.msra.mxu0 0.0
    %4021 = vmatprep.subr.mxu0 0.0
    %4022 = vmatpush1.msra.mxu0 0.0
    %4023 = vmatprep.subr.mxu0 0.0
    %4024 = vmatpush1.msra.mxu0 0.0
    %4025 = vmatprep.subr.mxu0 0.0
    %4026 = vmatpush1.msra.mxu0 0.0
    %4027 = vmatprep.subr.mxu0 0.0
    %4028 = vmatpush1.msra.mxu0 0.0
    %4029 = vmatprep.subr.mxu0 0.0
    %4030 = vmatpush1.msra.mxu0 0.0
    %4031 = vmatprep.subr.mxu0 0.0
    %4032 = vmatpush1.msra.mxu0 0.0
    %4033 = vmatprep.subr.mxu0 0.0
    %4034 = vmatpush1.msra.mxu0 0.0
    %4035 = vmatprep.subr.mxu0 0.0
    %4036 = vmatpush1.msra.mxu0 0.0
    %4037 = vmatprep.subr.mxu0 0.0
    %4038 = vmatpush1.msra.mxu0 0.0
    %4039 = vmatprep.subr.mxu0 0.0
    %4040 = vmatpush1.msra.mxu0 0.0
    %4041 = vmatprep.subr.mxu0 0.0
    %4042 = vmatpush1.msra.mxu0 0.0
    %4043 = vmatprep.subr.mxu0 0.0
    %4044 = vmatpush1.msra.mxu0 0.0
    %4045 = vmatprep.subr.mxu0 0.0
    %4046 = vmatpush1.msra.mxu0 0.0
    %4047 = vmatprep.subr.mxu0 0.0
    %4048 = vmatpush1.msra.mxu0 0.0
    %4049 = vmatprep.subr.mxu0 0.0
    %4050 = vmatpush1.msra.mxu0 0.0
    %4051 = vmatprep.subr.mxu0 0.0
    %4052 = vmatpush1.msra.mxu0 0.0
    %4053 = vmatprep.subr.mxu0 0.0
    %4054 = vmatpush1.msra.mxu0 0.0
    %4055 = vmatprep.subr.mxu0 0.0
    %4056 = vmatpush1.msra.mxu0 0.0
    %4057 = vmatprep.subr.mxu0 0.0
    %4058 = vmatpush1.msra.mxu0 0.0
    %4059 = vmatprep.subr.mxu0 0.0
    %4060 = vmatpush1.msra.mxu0 0.0
    %4061 = vmatprep.subr.mxu0 0.0
    %4062 = vmatpush1.msra.mxu0 0.0
    %4063 = vmatprep.subr.mxu0 0.0
    %4064 = vmatpush1.msra.mxu0 0.0
    %4065 = vmatprep.subr.mxu0 0.0
    %4066 = vmatpush1.msra.mxu0 0.0
    %4067 = vmatprep.mubr.f32.mxu0 0.0
    %4068 = vmatmul.mubr.f32.gmra.mrb[0].mxu0 %v4001
    %v4069 = vpop.f32.mrb[0].mxu0
    %v4070 = vadd.f32 0.0, %v4069
    %v4071 = vpop.f32.mrb[0].mxu0
    %4072 = vdwg.mxu0
    %v4073 = vrot.slane %v2355, 2
    %v4075 = vadd.f32 %v4073, %v4070
    %v4076 = vmul.f32 %v4075, %v205
    %v4077 = vtanh.pop %v4076
    %v4078 = vmul.f32 %v4077, %v205
    %v4079 = vadd.f32 %v4078, %v206
    %v4080 = vmul.f32 %v4079, %v3874
    %4082 = vrot.lane.b32.xlu0 %v4079, 64
    %v4083 = vpop.permute.xlu0 %4082
    %v4085 = vmul.f32 %v4079, %v4083
    %4087 = vrot.lane.b32.xlu0 %v4085, 32
    %v4088 = vpop.permute.xlu0 %4087
    %v4090 = vadd.f32 %v4080, %v4088
    %v4091 = vtanh.pop %v4090
    %4093 = vrot.lane.b32.xlu0 %v4091, 64
    %v4094 = vpop.permute.xlu0 %4093
    %v4096 = vmul.f32 %v4079, %v4094
    %v4097 = vadd.f32 %v3881, %v3990
    %v4098 = vmul.f32 %v3990, %v3990
    %v4099 = vadd.f32 %v3883, %v4098
    %v4100 = vadd.f32 %v3884, %v4096
    %v4101 = vmul.f32 %v4096, %v4096
    %v4102 = vadd.f32 %v3886, %v4101
    %v4103 = vmul.f32 %v4097, 0.125
    %v4104 = vmul.f32 %v4100, 0.125
    %v4105 = vmul.f32 %v4097, %v4103
    %v4106 = vsub.f32 %v4099, %v4105
    %v4107 = vmax.f32 %v4106, 0.0
    %v4108 = vmul.f32 %v4107, 0.14285715
    %v4109 = vrsqrt.pop %v4108
    %v4110 = vmul.f32 %v4108, %v4109
    %vm4111 = vcmp.eq.f32.partialorder %v4108, inf
    %v4112 = vsel %vm4111, %v4108, %v4110
    %vm4113 = vcmp.eq.f32.partialorder %v4108, 0.0
    %v4114 = vand.u32 %v4108, 2147483648
    %v4115 = vsel %vm4113, %v4114, %v4112
    %v4116 = vmul.f32 %v4100, %v4104
    %v4117 = vsub.f32 %v4102, %v4116
    %v4118 = vmax.f32 %v4117, 0.0
    %v4119 = vmul.f32 %v4118, 0.14285715
    %v4120 = vrsqrt.pop %v4119
    %v4121 = vmul.f32 %v4119, %v4120
    %vm4122 = vcmp.eq.f32.partialorder %v4119, inf
    %v4123 = vsel %vm4122, %v4119, %v4121
    %vm4124 = vcmp.eq.f32.partialorder %v4119, 0.0
    %v4125 = vand.u32 %v4119, 2147483648
    %v4126 = vsel %vm4124, %v4125, %v4123
    %v4127 = vmax.f32 %v4103, 0.0
    %v4128 = vmax.f32 %v4104, 0.0
    %v4129 = vld [vmem:[%s10] sm:$0xff]
    %v4130 = vld [vmem:[%s10 + $0x8] sm:$0xff]
    %v4131 = vld [vmem:[%s10 + $0x10] sm:$0xff]
    %v4132 = vld [vmem:[%s10 + $0x18] sm:$0xff]
    %v4133 = vld [vmem:[#allocation16] sm:$0xff]
    %v4134 = vld [vmem:[#allocation16 + $0x8] sm:$0xff]
    %v4135 = vld [vmem:[#allocation16 + $0x10] sm:$0xff]
    %v4136 = vld [vmem:[#allocation16 + $0x18] sm:$0xff]
    %v4139 = vunpack.c.l.s4 1983009808
    %v4140 = vunpack.c.0.s8 %v4139
    %v4141 = vlaneseq
    %v4142 = vshrl.u32 %v4141, 7
    %v4143 = vsub.s32 %v4140, %v4142
    %v4144 = vrot.slane %v4128, %v4143
    %4145 = vrot.lane.b32.xlu0 %v4144, 32
    %v4146 = vpop.permute.xlu0 %4145
    %v4147 = vsel %vm407, %v4146, 0
    %4149 = vmatprep.subr.mxu0 0.0
    %4150 = vmatpush1.msra.mxu0 %v4133
    %4151 = vmatprep.subr.mxu0 0.0
    %4152 = vmatpush1.msra.mxu0 %v4134
    %4153 = vmatprep.subr.mxu0 0.0
    %4154 = vmatpush1.msra.mxu0 %v4135
    %4155 = vmatprep.subr.mxu0 0.0
    %4156 = vmatpush1.msra.mxu0 %v4136
    %4157 = vmatprep.subr.mxu0 0.0
    %4158 = vmatpush1.msra.mxu0 0.0
    %4159 = vmatprep.subr.mxu0 0.0
    %4160 = vmatpush1.msra.mxu0 0.0
    %4161 = vmatprep.subr.mxu0 0.0
    %4162 = vmatpush1.msra.mxu0 0.0
    %4163 = vmatprep.subr.mxu0 0.0
    %4164 = vmatpush1.msra.mxu0 0.0
    %4165 = vmatprep.subr.mxu0 0.0
    %4166 = vmatpush1.msra.mxu0 0.0
    %4167 = vmatprep.subr.mxu0 0.0
    %4168 = vmatpush1.msra.mxu0 0.0
    %4169 = vmatprep.subr.mxu0 0.0
    %4170 = vmatpush1.msra.mxu0 0.0
    %4171 = vmatprep.subr.mxu0 0.0
    %4172 = vmatpush1.msra.mxu0 0.0
    %4173 = vmatprep.subr.mxu0 0.0
    %4174 = vmatpush1.msra.mxu0 0.0
    %4175 = vmatprep.subr.mxu0 0.0
    %4176 = vmatpush1.msra.mxu0 0.0
    %4177 = vmatprep.subr.mxu0 0.0
    %4178 = vmatpush1.msra.mxu0 0.0
    %4179 = vmatprep.subr.mxu0 0.0
    %4180 = vmatpush1.msra.mxu0 0.0
    %4181 = vmatprep.subr.mxu0 0.0
    %4182 = vmatpush1.msra.mxu0 0.0
    %4183 = vmatprep.subr.mxu0 0.0
    %4184 = vmatpush1.msra.mxu0 0.0
    %4185 = vmatprep.subr.mxu0 0.0
    %4186 = vmatpush1.msra.mxu0 0.0
    %4187 = vmatprep.subr.mxu0 0.0
    %4188 = vmatpush1.msra.mxu0 0.0
    %4189 = vmatprep.subr.mxu0 0.0
    %4190 = vmatpush1.msra.mxu0 0.0
    %4191 = vmatprep.subr.mxu0 0.0
    %4192 = vmatpush1.msra.mxu0 0.0
    %4193 = vmatprep.subr.mxu0 0.0
    %4194 = vmatpush1.msra.mxu0 0.0
    %4195 = vmatprep.subr.mxu0 0.0
    %4196 = vmatpush1.msra.mxu0 0.0
    %4197 = vmatprep.subr.mxu0 0.0
    %4198 = vmatpush1.msra.mxu0 0.0
    %4199 = vmatprep.subr.mxu0 0.0
    %4200 = vmatpush1.msra.mxu0 0.0
    %4201 = vmatprep.subr.mxu0 0.0
    %4202 = vmatpush1.msra.mxu0 0.0
    %4203 = vmatprep.subr.mxu0 0.0
    %4204 = vmatpush1.msra.mxu0 0.0
    %4205 = vmatprep.subr.mxu0 0.0
    %4206 = vmatpush1.msra.mxu0 0.0
    %4207 = vmatprep.subr.mxu0 0.0
    %4208 = vmatpush1.msra.mxu0 0.0
    %4209 = vmatprep.subr.mxu0 0.0
    %4210 = vmatpush1.msra.mxu0 0.0
    %4211 = vmatprep.subr.mxu0 0.0
    %4212 = vmatpush1.msra.mxu0 0.0
    %4213 = vmatprep.mubr.f32.mxu0 0.0
    %4214 = vmatmul.mubr.f32.gmra.mrb[0].mxu0 %v4147
    %v4215 = vpop.f32.mrb[0].mxu0
    %v4216 = vadd.f32 0.0, %v4215
    %v4217 = vpop.f32.mrb[0].mxu0
    %4218 = vdwg.mxu0
    %v4221 = vunpack.c.l.s4 1983009808
    %v4222 = vunpack.c.0.s8 %v4221
    %v4223 = vlaneseq
    %v4224 = vshrl.u32 %v4223, 7
    %v4225 = vsub.s32 %v4222, %v4224
    %v4226 = vrot.slane %v4127, %v4225
    %4227 = vrot.lane.b32.xlu0 %v4226, 32
    %v4228 = vpop.permute.xlu0 %4227
    %v4229 = vsel %vm407, %v4228, 0
    %4231 = vmatprep.subr.mxu0 0.0
    %4232 = vmatpush1.msra.mxu0 %v4129
    %4233 = vmatprep.subr.mxu0 0.0
    %4234 = vmatpush1.msra.mxu0 %v4130
    %4235 = vmatprep.subr.mxu0 0.0
    %4236 = vmatpush1.msra.mxu0 %v4131
    %4237 = vmatprep.subr.mxu0 0.0
    %4238 = vmatpush1.msra.mxu0 %v4132
    %4239 = vmatprep.subr.mxu0 0.0
    %4240 = vmatpush1.msra.mxu0 0.0
    %4241 = vmatprep.subr.mxu0 0.0
    %4242 = vmatpush1.msra.mxu0 0.0
    %4243 = vmatprep.subr.mxu0 0.0
    %4244 = vmatpush1.msra.mxu0 0.0
    %4245 = vmatprep.subr.mxu0 0.0
    %4246 = vmatpush1.msra.mxu0 0.0
    %4247 = vmatprep.subr.mxu0 0.0
    %4248 = vmatpush1.msra.mxu0 0.0
    %4249 = vmatprep.subr.mxu0 0.0
    %4250 = vmatpush1.msra.mxu0 0.0
    %4251 = vmatprep.subr.mxu0 0.0
    %4252 = vmatpush1.msra.mxu0 0.0
    %4253 = vmatprep.subr.mxu0 0.0
    %4254 = vmatpush1.msra.mxu0 0.0
    %4255 = vmatprep.subr.mxu0 0.0
    %4256 = vmatpush1.msra.mxu0 0.0
    %4257 = vmatprep.subr.mxu0 0.0
    %4258 = vmatpush1.msra.mxu0 0.0
    %4259 = vmatprep.subr.mxu0 0.0
    %4260 = vmatpush1.msra.mxu0 0.0
    %4261 = vmatprep.subr.mxu0 0.0
    %4262 = vmatpush1.msra.mxu0 0.0
    %4263 = vmatprep.subr.mxu0 0.0
    %4264 = vmatpush1.msra.mxu0 0.0
    %4265 = vmatprep.subr.mxu0 0.0
    %4266 = vmatpush1.msra.mxu0 0.0
    %4267 = vmatprep.subr.mxu0 0.0
    %4268 = vmatpush1.msra.mxu0 0.0
    %4269 = vmatprep.subr.mxu0 0.0
    %4270 = vmatpush1.msra.mxu0 0.0
    %4271 = vmatprep.subr.mxu0 0.0
    %4272 = vmatpush1.msra.mxu0 0.0
    %4273 = vmatprep.subr.mxu0 0.0
    %4274 = vmatpush1.msra.mxu0 0.0
    %4275 = vmatprep.subr.mxu0 0.0
    %4276 = vmatpush1.msra.mxu0 0.0
    %4277 = vmatprep.subr.mxu0 0.0
    %4278 = vmatpush1.msra.mxu0 0.0
    %4279 = vmatprep.subr.mxu0 0.0
    %4280 = vmatpush1.msra.mxu0 0.0
    %4281 = vmatprep.subr.mxu0 0.0
    %4282 = vmatpush1.msra.mxu0 0.0
    %4283 = vmatprep.subr.mxu0 0.0
    %4284 = vmatpush1.msra.mxu0 0.0
    %4285 = vmatprep.subr.mxu0 0.0
    %4286 = vmatpush1.msra.mxu0 0.0
    %4287 = vmatprep.subr.mxu0 0.0
    %4288 = vmatpush1.msra.mxu0 0.0
    %4289 = vmatprep.subr.mxu0 0.0
    %4290 = vmatpush1.msra.mxu0 0.0
    %4291 = vmatprep.subr.mxu0 0.0
    %4292 = vmatpush1.msra.mxu0 0.0
    %4293 = vmatprep.subr.mxu0 0.0
    %4294 = vmatpush1.msra.mxu0 0.0
    %4295 = vmatprep.mubr.f32.mxu0 0.0
    %4296 = vmatmul.mubr.f32.gmra.mrb[0].mxu0 %v4229
    %v4297 = vpop.f32.mrb[0].mxu0
    %v4298 = vadd.f32 %v4216, %v4297
    %v4299 = vpop.f32.mrb[0].mxu0
    %4300 = vdwg.mxu0
    %v4301 = vld [vmem:[#allocation17] sm:$0xff]
    %v4302 = vld [vmem:[#allocation17 + $0x8] sm:$0xff]
    %v4303 = vld [vmem:[#allocation17 + $0x10] sm:$0xff]
    %v4304 = vld [vmem:[#allocation17 + $0x18] sm:$0xff]
    %v4307 = vunpack.c.l.s4 1983009808
    %v4308 = vunpack.c.0.s8 %v4307
    %v4309 = vlaneseq
    %v4310 = vshrl.u32 %v4309, 7
    %v4311 = vsub.s32 %v4308, %v4310
    %v4312 = vrot.slane %v4115, %v4311
    %4313 = vrot.lane.b32.xlu0 %v4312, 32
    %v4314 = vpop.permute.xlu0 %4313
    %v4315 = vsel %vm407, %v4314, 0
    %4317 = vmatprep.subr.mxu0 0.0
    %4318 = vmatpush1.msra.mxu0 %v4301
    %4319 = vmatprep.subr.mxu0 0.0
    %4320 = vmatpush1.msra.mxu0 %v4302
    %4321 = vmatprep.subr.mxu0 0.0
    %4322 = vmatpush1.msra.mxu0 %v4303
    %4323 = vmatprep.subr.mxu0 0.0
    %4324 = vmatpush1.msra.mxu0 %v4304
    %4325 = vmatprep.subr.mxu0 0.0
    %4326 = vmatpush1.msra.mxu0 0.0
    %4327 = vmatprep.subr.mxu0 0.0
    %4328 = vmatpush1.msra.mxu0 0.0
    %4329 = vmatprep.subr.mxu0 0.0
    %4330 = vmatpush1.msra.mxu0 0.0
    %4331 = vmatprep.subr.mxu0 0.0
    %4332 = vmatpush1.msra.mxu0 0.0
    %4333 = vmatprep.subr.mxu0 0.0
    %4334 = vmatpush1.msra.mxu0 0.0
    %4335 = vmatprep.subr.mxu0 0.0
    %4336 = vmatpush1.msra.mxu0 0.0
    %4337 = vmatprep.subr.mxu0 0.0
    %4338 = vmatpush1.msra.mxu0 0.0
    %4339 = vmatprep.subr.mxu0 0.0
    %4340 = vmatpush1.msra.mxu0 0.0
    %4341 = vmatprep.subr.mxu0 0.0
    %4342 = vmatpush1.msra.mxu0 0.0
    %4343 = vmatprep.subr.mxu0 0.0
    %4344 = vmatpush1.msra.mxu0 0.0
    %4345 = vmatprep.subr.mxu0 0.0
    %4346 = vmatpush1.msra.mxu0 0.0
    %4347 = vmatprep.subr.mxu0 0.0
    %4348 = vmatpush1.msra.mxu0 0.0
    %4349 = vmatprep.subr.mxu0 0.0
    %4350 = vmatpush1.msra.mxu0 0.0
    %4351 = vmatprep.subr.mxu0 0.0
    %4352 = vmatpush1.msra.mxu0 0.0
    %4353 = vmatprep.subr.mxu0 0.0
    %4354 = vmatpush1.msra.mxu0 0.0
    %4355 = vmatprep.subr.mxu0 0.0
    %4356 = vmatpush1.msra.mxu0 0.0
    %4357 = vmatprep.subr.mxu0 0.0
    %4358 = vmatpush1.msra.mxu0 0.0
    %4359 = vmatprep.subr.mxu0 0.0
    %4360 = vmatpush1.msra.mxu0 0.0
    %4361 = vmatprep.subr.mxu0 0.0
    %4362 = vmatpush1.msra.mxu0 0.0
    %4363 = vmatprep.subr.mxu0 0.0
    %4364 = vmatpush1.msra.mxu0 0.0
    %4365 = vmatprep.subr.mxu0 0.0
    %4366 = vmatpush1.msra.mxu0 0.0
    %4367 = vmatprep.subr.mxu0 0.0
    %4368 = vmatpush1.msra.mxu0 0.0
    %4369 = vmatprep.subr.mxu0 0.0
    %4370 = vmatpush1.msra.mxu0 0.0
    %4371 = vmatprep.subr.mxu0 0.0
    %4372 = vmatpush1.msra.mxu0 0.0
    %4373 = vmatprep.subr.mxu0 0.0
    %4374 = vmatpush1.msra.mxu0 0.0
    %4375 = vmatprep.subr.mxu0 0.0
    %4376 = vmatpush1.msra.mxu0 0.0
    %4377 = vmatprep.subr.mxu0 0.0
    %4378 = vmatpush1.msra.mxu0 0.0
    %4379 = vmatprep.subr.mxu0 0.0
    %4380 = vmatpush1.msra.mxu0 0.0
    %4381 = vmatprep.mubr.f32.mxu0 0.0
    %4382 = vmatmul.mubr.f32.gmra.mrb[0].mxu0 %v4315
    %v4383 = vpop.f32.mrb[0].mxu0
    %v4384 = vadd.f32 0.0, %v4383
    %v4385 = vpop.f32.mrb[0].mxu0
    %4386 = vdwg.mxu0
    %v4387 = vadd.f32 %v4298, %v4384
    %v4388 = vld [vmem:[#allocation19] sm:$0xff]
    %v4389 = vld [vmem:[#allocation19 + $0x8] sm:$0xff]
    %v4390 = vld [vmem:[#allocation19 + $0x10] sm:$0xff]
    %v4391 = vld [vmem:[#allocation19 + $0x18] sm:$0xff]
    %v4394 = vunpack.c.l.s4 1983009808
    %v4395 = vunpack.c.0.s8 %v4394
    %v4396 = vlaneseq
    %v4397 = vshrl.u32 %v4396, 7
    %v4398 = vsub.s32 %v4395, %v4397
    %v4399 = vrot.slane %v4126, %v4398
    %4400 = vrot.lane.b32.xlu0 %v4399, 32
    %v4401 = vpop.permute.xlu0 %4400
    %v4402 = vsel %vm407, %v4401, 0
    %4404 = vmatprep.subr.mxu0 0.0
    %4405 = vmatpush1.msra.mxu0 %v4388
    %4406 = vmatprep.subr.mxu0 0.0
    %4407 = vmatpush1.msra.mxu0 %v4389
    %4408 = vmatprep.subr.mxu0 0.0
    %4409 = vmatpush1.msra.mxu0 %v4390
    %4410 = vmatprep.subr.mxu0 0.0
    %4411 = vmatpush1.msra.mxu0 %v4391
    %4412 = vmatprep.subr.mxu0 0.0
    %4413 = vmatpush1.msra.mxu0 0.0
    %4414 = vmatprep.subr.mxu0 0.0
    %4415 = vmatpush1.msra.mxu0 0.0
    %4416 = vmatprep.subr.mxu0 0.0
    %4417 = vmatpush1.msra.mxu0 0.0
    %4418 = vmatprep.subr.mxu0 0.0
    %4419 = vmatpush1.msra.mxu0 0.0
    %4420 = vmatprep.subr.mxu0 0.0
    %4421 = vmatpush1.msra.mxu0 0.0
    %4422 = vmatprep.subr.mxu0 0.0
    %4423 = vmatpush1.msra.mxu0 0.0
    %4424 = vmatprep.subr.mxu0 0.0
    %4425 = vmatpush1.msra.mxu0 0.0
    %4426 = vmatprep.subr.mxu0 0.0
    %4427 = vmatpush1.msra.mxu0 0.0
    %4428 = vmatprep.subr.mxu0 0.0
    %4429 = vmatpush1.msra.mxu0 0.0
    %4430 = vmatprep.subr.mxu0 0.0
    %4431 = vmatpush1.msra.mxu0 0.0
    %4432 = vmatprep.subr.mxu0 0.0
    %4433 = vmatpush1.msra.mxu0 0.0
    %4434 = vmatprep.subr.mxu0 0.0
    %4435 = vmatpush1.msra.mxu0 0.0
    %4436 = vmatprep.subr.mxu0 0.0
    %4437 = vmatpush1.msra.mxu0 0.0
    %4438 = vmatprep.subr.mxu0 0.0
    %4439 = vmatpush1.msra.mxu0 0.0
    %4440 = vmatprep.subr.mxu0 0.0
    %4441 = vmatpush1.msra.mxu0 0.0
    %4442 = vmatprep.subr.mxu0 0.0
    %4443 = vmatpush1.msra.mxu0 0.0
    %4444 = vmatprep.subr.mxu0 0.0
    %4445 = vmatpush1.msra.mxu0 0.0
    %4446 = vmatprep.subr.mxu0 0.0
    %4447 = vmatpush1.msra.mxu0 0.0
    %4448 = vmatprep.subr.mxu0 0.0
    %4449 = vmatpush1.msra.mxu0 0.0
    %4450 = vmatprep.subr.mxu0 0.0
    %4451 = vmatpush1.msra.mxu0 0.0
    %4452 = vmatprep.subr.mxu0 0.0
    %4453 = vmatpush1.msra.mxu0 0.0
    %4454 = vmatprep.subr.mxu0 0.0
    %4455 = vmatpush1.msra.mxu0 0.0
    %4456 = vmatprep.subr.mxu0 0.0
    %4457 = vmatpush1.msra.mxu0 0.0
    %4458 = vmatprep.subr.mxu0 0.0
    %4459 = vmatpush1.msra.mxu0 0.0
    %4460 = vmatprep.subr.mxu0 0.0
    %4461 = vmatpush1.msra.mxu0 0.0
    %4462 = vmatprep.subr.mxu0 0.0
    %4463 = vmatpush1.msra.mxu0 0.0
    %4464 = vmatprep.subr.mxu0 0.0
    %4465 = vmatpush1.msra.mxu0 0.0
    %4466 = vmatprep.subr.mxu0 0.0
    %4467 = vmatpush1.msra.mxu0 0.0
    %4468 = vmatprep.mubr.f32.mxu0 0.0
    %4469 = vmatmul.mubr.f32.gmra.mrb[0].mxu0 %v4402
    %v4470 = vpop.f32.mrb[0].mxu0
    %v4471 = vadd.f32 0.0, %v4470
    %v4472 = vpop.f32.mrb[0].mxu0
    %4473 = vdwg.mxu0
    %v4474 = vadd.f32 %v4387, %v4471
    %v4475 = vld [vmem:[%s14] sm:$0x1]
    %v4477 = vlaneseq
    %v4478 = vshrl.u32 %v4477, 7
    %v4479 = vsub.s32 0, %v4478
    %v4480 = vrot.slane %v4475, %v4479
    %v4482 = vadd.f32 %v4474, %v4480
    %v4483 = vmax.f32 %v4482, 0.0
    %vm4484 = vcmask 254976
    %4485 = vst.msk [vmem:[#allocation20] sm:$0x3] %vm4484, %v4483
    // Predicated region
    $region106: #{tpu_custom_call.1} parent=1 // pred_check
      _
    $region107: #{tpu_custom_call.1} parent=1 // pred_check_branch
      %4487 = sbr.rel (0) target = $region109
    $region108: #{tpu_custom_call.1} parent=1 // pred_region
      %s4489 = ssub.s32 32, 32
      %4490 = vsyncadd [#allocation4], %s4489
      %s4492 = sshll.u32 [#allocation20], 4
      %s4493 = int_to_ptr.vmem [resolvable:$true] %s4492
      %4495 = dma.vmem_to_hbm [thread:$0]  %s4493, 32, %s15, [#allocation4]
    $region109: #{tpu_custom_call.1} parent=1 // pred_fallthru
      _
    // Predicated region
    $region110: #{tpu_custom_call.1} parent=1 // pred_check
      _
    $region111: #{tpu_custom_call.1} parent=1 // pred_check_branch
      %4497 = sbr.rel (0) target = $region113
    $region112: #{tpu_custom_call.1} parent=1 // pred_region
      %4498 = dma.done [#allocation4], 32
    $region113: #{tpu_custom_call.1} parent=1 // pred_fallthru
      _
    %4499 = vsyncpa [#allocation3], 1
    %4500 = vsyncpa [#allocation6], 1
    %4501 = vsyncpa [#allocation9], 1
    %4502 = vsyncpa [#allocation12], 1
    %4503 = vsyncpa [#allocation15], 1
    %4504 = vsyncpa [#allocation18], 1
    %4505 = vsyncpa [#allocation4], 1

</llo_original>
